<compile_context>
chip_gen: v6e
topology: v6e:2x2x1
jax: 0.10.0
libtpu: 0.0.40
codegen_flags: <defaults>
</compile_context>

<pallas_src>
import functools

import jax
import jax.numpy as jnp
from jax.experimental import pallas as pl
from jax.experimental.pallas import tpu as pltpu


# ---------------------------------------------------------------------------
# Kernel: full encoder (all layers) for one batch chunk per grid step.
# ---------------------------------------------------------------------------
def _encoder_kernel(q_ref, v_ref, mask_ref, wqkv_ref, wo_ref, bqkv_ref, vec_ref, o_ref,
                    *, heads, num_layers):
    B, Lq, E = q_ref.shape
    Lk = v_ref.shape[1]
    H = heads
    D = E // H
    rows_q, rows_k = B * Lq, B * Lk

    # Sublane-aligned leading-dim regroups (identity when B == 1, the default chunking).
    def split_batch(t, Lx):      # (H, B*Lx, D) -> (H*B, Lx, D)
        return t if B == 1 else t.reshape(H, B, Lx, D).reshape(H * B, Lx, D)

    def merge_batch(t, Lx):      # (H*B, Lx, D) -> (H, B*Lx, D)
        return t if B == 1 else t.reshape(H, B, Lx, D).reshape(H, B * Lx, D)

    # Running query activation; value/key input is fixed across layers, so its head-batched
    # broadcast is hoisted out of the layer loop.
    x = q_ref[...].reshape(rows_q, E)                                    # (B*Lq, E)
    vb = jnp.broadcast_to(v_ref[...].reshape(rows_k, E)[None], (H, rows_k, E))

    # Mask hoisted + expanded once to the (H*B, Lq, Lk) layout used by the energy tensor.
    if B == 1:
        mask_g = jnp.broadcast_to(mask_ref[...], (H, Lq, Lk)) == 1
    else:
        mask_g = jnp.broadcast_to(mask_ref[...][None], (H, B, Lq, Lk)).reshape(H * B, Lq, Lk) == 1

    inv_scale = jnp.float32(1.0 / (float(E) ** 0.5))
    neg_fill = jnp.float32(-1e-10)       # matches torch masked_fill value exactly
    eps = jnp.float32(1e-5)

    # Static unroll over layers: weights indexed with static l, stay resident in VMEM.
    for l in range(num_layers):
        wq = wqkv_ref[3 * l + 0]         # (H, E, D)
        wk = wqkv_ref[3 * l + 1]
        wv = wqkv_ref[3 * l + 2]
        bq = bqkv_ref[3 * l + 0]         # (H, 1, D)
        bk = bqkv_ref[3 * l + 1]
        bv = bqkv_ref[3 * l + 2]
        wo = wo_ref[l]                   # (H, D, E)
        vecs = vec_ref[l]                # (8, E): rows [bo, gamma, beta, 0...]

        # Head-batched projections: outputs are already (H, rows, D) -- no post-hoc head split.
        xb = jnp.broadcast_to(x[None], (H, rows_q, E))
        Qh = jnp.einsum("hre,hed->hrd", xb, wq, preferred_element_type=jnp.float32) + bq
        Kh = jnp.einsum("hre,hed->hrd", vb, wk, preferred_element_type=jnp.float32) + bk
        Vh = jnp.einsum("hre,hed->hrd", vb, wv, preferred_element_type=jnp.float32) + bv

        Qg = split_batch(Qh, Lq)                                         # (H*B, Lq, D)
        Kg = split_batch(Kh, Lk)                                         # (H*B, Lk, D)
        Vg = split_batch(Vh, Lk)                                         # (H*B, Lk, D)

        # energy[b,h,q,k]; masked_fill happens BEFORE the 1/sqrt(E) scaling (as in torch).
        energy = jnp.einsum("gqd,gkd->gqk", Qg, Kg, preferred_element_type=jnp.float32)
        energy = jnp.where(mask_g, neg_fill, energy) * inv_scale

        # softmax over keys; divide goes to the EUP via approx reciprocal.
        m = jnp.max(energy, axis=-1, keepdims=True)
        p = jnp.exp(energy - m)
        attn = p * pl.reciprocal(jnp.sum(p, axis=-1, keepdims=True), approx=True)

        ctx = jnp.einsum("gqk,gkd->gqd", attn, Vg, preferred_element_type=jnp.float32)
        ctx_h = merge_batch(ctx, Lq)                                     # (H, B*Lq, D)

        # Head merge folded into the output projection: batched (H,rows,D)x(H,D,E) then a cheap
        # elementwise sum over the leading head axis (no lane concat).
        out_h = jnp.einsum("hrd,hde->hre", ctx_h, wo, preferred_element_type=jnp.float32)
        out = jnp.sum(out_h, axis=0) + vecs[0:1, :]                      # (B*Lq, E)

        # residual + LayerNorm(eps=1e-5), all f32.
        y = out + x
        mean = jnp.mean(y, axis=-1, keepdims=True)
        var = jnp.mean((y - mean) ** 2, axis=-1, keepdims=True)
        x = vecs[1:2, :] * ((y - mean) * jax.lax.rsqrt(var + eps)) + vecs[2:3, :]

    o_ref[...] = x.reshape(B, Lq, E)


# ---------------------------------------------------------------------------
# Wrapper
# ---------------------------------------------------------------------------
def transformer_encoder_pallas(query, value, mask, layer_params, *, heads, num_chunks=None):
    """TransformerEncoder.forward: query = layer(query, value, value, mask) for each layer.

    query: (N, Lq, E) f32, value: (N, Lk, E) f32, mask: (N, Lq, Lk) int (1 => masked_fill).
    """
    N, Lq, E = query.shape
    Lk = value.shape[1]
    L = len(layer_params)
    H = heads
    assert E % H == 0, "embed_size must be divisible by heads"
    D = E // H

    if num_chunks is None:
        num_chunks = min(N, 2)           # 2 feeds both v7x TCs; use 1 on v5e/v6e if preferred.
    B = -(-N // num_chunks)              # batch elements per chunk
    N_pad = num_chunks * B

    query = query.astype(jnp.float32)
    value = value.astype(jnp.float32)
    mask = mask.astype(jnp.int32)
    if N_pad != N:
        query = jnp.concatenate([query, jnp.zeros((N_pad - N, Lq, E), jnp.float32)], axis=0)
        value = jnp.concatenate([value, jnp.zeros((N_pad - N, Lk, E), jnp.float32)], axis=0)
        mask = jnp.concatenate([mask, jnp.zeros((N_pad - N, Lq, Lk), jnp.int32)], axis=0)

    # Host-side (one-off, free) weight restructuring into head-major layouts.
    def w_heads(w):                      # (E, E) -> (H, E, D):  w[e, h*D+d] -> [h, e, d]
        return jnp.transpose(w.reshape(E, H, D), (1, 0, 2))

    def b_heads(b):                      # (1, E) -> (H, 1, D)
        return b.reshape(H, 1, D)

    wqkv = jnp.stack([jnp.stack([w_heads(p["wq"]), w_heads(p["wk"]), w_heads(p["wv"])])
                      for p in layer_params]).reshape(3 * L, H, E, D).astype(jnp.float32)
    bqkv = jnp.stack([jnp.stack([b_heads(p["bq"]), b_heads(p["bk"]), b_heads(p["bv"])])
                      for p in layer_params]).reshape(3 * L, H, 1, D).astype(jnp.float32)
    wo = jnp.stack([p["wo"].reshape(H, D, E) for p in layer_params]).astype(jnp.float32)
    zero = jnp.zeros((5, E), jnp.float32)
    vecs = jnp.stack([jnp.concatenate([p["bo"], p["gamma"], p["beta"], zero], axis=0)
                      for p in layer_params]).astype(jnp.float32)        # (L, 8, E)

    kernel = functools.partial(_encoder_kernel, heads=H, num_layers=L)

    # Advisory cost hint for XLA's scheduler.
    flops = 2 * L * N_pad * (2 * Lq * E * E + 2 * Lk * E * E + 2 * Lq * Lk * E)
    transcendentals = L * N_pad * H * Lq * Lk
    bytes_accessed = 4 * (query.size + value.size + mask.size + N_pad * Lq * E
                          + wqkv.size + bqkv.size + wo.size + vecs.size)

    out = pl.pallas_call(
        kernel,
        out_shape=jax.ShapeDtypeStruct((N_pad, Lq, E), jnp.float32),
        grid=(num_chunks,),
        in_specs=[
            pl.BlockSpec((B, Lq, E), lambda c: (c, 0, 0)),               # query chunk
            pl.BlockSpec((B, Lk, E), lambda c: (c, 0, 0)),               # value (== key) chunk
            pl.BlockSpec((B, Lq, Lk), lambda c: (c, 0, 0)),              # mask chunk
            pl.BlockSpec((3 * L, H, E, D), lambda c: (0, 0, 0, 0)),      # Wq/Wk/Wv head-major
            pl.BlockSpec((L, H, D, E), lambda c: (0, 0, 0, 0)),          # Wo head-major
            pl.BlockSpec((3 * L, H, 1, D), lambda c: (0, 0, 0, 0)),      # bq/bk/bv head-shaped
            pl.BlockSpec((L, 8, E), lambda c: (0, 0, 0)),                # [bo, gamma, beta]
        ],
        out_specs=pl.BlockSpec((B, Lq, E), lambda c: (c, 0, 0)),
        compiler_params=pltpu.CompilerParams(dimension_semantics=("parallel",)),
        cost_estimate=pl.CostEstimate(flops=flops, transcendentals=transcendentals,
                                      bytes_accessed=bytes_accessed),
    )(query, value, mask, wqkv, wo, bqkv, vecs)
    return out[:N]


# ---------------------------------------------------------------------------
# Pure-JAX f32 reference (mirrors the PyTorch forward, eval mode) for verification.
# ---------------------------------------------------------------------------
def _ref_layer(q, v, mask, p, heads):
    N, Lq, E = q.shape
    Lk = v.shape[1]
    D = E // heads
    Q = q @ p["wq"] + p["bq"]
    K = v @ p["wk"] + p["bk"]
    V = v @ p["wv"] + p["bv"]
    Qh = Q.reshape(N, Lq, heads, D)
    Kh = K.reshape(N, Lk, heads, D)
    Vh = V.reshape(N, Lk, heads, D)
    energy = jnp.einsum("nqhd,nkhd->nhqk", Qh, Kh)
    energy = jnp.where(mask[:, None, :, :] == 1, jnp.float32(-1e-10), energy)
    attn = jax.nn.softmax(energy / jnp.sqrt(jnp.float32(E)), axis=3)
    out = jnp.einsum("nhqk,nkhd->nqhd", attn, Vh).reshape(N, Lq, E)
    out = out @ p["wo"] + p["bo"]
    x = out + q
    mean = x.mean(-1, keepdims=True)
    var = ((x - mean) ** 2).mean(-1, keepdims=True)
    return p["gamma"] * (x - mean) / jnp.sqrt(var + 1e-5) + p["beta"]


def _ref_encoder(query, value, mask, layer_params, heads):
    for p in layer_params:
        query = _ref_layer(query, value, mask, p, heads)
    return query


# ---------------------------------------------------------------------------
def _init_layer_params(key, embed_size):
    ks = jax.random.split(key, 10)
    s = 0.02
    return {
        "wq": jax.random.normal(ks[0], (embed_size, embed_size), jnp.float32) * s,
        "bq": jax.random.normal(ks[1], (1, embed_size), jnp.float32) * 0.1,
        "wk": jax.random.normal(ks[2], (embed_size, embed_size), jnp.float32) * s,
        "bk": jax.random.normal(ks[3], (1, embed_size), jnp.float32) * 0.1,
        "wv": jax.random.normal(ks[4], (embed_size, embed_size), jnp.float32) * s,
        "bv": jax.random.normal(ks[5], (1, embed_size), jnp.float32) * 0.1,
        "wo": jax.random.normal(ks[6], (embed_size, embed_size), jnp.float32) * s,
        "bo": jax.random.normal(ks[7], (1, embed_size), jnp.float32) * 0.1,
        "gamma": 1.0 + jax.random.normal(ks[8], (1, embed_size), jnp.float32) * 0.1,
        "beta": jax.random.normal(ks[9], (1, embed_size), jnp.float32) * 0.1,
    }


if __name__ == "__main__":
    # Small shapes consistent with the module (d_ff / dropout are unused in the forward).
    N, Lq, Lk = 2, 8, 8
    embed_size, heads, num_layers = 32, 4, 2

    key = jax.random.PRNGKey(0)
    kq, kv, km, *layer_keys = jax.random.split(key, 3 + num_layers)

    query = jax.random.normal(kq, (N, Lq, embed_size), jnp.float32)
    value = jax.random.normal(kv, (N, Lk, embed_size), jnp.float32)
    mask = jax.random.bernoulli(km, 0.25, (N, Lq, Lk)).astype(jnp.int32)

    layer_params = [_init_layer_params(k, embed_size) for k in layer_keys]

    out = transformer_encoder_pallas(query, value, mask, layer_params, heads=heads)
    out = jax.block_until_ready(out)

    ref = _ref_encoder(query, value, mask, layer_params, heads)
    assert out.shape == (N, Lq, embed_size)
    err = jnp.max(jnp.abs(out - ref))
    # f32 matmuls + approx (EUP) reciprocal in the softmax denominator.
    assert jnp.allclose(out, ref, atol=1e-2, rtol=1e-2), f"mismatch vs reference (max abs err {err})"

    print("KERNEL_OK")
</pallas_src>

<mosaic_0001>
module attributes {stable_mosaic.version = 11 : i64} {
  func.func @_encoder_kernel(%arg0: i32, %arg1: memref<1x8x32xf32, #tpu.memory_space<vmem>>, %arg2: memref<1x8x32xf32, #tpu.memory_space<vmem>>, %arg3: memref<1x8x8xi32, #tpu.memory_space<vmem>>, %arg4: memref<6x4x32x8xf32, #tpu.memory_space<vmem>>, %arg5: memref<2x4x8x32xf32, #tpu.memory_space<vmem>>, %arg6: memref<6x4x1x8xf32, #tpu.memory_space<vmem>>, %arg7: memref<2x8x32xf32, #tpu.memory_space<vmem>>, %arg8: memref<1x8x32xf32, #tpu.memory_space<vmem>>) attributes {dimension_semantics = [#tpu.dimension_semantics<parallel>], iteration_bounds = array<i64: 2>, scalar_prefetch = 0 : i64, scratch_operands = 0 : i64, tpu.core_type = #tpu.core_type<tc>, window_params = [{transform_indices = @transform_0, window_bounds = array<i64: 1, 8, 32>}, {transform_indices = @transform_1, window_bounds = array<i64: 1, 8, 32>}, {transform_indices = @transform_2, window_bounds = array<i64: 1, 8, 8>}, {pipeline_mode = #tpu.pipeline_mode<synchronous>, transform_indices = @transform_3, window_bounds = array<i64: 6, 4, 32, 8>}, {pipeline_mode = #tpu.pipeline_mode<synchronous>, transform_indices = @transform_4, window_bounds = array<i64: 2, 4, 8, 32>}, {pipeline_mode = #tpu.pipeline_mode<synchronous>, transform_indices = @transform_5, window_bounds = array<i64: 6, 4, 1, 8>}, {pipeline_mode = #tpu.pipeline_mode<synchronous>, transform_indices = @transform_6, window_bounds = array<i64: 2, 8, 32>}, {transform_indices = @transform_7, window_bounds = array<i64: 1, 8, 32>}]} {
    %c0 = arith.constant 0 : index
    %c0_0 = arith.constant 0 : index
    %c0_1 = arith.constant 0 : index
    %0 = vector.load %arg1[%c0, %c0_0, %c0_1] : memref<1x8x32xf32, #tpu.memory_space<vmem>>, vector<1x8x32xf32>
    %1 = vector.shape_cast %0 : vector<1x8x32xf32> to vector<8x32xf32>
    %c0_2 = arith.constant 0 : index
    %c0_3 = arith.constant 0 : index
    %c0_4 = arith.constant 0 : index
    %2 = vector.load %arg2[%c0_2, %c0_3, %c0_4] : memref<1x8x32xf32, #tpu.memory_space<vmem>>, vector<1x8x32xf32>
    %3 = vector.shape_cast %2 : vector<1x8x32xf32> to vector<8x32xf32>
    %4 = vector.shape_cast %3 : vector<8x32xf32> to vector<1x8x32xf32>
    %5 = vector.shape_cast %4 : vector<1x8x32xf32> to vector<1x8x32xf32>
    %6 = vector.broadcast %5 : vector<1x8x32xf32> to vector<4x8x32xf32>
    %c0_5 = arith.constant 0 : index
    %c0_6 = arith.constant 0 : index
    %c0_7 = arith.constant 0 : index
    %7 = vector.load %arg3[%c0_5, %c0_6, %c0_7] : memref<1x8x8xi32, #tpu.memory_space<vmem>>, vector<1x8x8xi32>
    %8 = vector.shape_cast %7 : vector<1x8x8xi32> to vector<1x8x8xi32>
    %9 = vector.broadcast %8 : vector<1x8x8xi32> to vector<4x8x8xi32>
    %c1_i32 = arith.constant 1 : i32
    %10 = vector.broadcast %c1_i32 : i32 to vector<4x8x8xi32>
    %11 = arith.cmpi eq, %9, %10 : vector<4x8x8xi32>
    %c0_8 = arith.constant 0 : index
    %c0_9 = arith.constant 0 : index
    %c0_10 = arith.constant 0 : index
    %c0_11 = arith.constant 0 : index
    %12 = vector.load %arg4[%c0_8, %c0_9, %c0_10, %c0_11] : memref<6x4x32x8xf32, #tpu.memory_space<vmem>>, vector<1x4x32x8xf32>
    %13 = vector.shape_cast %12 : vector<1x4x32x8xf32> to vector<4x32x8xf32>
    %c1 = arith.constant 1 : index
    %c0_12 = arith.constant 0 : index
    %c0_13 = arith.constant 0 : index
    %c0_14 = arith.constant 0 : index
    %14 = vector.load %arg4[%c1, %c0_12, %c0_13, %c0_14] : memref<6x4x32x8xf32, #tpu.memory_space<vmem>>, vector<1x4x32x8xf32>
    %15 = vector.shape_cast %14 : vector<1x4x32x8xf32> to vector<4x32x8xf32>
    %c2 = arith.constant 2 : index
    %c0_15 = arith.constant 0 : index
    %c0_16 = arith.constant 0 : index
    %c0_17 = arith.constant 0 : index
    %16 = vector.load %arg4[%c2, %c0_15, %c0_16, %c0_17] : memref<6x4x32x8xf32, #tpu.memory_space<vmem>>, vector<1x4x32x8xf32>
    %17 = vector.shape_cast %16 : vector<1x4x32x8xf32> to vector<4x32x8xf32>
    %c0_18 = arith.constant 0 : index
    %c0_19 = arith.constant 0 : index
    %c0_20 = arith.constant 0 : index
    %c0_21 = arith.constant 0 : index
    %18 = vector.load %arg6[%c0_18, %c0_19, %c0_20, %c0_21] : memref<6x4x1x8xf32, #tpu.memory_space<vmem>>, vector<1x4x1x8xf32>
    %19 = vector.shape_cast %18 : vector<1x4x1x8xf32> to vector<4x1x8xf32>
    %c1_22 = arith.constant 1 : index
    %c0_23 = arith.constant 0 : index
    %c0_24 = arith.constant 0 : index
    %c0_25 = arith.constant 0 : index
    %20 = vector.load %arg6[%c1_22, %c0_23, %c0_24, %c0_25] : memref<6x4x1x8xf32, #tpu.memory_space<vmem>>, vector<1x4x1x8xf32>
    %21 = vector.shape_cast %20 : vector<1x4x1x8xf32> to vector<4x1x8xf32>
    %c2_26 = arith.constant 2 : index
    %c0_27 = arith.constant 0 : index
    %c0_28 = arith.constant 0 : index
    %c0_29 = arith.constant 0 : index
    %22 = vector.load %arg6[%c2_26, %c0_27, %c0_28, %c0_29] : memref<6x4x1x8xf32, #tpu.memory_space<vmem>>, vector<1x4x1x8xf32>
    %23 = vector.shape_cast %22 : vector<1x4x1x8xf32> to vector<4x1x8xf32>
    %c0_30 = arith.constant 0 : index
    %c0_31 = arith.constant 0 : index
    %c0_32 = arith.constant 0 : index
    %c0_33 = arith.constant 0 : index
    %24 = vector.load %arg5[%c0_30, %c0_31, %c0_32, %c0_33] : memref<2x4x8x32xf32, #tpu.memory_space<vmem>>, vector<1x4x8x32xf32>
    %25 = vector.shape_cast %24 : vector<1x4x8x32xf32> to vector<4x8x32xf32>
    %c0_34 = arith.constant 0 : index
    %c0_35 = arith.constant 0 : index
    %c0_36 = arith.constant 0 : index
    %26 = vector.load %arg7[%c0_34, %c0_35, %c0_36] : memref<2x8x32xf32, #tpu.memory_space<vmem>>, vector<1x8x32xf32>
    %27 = vector.shape_cast %26 : vector<1x8x32xf32> to vector<8x32xf32>
    %28 = vector.shape_cast %1 : vector<8x32xf32> to vector<1x8x32xf32>
    %29 = vector.shape_cast %28 : vector<1x8x32xf32> to vector<1x8x32xf32>
    %30 = vector.broadcast %29 : vector<1x8x32xf32> to vector<4x8x32xf32>
    "tpu.trace_start"() <{level = 10 : i32, message = "hre,hed->hrd"}> : () -> ()
    %cst = arith.constant dense<0.000000e+00> : vector<4x8x8xf32>
    %31 = tpu.matmul %30, %13, %cst {dimension_numbers = #tpu.dot_dimension_numbers<[2], [1], [1], [2], [0, 0, 0, 1, 1, 2], [0], [0]>} : vector<4x8x32xf32>, vector<4x32x8xf32>, vector<4x8x8xf32> -> vector<4x8x8xf32>
    "tpu.trace_stop"() : () -> ()
    %32 = vector.broadcast %19 : vector<4x1x8xf32> to vector<4x8x8xf32>
    %33 = arith.addf %31, %32 : vector<4x8x8xf32>
    "tpu.trace_start"() <{level = 10 : i32, message = "hre,hed->hrd"}> : () -> ()
    %cst_37 = arith.constant dense<0.000000e+00> : vector<4x8x8xf32>
    %34 = tpu.matmul %6, %15, %cst_37 {dimension_numbers = #tpu.dot_dimension_numbers<[2], [1], [1], [2], [0, 0, 0, 1, 1, 2], [0], [0]>} : vector<4x8x32xf32>, vector<4x32x8xf32>, vector<4x8x8xf32> -> vector<4x8x8xf32>
    "tpu.trace_stop"() : () -> ()
    %35 = vector.broadcast %21 : vector<4x1x8xf32> to vector<4x8x8xf32>
    %36 = arith.addf %34, %35 : vector<4x8x8xf32>
    "tpu.trace_start"() <{level = 10 : i32, message = "hre,hed->hrd"}> : () -> ()
    %cst_38 = arith.constant dense<0.000000e+00> : vector<4x8x8xf32>
    %37 = tpu.matmul %6, %17, %cst_38 {dimension_numbers = #tpu.dot_dimension_numbers<[2], [1], [1], [2], [0, 0, 0, 1, 1, 2], [0], [0]>} : vector<4x8x32xf32>, vector<4x32x8xf32>, vector<4x8x8xf32> -> vector<4x8x8xf32>
    "tpu.trace_stop"() : () -> ()
    %38 = vector.broadcast %23 : vector<4x1x8xf32> to vector<4x8x8xf32>
    %39 = arith.addf %37, %38 : vector<4x8x8xf32>
    "tpu.trace_start"() <{level = 10 : i32, message = "gqd,gkd->gqk"}> : () -> ()
    %cst_39 = arith.constant dense<0.000000e+00> : vector<4x8x8xf32>
    %40 = tpu.matmul %33, %36, %cst_39 {dimension_numbers = #tpu.dot_dimension_numbers<[2], [2], [1], [1], [0, 0, 0, 1, 1, 1], [0], [0]>} : vector<4x8x8xf32>, vector<4x8x8xf32>, vector<4x8x8xf32> -> vector<4x8x8xf32>
    %cst_40 = arith.constant -1.000000e-10 : f32
    "tpu.trace_stop"() : () -> ()
    %41 = vector.broadcast %cst_40 : f32 to vector<4x8x8xf32>
    %42 = arith.select %11, %41, %40 : vector<4x8x8xi1>, vector<4x8x8xf32>
    %cst_41 = arith.constant 0.176776692 : f32
    %43 = vector.broadcast %cst_41 : f32 to vector<4x8x8xf32>
    %44 = arith.mulf %42, %43 : vector<4x8x8xf32>
    %cst_42 = arith.constant dense<0xFF800000> : vector<4x8xf32>
    %45 = vector.multi_reduction <maximumf>, %44, %cst_42 [2] : vector<4x8x8xf32> to vector<4x8xf32>
    %46 = vector.shape_cast %45 : vector<4x8xf32> to vector<4x8x1xf32>
    %47 = vector.broadcast %46 : vector<4x8x1xf32> to vector<4x8x8xf32>
    %48 = arith.subf %44, %47 : vector<4x8x8xf32>
    %49 = math.exp %48 : vector<4x8x8xf32>
    %cst_43 = arith.constant dense<0.000000e+00> : vector<4x8xf32>
    %50 = vector.multi_reduction <add>, %49, %cst_43 [2] : vector<4x8x8xf32> to vector<4x8xf32>
    %51 = vector.shape_cast %50 : vector<4x8xf32> to vector<4x8x1xf32>
    %52 = tpu.reciprocal %51 {approx = true} : vector<4x8x1xf32> -> vector<4x8x1xf32>
    %53 = vector.broadcast %52 : vector<4x8x1xf32> to vector<4x8x8xf32>
    %54 = arith.mulf %49, %53 : vector<4x8x8xf32>
    "tpu.trace_start"() <{level = 10 : i32, message = "gqk,gkd->gqd"}> : () -> ()
    %cst_44 = arith.constant dense<0.000000e+00> : vector<4x8x8xf32>
    %55 = tpu.matmul %54, %39, %cst_44 {dimension_numbers = #tpu.dot_dimension_numbers<[2], [1], [1], [2], [0, 0, 0, 1, 1, 2], [0], [0]>} : vector<4x8x8xf32>, vector<4x8x8xf32>, vector<4x8x8xf32> -> vector<4x8x8xf32>
    "tpu.trace_stop"() : () -> ()
    "tpu.trace_start"() <{level = 10 : i32, message = "hrd,hde->hre"}> : () -> ()
    %cst_45 = arith.constant dense<0.000000e+00> : vector<4x8x32xf32>
    %56 = tpu.matmul %55, %25, %cst_45 {dimension_numbers = #tpu.dot_dimension_numbers<[2], [1], [1], [2], [0, 0, 0, 1, 1, 2], [0], [0]>} : vector<4x8x8xf32>, vector<4x8x32xf32>, vector<4x8x32xf32> -> vector<4x8x32xf32>
    "tpu.trace_stop"() : () -> ()
    %cst_46 = arith.constant dense<0.000000e+00> : vector<8x32xf32>
    %57 = vector.multi_reduction <add>, %56, %cst_46 [0] : vector<4x8x32xf32> to vector<8x32xf32>
    %58 = vector.extract_strided_slice %27 {offsets = [0, 0], sizes = [1, 32], strides = [1, 1]} : vector<8x32xf32> to vector<1x32xf32>
    %59 = vector.broadcast %58 : vector<1x32xf32> to vector<8x32xf32>
    %60 = arith.addf %57, %59 : vector<8x32xf32>
    %61 = arith.addf %60, %1 : vector<8x32xf32>
    %cst_47 = arith.constant dense<0.000000e+00> : vector<8xf32>
    %62 = vector.multi_reduction <add>, %61, %cst_47 [1] : vector<8x32xf32> to vector<8xf32>
    %63 = vector.shape_cast %62 : vector<8xf32> to vector<8x1xf32>
    %cst_48 = arith.constant 3.200000e+01 : f32
    %64 = vector.broadcast %cst_48 : f32 to vector<8x1xf32>
    %65 = arith.divf %63, %64 : vector<8x1xf32>
    %66 = vector.broadcast %65 : vector<8x1xf32> to vector<8x32xf32>
    %67 = arith.subf %61, %66 : vector<8x32xf32>
    %68 = arith.mulf %67, %67 : vector<8x32xf32>
    %cst_49 = arith.constant dense<0.000000e+00> : vector<8xf32>
    %69 = vector.multi_reduction <add>, %68, %cst_49 [1] : vector<8x32xf32> to vector<8xf32>
    %70 = vector.shape_cast %69 : vector<8xf32> to vector<8x1xf32>
    %cst_50 = arith.constant 3.200000e+01 : f32
    %71 = vector.broadcast %cst_50 : f32 to vector<8x1xf32>
    %72 = arith.divf %70, %71 : vector<8x1xf32>
    %73 = vector.extract_strided_slice %27 {offsets = [1, 0], sizes = [1, 32], strides = [1, 1]} : vector<8x32xf32> to vector<1x32xf32>
    %74 = vector.broadcast %65 : vector<8x1xf32> to vector<8x32xf32>
    %75 = arith.subf %61, %74 : vector<8x32xf32>
    %cst_51 = arith.constant 9.99999974E-6 : f32
    %76 = vector.broadcast %cst_51 : f32 to vector<8x1xf32>
    %77 = arith.addf %72, %76 : vector<8x1xf32>
    %78 = math.rsqrt %77 : vector<8x1xf32>
    %79 = vector.broadcast %78 : vector<8x1xf32> to vector<8x32xf32>
    %80 = arith.mulf %75, %79 : vector<8x32xf32>
    %81 = vector.broadcast %73 : vector<1x32xf32> to vector<8x32xf32>
    %82 = arith.mulf %81, %80 : vector<8x32xf32>
    %83 = vector.extract_strided_slice %27 {offsets = [2, 0], sizes = [1, 32], strides = [1, 1]} : vector<8x32xf32> to vector<1x32xf32>
    %84 = vector.broadcast %83 : vector<1x32xf32> to vector<8x32xf32>
    %85 = arith.addf %82, %84 : vector<8x32xf32>
    %c3 = arith.constant 3 : index
    %c0_52 = arith.constant 0 : index
    %c0_53 = arith.constant 0 : index
    %c0_54 = arith.constant 0 : index
    %86 = vector.load %arg4[%c3, %c0_52, %c0_53, %c0_54] : memref<6x4x32x8xf32, #tpu.memory_space<vmem>>, vector<1x4x32x8xf32>
    %87 = vector.shape_cast %86 : vector<1x4x32x8xf32> to vector<4x32x8xf32>
    %c4 = arith.constant 4 : index
    %c0_55 = arith.constant 0 : index
    %c0_56 = arith.constant 0 : index
    %c0_57 = arith.constant 0 : index
    %88 = vector.load %arg4[%c4, %c0_55, %c0_56, %c0_57] : memref<6x4x32x8xf32, #tpu.memory_space<vmem>>, vector<1x4x32x8xf32>
    %89 = vector.shape_cast %88 : vector<1x4x32x8xf32> to vector<4x32x8xf32>
    %c5 = arith.constant 5 : index
    %c0_58 = arith.constant 0 : index
    %c0_59 = arith.constant 0 : index
    %c0_60 = arith.constant 0 : index
    %90 = vector.load %arg4[%c5, %c0_58, %c0_59, %c0_60] : memref<6x4x32x8xf32, #tpu.memory_space<vmem>>, vector<1x4x32x8xf32>
    %91 = vector.shape_cast %90 : vector<1x4x32x8xf32> to vector<4x32x8xf32>
    %c3_61 = arith.constant 3 : index
    %c0_62 = arith.constant 0 : index
    %c0_63 = arith.constant 0 : index
    %c0_64 = arith.constant 0 : index
    %92 = vector.load %arg6[%c3_61, %c0_62, %c0_63, %c0_64] : memref<6x4x1x8xf32, #tpu.memory_space<vmem>>, vector<1x4x1x8xf32>
    %93 = vector.shape_cast %92 : vector<1x4x1x8xf32> to vector<4x1x8xf32>
    %c4_65 = arith.constant 4 : index
    %c0_66 = arith.constant 0 : index
    %c0_67 = arith.constant 0 : index
    %c0_68 = arith.constant 0 : index
    %94 = vector.load %arg6[%c4_65, %c0_66, %c0_67, %c0_68] : memref<6x4x1x8xf32, #tpu.memory_space<vmem>>, vector<1x4x1x8xf32>
    %95 = vector.shape_cast %94 : vector<1x4x1x8xf32> to vector<4x1x8xf32>
    %c5_69 = arith.constant 5 : index
    %c0_70 = arith.constant 0 : index
    %c0_71 = arith.constant 0 : index
    %c0_72 = arith.constant 0 : index
    %96 = vector.load %arg6[%c5_69, %c0_70, %c0_71, %c0_72] : memref<6x4x1x8xf32, #tpu.memory_space<vmem>>, vector<1x4x1x8xf32>
    %97 = vector.shape_cast %96 : vector<1x4x1x8xf32> to vector<4x1x8xf32>
    %c1_73 = arith.constant 1 : index
    %c0_74 = arith.constant 0 : index
    %c0_75 = arith.constant 0 : index
    %c0_76 = arith.constant 0 : index
    %98 = vector.load %arg5[%c1_73, %c0_74, %c0_75, %c0_76] : memref<2x4x8x32xf32, #tpu.memory_space<vmem>>, vector<1x4x8x32xf32>
    %99 = vector.shape_cast %98 : vector<1x4x8x32xf32> to vector<4x8x32xf32>
    %c1_77 = arith.constant 1 : index
    %c0_78 = arith.constant 0 : index
    %c0_79 = arith.constant 0 : index
    %100 = vector.load %arg7[%c1_77, %c0_78, %c0_79] : memref<2x8x32xf32, #tpu.memory_space<vmem>>, vector<1x8x32xf32>
    %101 = vector.shape_cast %100 : vector<1x8x32xf32> to vector<8x32xf32>
    %102 = vector.shape_cast %85 : vector<8x32xf32> to vector<1x8x32xf32>
    %103 = vector.shape_cast %102 : vector<1x8x32xf32> to vector<1x8x32xf32>
    %104 = vector.broadcast %103 : vector<1x8x32xf32> to vector<4x8x32xf32>
    "tpu.trace_start"() <{level = 10 : i32, message = "hre,hed->hrd"}> : () -> ()
    %cst_80 = arith.constant dense<0.000000e+00> : vector<4x8x8xf32>
    %105 = tpu.matmul %104, %87, %cst_80 {dimension_numbers = #tpu.dot_dimension_numbers<[2], [1], [1], [2], [0, 0, 0, 1, 1, 2], [0], [0]>} : vector<4x8x32xf32>, vector<4x32x8xf32>, vector<4x8x8xf32> -> vector<4x8x8xf32>
    "tpu.trace_stop"() : () -> ()
    %106 = vector.broadcast %93 : vector<4x1x8xf32> to vector<4x8x8xf32>
    %107 = arith.addf %105, %106 : vector<4x8x8xf32>
    "tpu.trace_start"() <{level = 10 : i32, message = "hre,hed->hrd"}> : () -> ()
    %cst_81 = arith.constant dense<0.000000e+00> : vector<4x8x8xf32>
    %108 = tpu.matmul %6, %89, %cst_81 {dimension_numbers = #tpu.dot_dimension_numbers<[2], [1], [1], [2], [0, 0, 0, 1, 1, 2], [0], [0]>} : vector<4x8x32xf32>, vector<4x32x8xf32>, vector<4x8x8xf32> -> vector<4x8x8xf32>
    "tpu.trace_stop"() : () -> ()
    %109 = vector.broadcast %95 : vector<4x1x8xf32> to vector<4x8x8xf32>
    %110 = arith.addf %108, %109 : vector<4x8x8xf32>
    "tpu.trace_start"() <{level = 10 : i32, message = "hre,hed->hrd"}> : () -> ()
    %cst_82 = arith.constant dense<0.000000e+00> : vector<4x8x8xf32>
    %111 = tpu.matmul %6, %91, %cst_82 {dimension_numbers = #tpu.dot_dimension_numbers<[2], [1], [1], [2], [0, 0, 0, 1, 1, 2], [0], [0]>} : vector<4x8x32xf32>, vector<4x32x8xf32>, vector<4x8x8xf32> -> vector<4x8x8xf32>
    "tpu.trace_stop"() : () -> ()
    %112 = vector.broadcast %97 : vector<4x1x8xf32> to vector<4x8x8xf32>
    %113 = arith.addf %111, %112 : vector<4x8x8xf32>
    "tpu.trace_start"() <{level = 10 : i32, message = "gqd,gkd->gqk"}> : () -> ()
    %cst_83 = arith.constant dense<0.000000e+00> : vector<4x8x8xf32>
    %114 = tpu.matmul %107, %110, %cst_83 {dimension_numbers = #tpu.dot_dimension_numbers<[2], [2], [1], [1], [0, 0, 0, 1, 1, 1], [0], [0]>} : vector<4x8x8xf32>, vector<4x8x8xf32>, vector<4x8x8xf32> -> vector<4x8x8xf32>
    %cst_84 = arith.constant -1.000000e-10 : f32
    "tpu.trace_stop"() : () -> ()
    %115 = vector.broadcast %cst_84 : f32 to vector<4x8x8xf32>
    %116 = arith.select %11, %115, %114 : vector<4x8x8xi1>, vector<4x8x8xf32>
    %cst_85 = arith.constant 0.176776692 : f32
    %117 = vector.broadcast %cst_85 : f32 to vector<4x8x8xf32>
    %118 = arith.mulf %116, %117 : vector<4x8x8xf32>
    %cst_86 = arith.constant dense<0xFF800000> : vector<4x8xf32>
    %119 = vector.multi_reduction <maximumf>, %118, %cst_86 [2] : vector<4x8x8xf32> to vector<4x8xf32>
    %120 = vector.shape_cast %119 : vector<4x8xf32> to vector<4x8x1xf32>
    %121 = vector.broadcast %120 : vector<4x8x1xf32> to vector<4x8x8xf32>
    %122 = arith.subf %118, %121 : vector<4x8x8xf32>
    %123 = math.exp %122 : vector<4x8x8xf32>
    %cst_87 = arith.constant dense<0.000000e+00> : vector<4x8xf32>
    %124 = vector.multi_reduction <add>, %123, %cst_87 [2] : vector<4x8x8xf32> to vector<4x8xf32>
    %125 = vector.shape_cast %124 : vector<4x8xf32> to vector<4x8x1xf32>
    %126 = tpu.reciprocal %125 {approx = true} : vector<4x8x1xf32> -> vector<4x8x1xf32>
    %127 = vector.broadcast %126 : vector<4x8x1xf32> to vector<4x8x8xf32>
    %128 = arith.mulf %123, %127 : vector<4x8x8xf32>
    "tpu.trace_start"() <{level = 10 : i32, message = "gqk,gkd->gqd"}> : () -> ()
    %cst_88 = arith.constant dense<0.000000e+00> : vector<4x8x8xf32>
    %129 = tpu.matmul %128, %113, %cst_88 {dimension_numbers = #tpu.dot_dimension_numbers<[2], [1], [1], [2], [0, 0, 0, 1, 1, 2], [0], [0]>} : vector<4x8x8xf32>, vector<4x8x8xf32>, vector<4x8x8xf32> -> vector<4x8x8xf32>
    "tpu.trace_stop"() : () -> ()
    "tpu.trace_start"() <{level = 10 : i32, message = "hrd,hde->hre"}> : () -> ()
    %cst_89 = arith.constant dense<0.000000e+00> : vector<4x8x32xf32>
    %130 = tpu.matmul %129, %99, %cst_89 {dimension_numbers = #tpu.dot_dimension_numbers<[2], [1], [1], [2], [0, 0, 0, 1, 1, 2], [0], [0]>} : vector<4x8x8xf32>, vector<4x8x32xf32>, vector<4x8x32xf32> -> vector<4x8x32xf32>
    "tpu.trace_stop"() : () -> ()
    %cst_90 = arith.constant dense<0.000000e+00> : vector<8x32xf32>
    %131 = vector.multi_reduction <add>, %130, %cst_90 [0] : vector<4x8x32xf32> to vector<8x32xf32>
    %132 = vector.extract_strided_slice %101 {offsets = [0, 0], sizes = [1, 32], strides = [1, 1]} : vector<8x32xf32> to vector<1x32xf32>
    %133 = vector.broadcast %132 : vector<1x32xf32> to vector<8x32xf32>
    %134 = arith.addf %131, %133 : vector<8x32xf32>
    %135 = arith.addf %134, %85 : vector<8x32xf32>
    %cst_91 = arith.constant dense<0.000000e+00> : vector<8xf32>
    %136 = vector.multi_reduction <add>, %135, %cst_91 [1] : vector<8x32xf32> to vector<8xf32>
    %137 = vector.shape_cast %136 : vector<8xf32> to vector<8x1xf32>
    %cst_92 = arith.constant 3.200000e+01 : f32
    %138 = vector.broadcast %cst_92 : f32 to vector<8x1xf32>
    %139 = arith.divf %137, %138 : vector<8x1xf32>
    %140 = vector.broadcast %139 : vector<8x1xf32> to vector<8x32xf32>
    %141 = arith.subf %135, %140 : vector<8x32xf32>
    %142 = arith.mulf %141, %141 : vector<8x32xf32>
    %cst_93 = arith.constant dense<0.000000e+00> : vector<8xf32>
    %143 = vector.multi_reduction <add>, %142, %cst_93 [1] : vector<8x32xf32> to vector<8xf32>
    %144 = vector.shape_cast %143 : vector<8xf32> to vector<8x1xf32>
    %cst_94 = arith.constant 3.200000e+01 : f32
    %145 = vector.broadcast %cst_94 : f32 to vector<8x1xf32>
    %146 = arith.divf %144, %145 : vector<8x1xf32>
    %147 = vector.extract_strided_slice %101 {offsets = [1, 0], sizes = [1, 32], strides = [1, 1]} : vector<8x32xf32> to vector<1x32xf32>
    %148 = vector.broadcast %139 : vector<8x1xf32> to vector<8x32xf32>
    %149 = arith.subf %135, %148 : vector<8x32xf32>
    %cst_95 = arith.constant 9.99999974E-6 : f32
    %150 = vector.broadcast %cst_95 : f32 to vector<8x1xf32>
    %151 = arith.addf %146, %150 : vector<8x1xf32>
    %152 = math.rsqrt %151 : vector<8x1xf32>
    %153 = vector.broadcast %152 : vector<8x1xf32> to vector<8x32xf32>
    %154 = arith.mulf %149, %153 : vector<8x32xf32>
    %155 = vector.broadcast %147 : vector<1x32xf32> to vector<8x32xf32>
    %156 = arith.mulf %155, %154 : vector<8x32xf32>
    %157 = vector.extract_strided_slice %101 {offsets = [2, 0], sizes = [1, 32], strides = [1, 1]} : vector<8x32xf32> to vector<1x32xf32>
    %158 = vector.broadcast %157 : vector<1x32xf32> to vector<8x32xf32>
    %159 = arith.addf %156, %158 : vector<8x32xf32>
    %160 = vector.shape_cast %159 : vector<8x32xf32> to vector<1x8x32xf32>
    %c0_96 = arith.constant 0 : index
    %c0_97 = arith.constant 0 : index
    %c0_98 = arith.constant 0 : index
    %161 = vector.load %arg8[%c0_96, %c0_97, %c0_98] : memref<1x8x32xf32, #tpu.memory_space<vmem>>, vector<1x8x32xf32>
    tpu.vector_store %arg8[%c0_96, %c0_97, %c0_98], %160 {strides = array<i32>} : memref<1x8x32xf32, #tpu.memory_space<vmem>>, vector<1x8x32xf32>,
    return
  }
  func.func @transform_0(%arg0: i32) -> (i32, i32, i32) {
    %c0_i32 = arith.constant 0 : i32
    %c0_i32_0 = arith.constant 0 : i32
    %c0_i32_1 = arith.constant 0 : i32
    return %arg0, %c0_i32, %c0_i32_0 : i32, i32, i32
  }
  func.func @transform_1(%arg0: i32) -> (i32, i32, i32) {
    %c0_i32 = arith.constant 0 : i32
    %c0_i32_0 = arith.constant 0 : i32
    %c0_i32_1 = arith.constant 0 : i32
    return %arg0, %c0_i32, %c0_i32_0 : i32, i32, i32
  }
  func.func @transform_2(%arg0: i32) -> (i32, i32, i32) {
    %c0_i32 = arith.constant 0 : i32
    %c0_i32_0 = arith.constant 0 : i32
    %c0_i32_1 = arith.constant 0 : i32
    return %arg0, %c0_i32, %c0_i32_0 : i32, i32, i32
  }
  func.func @transform_3(%arg0: i32) -> (i32, i32, i32, i32) {
    %c0_i32 = arith.constant 0 : i32
    %c0_i32_0 = arith.constant 0 : i32
    %c0_i32_1 = arith.constant 0 : i32
    %c0_i32_2 = arith.constant 0 : i32
    %c0_i32_3 = arith.constant 0 : i32
    return %c0_i32, %c0_i32_0, %c0_i32_1, %c0_i32_2 : i32, i32, i32, i32
  }
  func.func @transform_4(%arg0: i32) -> (i32, i32, i32, i32) {
    %c0_i32 = arith.constant 0 : i32
    %c0_i32_0 = arith.constant 0 : i32
    %c0_i32_1 = arith.constant 0 : i32
    %c0_i32_2 = arith.constant 0 : i32
    %c0_i32_3 = arith.constant 0 : i32
    return %c0_i32, %c0_i32_0, %c0_i32_1, %c0_i32_2 : i32, i32, i32, i32
  }
  func.func @transform_5(%arg0: i32) -> (i32, i32, i32, i32) {
    %c0_i32 = arith.constant 0 : i32
    %c0_i32_0 = arith.constant 0 : i32
    %c0_i32_1 = arith.constant 0 : i32
    %c0_i32_2 = arith.constant 0 : i32
    %c0_i32_3 = arith.constant 0 : i32
    return %c0_i32, %c0_i32_0, %c0_i32_1, %c0_i32_2 : i32, i32, i32, i32
  }
  func.func @transform_6(%arg0: i32) -> (i32, i32, i32) {
    %c0_i32 = arith.constant 0 : i32
    %c0_i32_0 = arith.constant 0 : i32
    %c0_i32_1 = arith.constant 0 : i32
    %c0_i32_2 = arith.constant 0 : i32
    return %c0_i32, %c0_i32_0, %c0_i32_1 : i32, i32, i32
  }
  func.func @transform_7(%arg0: i32) -> (i32, i32, i32) {
    %c0_i32 = arith.constant 0 : i32
    %c0_i32_0 = arith.constant 0 : i32
    %c0_i32_1 = arith.constant 0 : i32
    return %arg0, %c0_i32, %c0_i32_0 : i32, i32, i32
  }
}

</mosaic_0001>

<llo_original>
// kernel: tpu_custom_call.1
$region0: #{tpu_custom_call.1}
  #allocation0 [shape = 'u32[]', space=smem, size = 0x4, offset = 0x4, fixed_abs, tag = 'smem constant byte address 0x4 - core index']
  #allocation1 [shape = 'u32[144,128]{1,0:T(1,128)}', space=vmem, size = 0x12000, scoped, tag = 'internal scratch']
  %s0 = inlined_call_operand.vmem [shape: f32[2,8,32], index: 0, kind: input, shape index: {}]
  %s1 = inlined_call_operand.vmem [shape: f32[2,8,32], index: 1, kind: input, shape index: {}]
  %s2 = inlined_call_operand.vmem [shape: s32[2,8,8], index: 2, kind: input, shape index: {}]
  %s3 = inlined_call_operand.vmem [shape: f32[6,4,32,8], index: 3, kind: input, shape index: {}]
  %s4 = inlined_call_operand.vmem [shape: f32[2,4,8,32], index: 4, kind: input, shape index: {}]
  %s5 = inlined_call_operand.vmem [shape: f32[6,4,1,8], index: 5, kind: input, shape index: {}]
  %s6 = inlined_call_operand.vmem [shape: f32[2,8,32], index: 6, kind: input, shape index: {}]
  %s7 = inlined_call_operand.hbm [shape: f32[2,8,32], index: 7, kind: output, shape index: {}]
  %s8 = sld [smem:[#allocation0]]
  $region61: #{tpu_custom_call.1} parent=0
    _
  %s10 = ssub.s32 1, %s8
  %s11 = scalar_select 0, %s10, %s8
  $region1: #{tpu_custom_call.1} parent=0
    #allocation2 [shape = 'u8[8192]{0}', space=vmem, size = 0x2000, scoped, tag = 'output window, operand 0']
    #allocation3 [shape = 's32[2]{0}', space=sflag, size = 0x8, scoped, tag = 'scoped memory for tpu_custom_call.1']
    %12 = vsyncpa [#allocation3], 0
    %s13 = scalar_lea.sflag [#allocation3], 1
    %14 = vsyncpa %s13, 0
    loop: start=0, step=1, limit=4
    $region2: #{tpu_custom_call.1} parent=1 // loop_pre_header
      _
    $region3: #{tpu_custom_call.1} parent=1 // loop_header
      %s16 = sphi 0, %s20
      %p17 = scmp.ge.s32.totalorder %s16, 4
      %s26 = sphi 0, %s28
      %s29 = sphi 0, %s26
      %s30 = sphi 0, %s29
      %s46 = sphi 0, %s30
      %s52 = sphi 0, %s54
      %s55 = sphi 0, %s52
      %s56 = sphi 0, %s55
      %s72 = sphi 0, %s56
      %s78 = sphi 0, %s80
      %s81 = sphi 0, %s78
      %s82 = sphi 0, %s81
      %s98 = sphi 0, %s82
      %s102 = sphi 0, %s102
      %s104 = sphi 0, %s102
      %s105 = sphi 0, %s104
      %s119 = sphi 0, %s105
      %s123 = sphi 0, %s123
      %s125 = sphi 0, %s123
      %s126 = sphi 0, %s125
      %s140 = sphi 0, %s126
      %s144 = sphi 0, %s144
      %s146 = sphi 0, %s144
      %s147 = sphi 0, %s146
      %s161 = sphi 0, %s147
      %s165 = sphi 0, %s165
      %s167 = sphi 0, %s165
      %s168 = sphi 0, %s167
      %s182 = sphi 0, %s168
      %s188 = sphi 0, %s190
      %s191 = sphi 0, %s188
      %s192 = sphi 0, %s191
      %s208 = sphi 0, %s192
    $region4: #{tpu_custom_call.1} parent=1 // loop_header_branch
      %19 = sbr.rel (%p17) target = $region8
    $region5: #{tpu_custom_call.1} parent=1 // loop_body
      %s21 = ssub.s32 %s16, 1
      %s22 = ssub.s32 %s16, 2
      %s23 = sadd.s32 %s16, 1
      %s24 = ssub.s32 %s16, %s23
      %p25 = scmp.eq.s32.totalorder %s24, 0
      %s27 = sadd.s32 %s26, 1
      %s28 = scalar_select %p25, %s26, %s27
      %p31 = pneg %p25
      %p32 = scmp.eq.s32.totalorder %s16, 1
      %p33 = por %p31, %p32
      %p34 = scmp.ne.s32.totalorder %s26, %s29
      %p35 = scmp.eq.s32.totalorder %s16, 0
      %p36 = por %p34, %p35
      %p37 = scmp.ne.s32.totalorder %s26, %s29
      %p38 = scmp.eq.s32.totalorder %s21, 1
      %p39 = por %p37, %p38
      %p40 = scmp.ne.s32.totalorder %s29, %s30
      %p41 = scmp.eq.s32.totalorder %s21, 0
      %p42 = por %p40, %p41
      %p43 = scmp.ne.s32.totalorder %s29, %s30
      %p44 = scmp.eq.s32.totalorder %s22, 1
      %p45 = por %p43, %p44
      %p47 = scmp.ne.s32.totalorder %s30, %s46
      %p48 = scmp.eq.s32.totalorder %s22, 0
      %p49 = por %p47, %p48
      %s50 = ssub.s32 %s16, %s23
      %p51 = scmp.eq.s32.totalorder %s50, 0
      %s53 = sadd.s32 %s52, 1
      %s54 = scalar_select %p51, %s52, %s53
      %p57 = pneg %p51
      %p58 = scmp.eq.s32.totalorder %s16, 1
      %p59 = por %p57, %p58
      %p60 = scmp.ne.s32.totalorder %s52, %s55
      %p61 = scmp.eq.s32.totalorder %s16, 0
      %p62 = por %p60, %p61
      %p63 = scmp.ne.s32.totalorder %s52, %s55
      %p64 = scmp.eq.s32.totalorder %s21, 1
      %p65 = por %p63, %p64
      %p66 = scmp.ne.s32.totalorder %s55, %s56
      %p67 = scmp.eq.s32.totalorder %s21, 0
      %p68 = por %p66, %p67
      %p69 = scmp.ne.s32.totalorder %s55, %s56
      %p70 = scmp.eq.s32.totalorder %s22, 1
      %p71 = por %p69, %p70
      %p73 = scmp.ne.s32.totalorder %s56, %s72
      %p74 = scmp.eq.s32.totalorder %s22, 0
      %p75 = por %p73, %p74
      %s76 = ssub.s32 %s16, %s23
      %p77 = scmp.eq.s32.totalorder %s76, 0
      %s79 = sadd.s32 %s78, 1
      %s80 = scalar_select %p77, %s78, %s79
      %p83 = pneg %p77
      %p84 = scmp.eq.s32.totalorder %s16, 1
      %p85 = por %p83, %p84
      %p86 = scmp.ne.s32.totalorder %s78, %s81
      %p87 = scmp.eq.s32.totalorder %s16, 0
      %p88 = por %p86, %p87
      %p89 = scmp.ne.s32.totalorder %s78, %s81
      %p90 = scmp.eq.s32.totalorder %s21, 1
      %p91 = por %p89, %p90
      %p92 = scmp.ne.s32.totalorder %s81, %s82
      %p93 = scmp.eq.s32.totalorder %s21, 0
      %p94 = por %p92, %p93
      %p95 = scmp.ne.s32.totalorder %s81, %s82
      %p96 = scmp.eq.s32.totalorder %s22, 1
      %p97 = por %p95, %p96
      %p99 = scmp.ne.s32.totalorder %s82, %s98
      %p100 = scmp.eq.s32.totalorder %s22, 0
      %p101 = por %p99, %p100
      %s103 = sadd.s32 %s102, 1
      %p106 = scmp.eq.s32.totalorder %s16, 1
      %p107 = scmp.ne.s32.totalorder %s102, %s104
      %p108 = scmp.eq.s32.totalorder %s16, 0
      %p109 = por %p107, %p108
      %p110 = scmp.ne.s32.totalorder %s102, %s104
      %p111 = scmp.eq.s32.totalorder %s21, 1
      %p112 = por %p110, %p111
      %p113 = scmp.ne.s32.totalorder %s104, %s105
      %p114 = scmp.eq.s32.totalorder %s21, 0
      %p115 = por %p113, %p114
      %p116 = scmp.ne.s32.totalorder %s104, %s105
      %p117 = scmp.eq.s32.totalorder %s22, 1
      %p118 = por %p116, %p117
      %p120 = scmp.ne.s32.totalorder %s105, %s119
      %p121 = scmp.eq.s32.totalorder %s22, 0
      %p122 = por %p120, %p121
      %s124 = sadd.s32 %s123, 1
      %p127 = scmp.eq.s32.totalorder %s16, 1
      %p128 = scmp.ne.s32.totalorder %s123, %s125
      %p129 = scmp.eq.s32.totalorder %s16, 0
      %p130 = por %p128, %p129
      %p131 = scmp.ne.s32.totalorder %s123, %s125
      %p132 = scmp.eq.s32.totalorder %s21, 1
      %p133 = por %p131, %p132
      %p134 = scmp.ne.s32.totalorder %s125, %s126
      %p135 = scmp.eq.s32.totalorder %s21, 0
      %p136 = por %p134, %p135
      %p137 = scmp.ne.s32.totalorder %s125, %s126
      %p138 = scmp.eq.s32.totalorder %s22, 1
      %p139 = por %p137, %p138
      %p141 = scmp.ne.s32.totalorder %s126, %s140
      %p142 = scmp.eq.s32.totalorder %s22, 0
      %p143 = por %p141, %p142
      %s145 = sadd.s32 %s144, 1
      %p148 = scmp.eq.s32.totalorder %s16, 1
      %p149 = scmp.ne.s32.totalorder %s144, %s146
      %p150 = scmp.eq.s32.totalorder %s16, 0
      %p151 = por %p149, %p150
      %p152 = scmp.ne.s32.totalorder %s144, %s146
      %p153 = scmp.eq.s32.totalorder %s21, 1
      %p154 = por %p152, %p153
      %p155 = scmp.ne.s32.totalorder %s146, %s147
      %p156 = scmp.eq.s32.totalorder %s21, 0
      %p157 = por %p155, %p156
      %p158 = scmp.ne.s32.totalorder %s146, %s147
      %p159 = scmp.eq.s32.totalorder %s22, 1
      %p160 = por %p158, %p159
      %p162 = scmp.ne.s32.totalorder %s147, %s161
      %p163 = scmp.eq.s32.totalorder %s22, 0
      %p164 = por %p162, %p163
      %s166 = sadd.s32 %s165, 1
      %p169 = scmp.eq.s32.totalorder %s16, 1
      %p170 = scmp.ne.s32.totalorder %s165, %s167
      %p171 = scmp.eq.s32.totalorder %s16, 0
      %p172 = por %p170, %p171
      %p173 = scmp.ne.s32.totalorder %s165, %s167
      %p174 = scmp.eq.s32.totalorder %s21, 1
      %p175 = por %p173, %p174
      %p176 = scmp.ne.s32.totalorder %s167, %s168
      %p177 = scmp.eq.s32.totalorder %s21, 0
      %p178 = por %p176, %p177
      %p179 = scmp.ne.s32.totalorder %s167, %s168
      %p180 = scmp.eq.s32.totalorder %s22, 1
      %p181 = por %p179, %p180
      %p183 = scmp.ne.s32.totalorder %s168, %s182
      %p184 = scmp.eq.s32.totalorder %s22, 0
      %p185 = por %p183, %p184
      %s186 = ssub.s32 %s16, %s23
      %p187 = scmp.eq.s32.totalorder %s186, 0
      %s189 = sadd.s32 %s188, 1
      %s190 = scalar_select %p187, %s188, %s189
      %p193 = pneg %p187
      %p194 = scmp.eq.s32.totalorder %s16, 1
      %p195 = por %p193, %p194
      %p196 = scmp.ne.s32.totalorder %s188, %s191
      %p197 = scmp.eq.s32.totalorder %s16, 0
      %p198 = por %p196, %p197
      %p199 = scmp.ne.s32.totalorder %s188, %s191
      %p200 = scmp.eq.s32.totalorder %s21, 1
      %p201 = por %p199, %p200
      %p202 = scmp.ne.s32.totalorder %s191, %s192
      %p203 = scmp.eq.s32.totalorder %s21, 0
      %p204 = por %p202, %p203
      %p205 = scmp.ne.s32.totalorder %s191, %s192
      %p206 = scmp.eq.s32.totalorder %s22, 1
      %p207 = por %p205, %p206
      %p209 = scmp.ne.s32.totalorder %s192, %s208
      %p210 = scmp.eq.s32.totalorder %s22, 0
      %p211 = por %p209, %p210
      %p212 = scmp.le.s32.totalorder 1, %s16
      %p213 = scmp.lt.s32.totalorder %s16, 3
      %p214 = pnand %p212, %p213
      %p215 = pneg %p214
      // Predicated region
      $region9: #{tpu_custom_call.1} parent=5 // pred_check
        _
      $region10: #{tpu_custom_call.1} parent=5 // pred_check_branch
        %217 = sbr.rel (%p214) target = $region12
      $region11: #{tpu_custom_call.1} parent=5 // pred_region
        %s218 = ssub.s32 %s16, 1
        // Predicated region
        $region13: #{tpu_custom_call.1} parent=11 // pred_check
          %p219 = pneg %p115
        $region14: #{tpu_custom_call.1} parent=11 // pred_check_branch
          %221 = sbr.rel (%p219) target = $region16
        $region15: #{tpu_custom_call.1} parent=11 // pred_region
          _
        $region16: #{tpu_custom_call.1} parent=11 // pred_fallthru
          _
        // Predicated region
        $region17: #{tpu_custom_call.1} parent=11 // pred_check
          %p222 = pneg %p136
        $region18: #{tpu_custom_call.1} parent=11 // pred_check_branch
          %224 = sbr.rel (%p222) target = $region20
        $region19: #{tpu_custom_call.1} parent=11 // pred_region
          _
        $region20: #{tpu_custom_call.1} parent=11 // pred_fallthru
          _
        // Predicated region
        $region21: #{tpu_custom_call.1} parent=11 // pred_check
          %p225 = pneg %p157
        $region22: #{tpu_custom_call.1} parent=11 // pred_check_branch
          %227 = sbr.rel (%p225) target = $region24
        $region23: #{tpu_custom_call.1} parent=11 // pred_region
          _
        $region24: #{tpu_custom_call.1} parent=11 // pred_fallthru
          _
        // Predicated region
        $region25: #{tpu_custom_call.1} parent=11 // pred_check
          %p228 = pneg %p178
        $region26: #{tpu_custom_call.1} parent=11 // pred_check_branch
          %230 = sbr.rel (%p228) target = $region28
        $region27: #{tpu_custom_call.1} parent=11 // pred_region
          _
        $region28: #{tpu_custom_call.1} parent=11 // pred_fallthru
          _
      $region12: #{tpu_custom_call.1} parent=5 // pred_fallthru
        _
      %p231 = scmp.lt.s32.totalorder %s16, 2
      // Predicated region
      $region29: #{tpu_custom_call.1} parent=5 // pred_check
        %p232 = pneg %p231
      $region30: #{tpu_custom_call.1} parent=5 // pred_check_branch
        %234 = sbr.rel (%p232) target = $region32
      $region31: #{tpu_custom_call.1} parent=5 // pred_region
        // Predicated region
        $region33: #{tpu_custom_call.1} parent=31 // pred_check
          %p235 = pneg %p36
        $region34: #{tpu_custom_call.1} parent=31 // pred_check_branch
          %237 = sbr.rel (%p235) target = $region36
        $region35: #{tpu_custom_call.1} parent=31 // pred_region
          %p238 = scmp.lt.s32.totalorder %s16, 1
          %s239 = scalar_select %p238, %s16, 1
          %s240 = smul.addr %s239, 8
          %s241 = scalar_lea.vmem %s0, %s240
        $region36: #{tpu_custom_call.1} parent=31 // pred_fallthru
          _
        // Predicated region
        $region37: #{tpu_custom_call.1} parent=31 // pred_check
          %p242 = pneg %p62
        $region38: #{tpu_custom_call.1} parent=31 // pred_check_branch
          %244 = sbr.rel (%p242) target = $region40
        $region39: #{tpu_custom_call.1} parent=31 // pred_region
          %p245 = scmp.lt.s32.totalorder %s16, 1
          %s246 = scalar_select %p245, %s16, 1
          %s247 = smul.addr %s246, 8
          %s248 = scalar_lea.vmem %s1, %s247
        $region40: #{tpu_custom_call.1} parent=31 // pred_fallthru
          _
        // Predicated region
        $region41: #{tpu_custom_call.1} parent=31 // pred_check
          %p249 = pneg %p88
        $region42: #{tpu_custom_call.1} parent=31 // pred_check_branch
          %251 = sbr.rel (%p249) target = $region44
        $region43: #{tpu_custom_call.1} parent=31 // pred_region
          %p252 = scmp.lt.s32.totalorder %s16, 1
          %s253 = scalar_select %p252, %s16, 1
          %s254 = smul.addr %s253, 8
          %s255 = scalar_lea.vmem %s2, %s254
        $region44: #{tpu_custom_call.1} parent=31 // pred_fallthru
          _
      $region32: #{tpu_custom_call.1} parent=5 // pred_fallthru
        _
      %p256 = scmp.le.s32.totalorder 1, %s16
      %p257 = scmp.lt.s32.totalorder %s16, 3
      %p258 = pnand %p256, %p257
      %p259 = pneg %p258
      // Predicated region
      $region45: #{tpu_custom_call.1} parent=5 // pred_check
        _
      $region46: #{tpu_custom_call.1} parent=5 // pred_check_branch
        %261 = sbr.rel (%p258) target = $region48
      $region47: #{tpu_custom_call.1} parent=5 // pred_region
        %s262 = ssub.s32 %s16, 1
        %p263 = scmp.lt.s32.totalorder %s21, 1
        %s264 = scalar_select %p263, %s21, 1
        %s265 = smul.addr %s264, 8
        %s266 = scalar_lea.vmem %s0, %s265
        %p267 = pneg %p42
        %p268 = pneg %p39
        %p269 = scmp.lt.s32.totalorder %s21, 1
        %s270 = scalar_select %p269, %s21, 1
        %s271 = smul.addr %s270, 8
        %s272 = scalar_lea.vmem %s1, %s271
        %p273 = pneg %p68
        %p274 = pneg %p65
        %p275 = scmp.lt.s32.totalorder %s21, 1
        %s276 = scalar_select %p275, %s21, 1
        %s277 = smul.addr %s276, 8
        %s278 = scalar_lea.vmem %s2, %s277
        %p279 = pneg %p94
        %p280 = pneg %p91
        %p281 = pneg %p115
        %p282 = pneg %p112
        %p283 = pneg %p136
        %p284 = pneg %p133
        %p285 = pneg %p157
        %p286 = pneg %p154
        %p287 = pneg %p178
        %p288 = pneg %p175
        %p289 = pneg %p204
        %p290 = pneg %p201
        %s291 = sand.u32 %s191, 1
        %s292 = scalar_lea.sflag [#allocation3], %s291
        %s293 = sand.u32 %s191, 1
        %s294 = smul.addr %s293, 8
        %s295 = scalar_lea.vmem [#allocation2], %s294
        %p296 = scmp.lt.s32.totalorder %s21, 1
        %s297 = scalar_select %p296, %s21, 1
        %s298 = smul.addr %s297, 8
        %s299 = scalar_lea.vmem %s0, %s298
        %p300 = scmp.lt.s32.totalorder %s21, 1
        %s301 = scalar_select %p300, %s21, 1
        %s302 = smul.addr %s301, 8
        %s303 = scalar_lea.vmem %s1, %s302
        %p304 = scmp.lt.s32.totalorder %s21, 1
        %s305 = scalar_select %p304, %s21, 1
        %s306 = smul.addr %s305, 8
        %s307 = scalar_lea.vmem %s2, %s306
        %v308 = vld [vmem:[%s299] sm:$0xff]
        %v309 = vld [vmem:[%s303] sm:$0xff]
        %v310 = vld [vmem:[%s307] sm:$0xff]
        %vm311 = vcmp.eq.s32.totalorder %v310, 1
        %v312 = vld [vmem:[%s3] sm:$0xff]
        %v313 = vld [vmem:[%s3 + $0x8] sm:$0xff]
        %v314 = vld [vmem:[%s3 + $0x10] sm:$0xff]
        %v315 = vld [vmem:[%s3 + $0x18] sm:$0xff]
        %v316 = vld [vmem:[%s3 + $0x20] sm:$0xff]
        %v317 = vld [vmem:[%s3 + $0x28] sm:$0xff]
        %v318 = vld [vmem:[%s3 + $0x30] sm:$0xff]
        %v319 = vld [vmem:[%s3 + $0x38] sm:$0xff]
        %v320 = vld [vmem:[%s3 + $0x40] sm:$0xff]
        %v321 = vld [vmem:[%s3 + $0x48] sm:$0xff]
        %v322 = vld [vmem:[%s3 + $0x50] sm:$0xff]
        %v323 = vld [vmem:[%s3 + $0x58] sm:$0xff]
        %v324 = vld [vmem:[%s3 + $0x60] sm:$0xff]
        %v325 = vld [vmem:[%s3 + $0x68] sm:$0xff]
        %v326 = vld [vmem:[%s3 + $0x70] sm:$0xff]
        %v327 = vld [vmem:[%s3 + $0x78] sm:$0xff]
        %s328 = scalar_lea.vmem %s3, 128
        %v329 = vld [vmem:[%s328] sm:$0xff]
        %v330 = vld [vmem:[%s328 + $0x8] sm:$0xff]
        %v331 = vld [vmem:[%s328 + $0x10] sm:$0xff]
        %v332 = vld [vmem:[%s328 + $0x18] sm:$0xff]
        %v333 = vld [vmem:[%s328 + $0x20] sm:$0xff]
        %v334 = vld [vmem:[%s328 + $0x28] sm:$0xff]
        %v335 = vld [vmem:[%s328 + $0x30] sm:$0xff]
        %v336 = vld [vmem:[%s328 + $0x38] sm:$0xff]
        %v337 = vld [vmem:[%s328 + $0x40] sm:$0xff]
        %v338 = vld [vmem:[%s328 + $0x48] sm:$0xff]
        %v339 = vld [vmem:[%s328 + $0x50] sm:$0xff]
        %v340 = vld [vmem:[%s328 + $0x58] sm:$0xff]
        %v341 = vld [vmem:[%s328 + $0x60] sm:$0xff]
        %v342 = vld [vmem:[%s328 + $0x68] sm:$0xff]
        %v343 = vld [vmem:[%s328 + $0x70] sm:$0xff]
        %v344 = vld [vmem:[%s328 + $0x78] sm:$0xff]
        %s345 = scalar_lea.vmem %s3, 256
        %v346 = vld [vmem:[%s345] sm:$0xff]
        %v347 = vld [vmem:[%s345 + $0x8] sm:$0xff]
        %v348 = vld [vmem:[%s345 + $0x10] sm:$0xff]
        %v349 = vld [vmem:[%s345 + $0x18] sm:$0xff]
        %v350 = vld [vmem:[%s345 + $0x20] sm:$0xff]
        %v351 = vld [vmem:[%s345 + $0x28] sm:$0xff]
        %v352 = vld [vmem:[%s345 + $0x30] sm:$0xff]
        %v353 = vld [vmem:[%s345 + $0x38] sm:$0xff]
        %v354 = vld [vmem:[%s345 + $0x40] sm:$0xff]
        %v355 = vld [vmem:[%s345 + $0x48] sm:$0xff]
        %v356 = vld [vmem:[%s345 + $0x50] sm:$0xff]
        %v357 = vld [vmem:[%s345 + $0x58] sm:$0xff]
        %v358 = vld [vmem:[%s345 + $0x60] sm:$0xff]
        %v359 = vld [vmem:[%s345 + $0x68] sm:$0xff]
        %v360 = vld [vmem:[%s345 + $0x70] sm:$0xff]
        %v361 = vld [vmem:[%s345 + $0x78] sm:$0xff]
        %v362 = vld [vmem:[%s5] sm:$0x1]
        %v363 = vld [vmem:[%s5 + $0x1] sm:$0x1]
        %v364 = vld [vmem:[%s5 + $0x2] sm:$0x1]
        %v365 = vld [vmem:[%s5 + $0x3] sm:$0x1]
        %s366 = scalar_lea.vmem %s5, 4
        %v367 = vld [vmem:[%s366] sm:$0x1]
        %v368 = vld [vmem:[%s366 + $0x1] sm:$0x1]
        %v369 = vld [vmem:[%s366 + $0x2] sm:$0x1]
        %v370 = vld [vmem:[%s366 + $0x3] sm:$0x1]
        %s371 = scalar_lea.vmem %s5, 8
        %v372 = vld [vmem:[%s371] sm:$0x1]
        %v373 = vld [vmem:[%s371 + $0x1] sm:$0x1]
        %v374 = vld [vmem:[%s371 + $0x2] sm:$0x1]
        %v375 = vld [vmem:[%s371 + $0x3] sm:$0x1]
        %v376 = vld [vmem:[%s4] sm:$0xff]
        %v377 = vld [vmem:[%s4 + $0x8] sm:$0xff]
        %v378 = vld [vmem:[%s4 + $0x10] sm:$0xff]
        %v379 = vld [vmem:[%s4 + $0x18] sm:$0xff]
        %v380 = vld [vmem:[%s6] sm:$0xff]
        %v385 = vlaneseq
        %v386 = vshrl.u32 %v385, 7
        %v387 = vsub.s32 0, %v386
        %v388 = vrot.slane %v362, %v387
        %v389 = vlaneseq
        %v390 = vshrl.u32 %v389, 7
        %v391 = vsub.s32 0, %v390
        %v392 = vrot.slane %v363, %v391
        %v393 = vlaneseq
        %v394 = vshrl.u32 %v393, 7
        %v395 = vsub.s32 0, %v394
        %v396 = vrot.slane %v364, %v395
        %v397 = vlaneseq
        %v398 = vshrl.u32 %v397, 7
        %v399 = vsub.s32 0, %v398
        %v400 = vrot.slane %v365, %v399
        %vm405 = vcmask 261120
        %v407 = vsel %vm405, %v308, 0
        %409 = vmatprep.subr.mxu0 0.0
        %410 = vmatpush1.msra.mxu0 0.0
        %411 = vmatprep.subr.mxu0 0.0
        %412 = vmatpush1.msra.mxu0 0.0
        %413 = vmatprep.subr.mxu0 0.0
        %414 = vmatpush1.msra.mxu0 0.0
        %415 = vmatprep.subr.mxu0 0.0
        %416 = vmatpush1.msra.mxu0 0.0
        %417 = vmatprep.subr.mxu0 0.0
        %418 = vmatpush1.msra.mxu0 0.0
        %419 = vmatprep.subr.mxu0 0.0
        %420 = vmatpush1.msra.mxu0 0.0
        %421 = vmatprep.subr.mxu0 0.0
        %422 = vmatpush1.msra.mxu0 0.0
        %423 = vmatprep.subr.mxu0 0.0
        %424 = vmatpush1.msra.mxu0 0.0
        %425 = vmatprep.subr.mxu0 0.0
        %426 = vmatpush1.msra.mxu0 0.0
        %427 = vmatprep.subr.mxu0 0.0
        %428 = vmatpush1.msra.mxu0 0.0
        %429 = vmatprep.subr.mxu0 0.0
        %430 = vmatpush1.msra.mxu0 0.0
        %431 = vmatprep.subr.mxu0 0.0
        %432 = vmatpush1.msra.mxu0 0.0
        %433 = vmatprep.subr.mxu0 0.0
        %434 = vmatpush1.msra.mxu0 %v315
        %435 = vmatprep.subr.mxu0 0.0
        %436 = vmatpush1.msra.mxu0 %v314
        %437 = vmatprep.subr.mxu0 0.0
        %438 = vmatpush1.msra.mxu0 %v313
        %439 = vmatprep.subr.mxu0 0.0
        %440 = vmatpush1.msra.mxu0 %v312
        %441 = vmatprep.subr.mxu0 0.0
        %442 = vmatpush2.msra.mxu0 0.0
        %443 = vmatprep.subr.mxu0 0.0
        %444 = vmatpush2.msra.mxu0 0.0
        %445 = vmatprep.subr.mxu0 0.0
        %446 = vmatpush2.msra.mxu0 0.0
        %447 = vmatprep.subr.mxu0 0.0
        %448 = vmatpush2.msra.mxu0 0.0
        %449 = vmatprep.subr.mxu0 0.0
        %450 = vmatpush2.msra.mxu0 0.0
        %451 = vmatprep.subr.mxu0 0.0
        %452 = vmatpush2.msra.mxu0 0.0
        %453 = vmatprep.subr.mxu0 0.0
        %454 = vmatpush2.msra.mxu0 0.0
        %455 = vmatprep.subr.mxu0 0.0
        %456 = vmatpush2.msra.mxu0 0.0
        %457 = vmatprep.subr.mxu0 0.0
        %458 = vmatpush2.msra.mxu0 0.0
        %459 = vmatprep.subr.mxu0 0.0
        %460 = vmatpush2.msra.mxu0 0.0
        %461 = vmatprep.subr.mxu0 0.0
        %462 = vmatpush2.msra.mxu0 0.0
        %463 = vmatprep.subr.mxu0 0.0
        %464 = vmatpush2.msra.mxu0 0.0
        %465 = vmatprep.subr.mxu0 0.0
        %466 = vmatpush2.msra.mxu0 0.0
        %467 = vmatprep.subr.mxu0 0.0
        %468 = vmatpush2.msra.mxu0 0.0
        %469 = vmatprep.subr.mxu0 0.0
        %470 = vmatpush2.msra.mxu0 0.0
        %471 = vmatprep.subr.mxu0 0.0
        %472 = vmatpush2.msra.mxu0 0.0
        %473 = vmatprep.mubr.f32.mxu0 0.0
        %474 = vmatmul.mubr.f32.gmra.mxu0 %v407
        %v475 = vpop.f32.mrf.mxu0
        %v476 = vadd.f32 %v388, %v475
        %v477 = vpop.f32.mrf.mxu0
        %478 = vdwg.mxu0
        %479 = vmatprep.subr.mxu0 0.0
        %480 = vmatpush1.msra.mxu0 0.0
        %481 = vmatprep.subr.mxu0 0.0
        %482 = vmatpush1.msra.mxu0 0.0
        %483 = vmatprep.subr.mxu0 0.0
        %484 = vmatpush1.msra.mxu0 0.0
        %485 = vmatprep.subr.mxu0 0.0
        %486 = vmatpush1.msra.mxu0 0.0
        %487 = vmatprep.subr.mxu0 0.0
        %488 = vmatpush1.msra.mxu0 0.0
        %489 = vmatprep.subr.mxu0 0.0
        %490 = vmatpush1.msra.mxu0 0.0
        %491 = vmatprep.subr.mxu0 0.0
        %492 = vmatpush1.msra.mxu0 0.0
        %493 = vmatprep.subr.mxu0 0.0
        %494 = vmatpush1.msra.mxu0 0.0
        %495 = vmatprep.subr.mxu0 0.0
        %496 = vmatpush1.msra.mxu0 0.0
        %497 = vmatprep.subr.mxu0 0.0
        %498 = vmatpush1.msra.mxu0 0.0
        %499 = vmatprep.subr.mxu0 0.0
        %500 = vmatpush1.msra.mxu0 0.0
        %501 = vmatprep.subr.mxu0 0.0
        %502 = vmatpush1.msra.mxu0 0.0
        %503 = vmatprep.subr.mxu0 0.0
        %504 = vmatpush1.msra.mxu0 %v319
        %505 = vmatprep.subr.mxu0 0.0
        %506 = vmatpush1.msra.mxu0 %v318
        %507 = vmatprep.subr.mxu0 0.0
        %508 = vmatpush1.msra.mxu0 %v317
        %509 = vmatprep.subr.mxu0 0.0
        %510 = vmatpush1.msra.mxu0 %v316
        %511 = vmatprep.subr.mxu0 0.0
        %512 = vmatpush2.msra.mxu0 0.0
        %513 = vmatprep.subr.mxu0 0.0
        %514 = vmatpush2.msra.mxu0 0.0
        %515 = vmatprep.subr.mxu0 0.0
        %516 = vmatpush2.msra.mxu0 0.0
        %517 = vmatprep.subr.mxu0 0.0
        %518 = vmatpush2.msra.mxu0 0.0
        %519 = vmatprep.subr.mxu0 0.0
        %520 = vmatpush2.msra.mxu0 0.0
        %521 = vmatprep.subr.mxu0 0.0
        %522 = vmatpush2.msra.mxu0 0.0
        %523 = vmatprep.subr.mxu0 0.0
        %524 = vmatpush2.msra.mxu0 0.0
        %525 = vmatprep.subr.mxu0 0.0
        %526 = vmatpush2.msra.mxu0 0.0
        %527 = vmatprep.subr.mxu0 0.0
        %528 = vmatpush2.msra.mxu0 0.0
        %529 = vmatprep.subr.mxu0 0.0
        %530 = vmatpush2.msra.mxu0 0.0
        %531 = vmatprep.subr.mxu0 0.0
        %532 = vmatpush2.msra.mxu0 0.0
        %533 = vmatprep.subr.mxu0 0.0
        %534 = vmatpush2.msra.mxu0 0.0
        %535 = vmatprep.subr.mxu0 0.0
        %536 = vmatpush2.msra.mxu0 0.0
        %537 = vmatprep.subr.mxu0 0.0
        %538 = vmatpush2.msra.mxu0 0.0
        %539 = vmatprep.subr.mxu0 0.0
        %540 = vmatpush2.msra.mxu0 0.0
        %541 = vmatprep.subr.mxu0 0.0
        %542 = vmatpush2.msra.mxu0 0.0
        %543 = vmatprep.mubr.f32.mxu0 0.0
        %544 = vmatmul.mubr.f32.gmra.mxu0 %v407
        %v545 = vpop.f32.mrf.mxu0
        %v546 = vadd.f32 %v392, %v545
        %v547 = vpop.f32.mrf.mxu0
        %548 = vdwg.mxu0
        %549 = vmatprep.subr.mxu0 0.0
        %550 = vmatpush1.msra.mxu0 0.0
        %551 = vmatprep.subr.mxu0 0.0
        %552 = vmatpush1.msra.mxu0 0.0
        %553 = vmatprep.subr.mxu0 0.0
        %554 = vmatpush1.msra.mxu0 0.0
        %555 = vmatprep.subr.mxu0 0.0
        %556 = vmatpush1.msra.mxu0 0.0
        %557 = vmatprep.subr.mxu0 0.0
        %558 = vmatpush1.msra.mxu0 0.0
        %559 = vmatprep.subr.mxu0 0.0
        %560 = vmatpush1.msra.mxu0 0.0
        %561 = vmatprep.subr.mxu0 0.0
        %562 = vmatpush1.msra.mxu0 0.0
        %563 = vmatprep.subr.mxu0 0.0
        %564 = vmatpush1.msra.mxu0 0.0
        %565 = vmatprep.subr.mxu0 0.0
        %566 = vmatpush1.msra.mxu0 0.0
        %567 = vmatprep.subr.mxu0 0.0
        %568 = vmatpush1.msra.mxu0 0.0
        %569 = vmatprep.subr.mxu0 0.0
        %570 = vmatpush1.msra.mxu0 0.0
        %571 = vmatprep.subr.mxu0 0.0
        %572 = vmatpush1.msra.mxu0 0.0
        %573 = vmatprep.subr.mxu0 0.0
        %574 = vmatpush1.msra.mxu0 %v323
        %575 = vmatprep.subr.mxu0 0.0
        %576 = vmatpush1.msra.mxu0 %v322
        %577 = vmatprep.subr.mxu0 0.0
        %578 = vmatpush1.msra.mxu0 %v321
        %579 = vmatprep.subr.mxu0 0.0
        %580 = vmatpush1.msra.mxu0 %v320
        %581 = vmatprep.subr.mxu0 0.0
        %582 = vmatpush2.msra.mxu0 0.0
        %583 = vmatprep.subr.mxu0 0.0
        %584 = vmatpush2.msra.mxu0 0.0
        %585 = vmatprep.subr.mxu0 0.0
        %586 = vmatpush2.msra.mxu0 0.0
        %587 = vmatprep.subr.mxu0 0.0
        %588 = vmatpush2.msra.mxu0 0.0
        %589 = vmatprep.subr.mxu0 0.0
        %590 = vmatpush2.msra.mxu0 0.0
        %591 = vmatprep.subr.mxu0 0.0
        %592 = vmatpush2.msra.mxu0 0.0
        %593 = vmatprep.subr.mxu0 0.0
        %594 = vmatpush2.msra.mxu0 0.0
        %595 = vmatprep.subr.mxu0 0.0
        %596 = vmatpush2.msra.mxu0 0.0
        %597 = vmatprep.subr.mxu0 0.0
        %598 = vmatpush2.msra.mxu0 0.0
        %599 = vmatprep.subr.mxu0 0.0
        %600 = vmatpush2.msra.mxu0 0.0
        %601 = vmatprep.subr.mxu0 0.0
        %602 = vmatpush2.msra.mxu0 0.0
        %603 = vmatprep.subr.mxu0 0.0
        %604 = vmatpush2.msra.mxu0 0.0
        %605 = vmatprep.subr.mxu0 0.0
        %606 = vmatpush2.msra.mxu0 0.0
        %607 = vmatprep.subr.mxu0 0.0
        %608 = vmatpush2.msra.mxu0 0.0
        %609 = vmatprep.subr.mxu0 0.0
        %610 = vmatpush2.msra.mxu0 0.0
        %611 = vmatprep.subr.mxu0 0.0
        %612 = vmatpush2.msra.mxu0 0.0
        %613 = vmatprep.mubr.f32.mxu0 0.0
        %614 = vmatmul.mubr.f32.gmra.mxu0 %v407
        %v615 = vpop.f32.mrf.mxu0
        %v616 = vadd.f32 %v396, %v615
        %v617 = vpop.f32.mrf.mxu0
        %618 = vdwg.mxu0
        %619 = vmatprep.subr.mxu0 0.0
        %620 = vmatpush1.msra.mxu0 0.0
        %621 = vmatprep.subr.mxu0 0.0
        %622 = vmatpush1.msra.mxu0 0.0
        %623 = vmatprep.subr.mxu0 0.0
        %624 = vmatpush1.msra.mxu0 0.0
        %625 = vmatprep.subr.mxu0 0.0
        %626 = vmatpush1.msra.mxu0 0.0
        %627 = vmatprep.subr.mxu0 0.0
        %628 = vmatpush1.msra.mxu0 0.0
        %629 = vmatprep.subr.mxu0 0.0
        %630 = vmatpush1.msra.mxu0 0.0
        %631 = vmatprep.subr.mxu0 0.0
        %632 = vmatpush1.msra.mxu0 0.0
        %633 = vmatprep.subr.mxu0 0.0
        %634 = vmatpush1.msra.mxu0 0.0
        %635 = vmatprep.subr.mxu0 0.0
        %636 = vmatpush1.msra.mxu0 0.0
        %637 = vmatprep.subr.mxu0 0.0
        %638 = vmatpush1.msra.mxu0 0.0
        %639 = vmatprep.subr.mxu0 0.0
        %640 = vmatpush1.msra.mxu0 0.0
        %641 = vmatprep.subr.mxu0 0.0
        %642 = vmatpush1.msra.mxu0 0.0
        %643 = vmatprep.subr.mxu0 0.0
        %644 = vmatpush1.msra.mxu0 %v327
        %645 = vmatprep.subr.mxu0 0.0
        %646 = vmatpush1.msra.mxu0 %v326
        %647 = vmatprep.subr.mxu0 0.0
        %648 = vmatpush1.msra.mxu0 %v325
        %649 = vmatprep.subr.mxu0 0.0
        %650 = vmatpush1.msra.mxu0 %v324
        %651 = vmatprep.subr.mxu0 0.0
        %652 = vmatpush2.msra.mxu0 0.0
        %653 = vmatprep.subr.mxu0 0.0
        %654 = vmatpush2.msra.mxu0 0.0
        %655 = vmatprep.subr.mxu0 0.0
        %656 = vmatpush2.msra.mxu0 0.0
        %657 = vmatprep.subr.mxu0 0.0
        %658 = vmatpush2.msra.mxu0 0.0
        %659 = vmatprep.subr.mxu0 0.0
        %660 = vmatpush2.msra.mxu0 0.0
        %661 = vmatprep.subr.mxu0 0.0
        %662 = vmatpush2.msra.mxu0 0.0
        %663 = vmatprep.subr.mxu0 0.0
        %664 = vmatpush2.msra.mxu0 0.0
        %665 = vmatprep.subr.mxu0 0.0
        %666 = vmatpush2.msra.mxu0 0.0
        %667 = vmatprep.subr.mxu0 0.0
        %668 = vmatpush2.msra.mxu0 0.0
        %669 = vmatprep.subr.mxu0 0.0
        %670 = vmatpush2.msra.mxu0 0.0
        %671 = vmatprep.subr.mxu0 0.0
        %672 = vmatpush2.msra.mxu0 0.0
        %673 = vmatprep.subr.mxu0 0.0
        %674 = vmatpush2.msra.mxu0 0.0
        %675 = vmatprep.subr.mxu0 0.0
        %676 = vmatpush2.msra.mxu0 0.0
        %677 = vmatprep.subr.mxu0 0.0
        %678 = vmatpush2.msra.mxu0 0.0
        %679 = vmatprep.subr.mxu0 0.0
        %680 = vmatpush2.msra.mxu0 0.0
        %681 = vmatprep.subr.mxu0 0.0
        %682 = vmatpush2.msra.mxu0 0.0
        %683 = vmatprep.mubr.f32.mxu0 0.0
        %684 = vmatmul.mubr.f32.gmra.mxu0 %v407
        %v685 = vpop.f32.mrf.mxu0
        %v686 = vadd.f32 %v400, %v685
        %v687 = vpop.f32.mrf.mxu0
        %688 = vdwg.mxu0
        %v693 = vlaneseq
        %v694 = vshrl.u32 %v693, 7
        %v695 = vsub.s32 0, %v694
        %v696 = vrot.slane %v367, %v695
        %v697 = vlaneseq
        %v698 = vshrl.u32 %v697, 7
        %v699 = vsub.s32 0, %v698
        %v700 = vrot.slane %v368, %v699
        %v701 = vlaneseq
        %v702 = vshrl.u32 %v701, 7
        %v703 = vsub.s32 0, %v702
        %v704 = vrot.slane %v369, %v703
        %v705 = vlaneseq
        %v706 = vshrl.u32 %v705, 7
        %v707 = vsub.s32 0, %v706
        %v708 = vrot.slane %v370, %v707
        %v714 = vsel %vm405, %v309, 0
        %716 = vmatprep.subr.mxu0 0.0
        %717 = vmatpush1.msra.mxu0 0.0
        %718 = vmatprep.subr.mxu0 0.0
        %719 = vmatpush1.msra.mxu0 0.0
        %720 = vmatprep.subr.mxu0 0.0
        %721 = vmatpush1.msra.mxu0 0.0
        %722 = vmatprep.subr.mxu0 0.0
        %723 = vmatpush1.msra.mxu0 0.0
        %724 = vmatprep.subr.mxu0 0.0
        %725 = vmatpush1.msra.mxu0 0.0
        %726 = vmatprep.subr.mxu0 0.0
        %727 = vmatpush1.msra.mxu0 0.0
        %728 = vmatprep.subr.mxu0 0.0
        %729 = vmatpush1.msra.mxu0 0.0
        %730 = vmatprep.subr.mxu0 0.0
        %731 = vmatpush1.msra.mxu0 0.0
        %732 = vmatprep.subr.mxu0 0.0
        %733 = vmatpush1.msra.mxu0 0.0
        %734 = vmatprep.subr.mxu0 0.0
        %735 = vmatpush1.msra.mxu0 0.0
        %736 = vmatprep.subr.mxu0 0.0
        %737 = vmatpush1.msra.mxu0 0.0
        %738 = vmatprep.subr.mxu0 0.0
        %739 = vmatpush1.msra.mxu0 0.0
        %740 = vmatprep.subr.mxu0 0.0
        %741 = vmatpush1.msra.mxu0 %v332
        %742 = vmatprep.subr.mxu0 0.0
        %743 = vmatpush1.msra.mxu0 %v331
        %744 = vmatprep.subr.mxu0 0.0
        %745 = vmatpush1.msra.mxu0 %v330
        %746 = vmatprep.subr.mxu0 0.0
        %747 = vmatpush1.msra.mxu0 %v329
        %748 = vmatprep.subr.mxu0 0.0
        %749 = vmatpush2.msra.mxu0 0.0
        %750 = vmatprep.subr.mxu0 0.0
        %751 = vmatpush2.msra.mxu0 0.0
        %752 = vmatprep.subr.mxu0 0.0
        %753 = vmatpush2.msra.mxu0 0.0
        %754 = vmatprep.subr.mxu0 0.0
        %755 = vmatpush2.msra.mxu0 0.0
        %756 = vmatprep.subr.mxu0 0.0
        %757 = vmatpush2.msra.mxu0 0.0
        %758 = vmatprep.subr.mxu0 0.0
        %759 = vmatpush2.msra.mxu0 0.0
        %760 = vmatprep.subr.mxu0 0.0
        %761 = vmatpush2.msra.mxu0 0.0
        %762 = vmatprep.subr.mxu0 0.0
        %763 = vmatpush2.msra.mxu0 0.0
        %764 = vmatprep.subr.mxu0 0.0
        %765 = vmatpush2.msra.mxu0 0.0
        %766 = vmatprep.subr.mxu0 0.0
        %767 = vmatpush2.msra.mxu0 0.0
        %768 = vmatprep.subr.mxu0 0.0
        %769 = vmatpush2.msra.mxu0 0.0
        %770 = vmatprep.subr.mxu0 0.0
        %771 = vmatpush2.msra.mxu0 0.0
        %772 = vmatprep.subr.mxu0 0.0
        %773 = vmatpush2.msra.mxu0 0.0
        %774 = vmatprep.subr.mxu0 0.0
        %775 = vmatpush2.msra.mxu0 0.0
        %776 = vmatprep.subr.mxu0 0.0
        %777 = vmatpush2.msra.mxu0 0.0
        %778 = vmatprep.subr.mxu0 0.0
        %779 = vmatpush2.msra.mxu0 0.0
        %780 = vmatprep.mubr.f32.mxu0 0.0
        %781 = vmatmul.mubr.f32.gmra.mxu0 %v714
        %v782 = vpop.f32.mrf.mxu0
        %v783 = vadd.f32 %v696, %v782
        %v784 = vpop.f32.mrf.mxu0
        %785 = vdwg.mxu0
        %786 = vmatprep.subr.mxu0 0.0
        %787 = vmatpush1.msra.mxu0 0.0
        %788 = vmatprep.subr.mxu0 0.0
        %789 = vmatpush1.msra.mxu0 0.0
        %790 = vmatprep.subr.mxu0 0.0
        %791 = vmatpush1.msra.mxu0 0.0
        %792 = vmatprep.subr.mxu0 0.0
        %793 = vmatpush1.msra.mxu0 0.0
        %794 = vmatprep.subr.mxu0 0.0
        %795 = vmatpush1.msra.mxu0 0.0
        %796 = vmatprep.subr.mxu0 0.0
        %797 = vmatpush1.msra.mxu0 0.0
        %798 = vmatprep.subr.mxu0 0.0
        %799 = vmatpush1.msra.mxu0 0.0
        %800 = vmatprep.subr.mxu0 0.0
        %801 = vmatpush1.msra.mxu0 0.0
        %802 = vmatprep.subr.mxu0 0.0
        %803 = vmatpush1.msra.mxu0 0.0
        %804 = vmatprep.subr.mxu0 0.0
        %805 = vmatpush1.msra.mxu0 0.0
        %806 = vmatprep.subr.mxu0 0.0
        %807 = vmatpush1.msra.mxu0 0.0
        %808 = vmatprep.subr.mxu0 0.0
        %809 = vmatpush1.msra.mxu0 0.0
        %810 = vmatprep.subr.mxu0 0.0
        %811 = vmatpush1.msra.mxu0 %v336
        %812 = vmatprep.subr.mxu0 0.0
        %813 = vmatpush1.msra.mxu0 %v335
        %814 = vmatprep.subr.mxu0 0.0
        %815 = vmatpush1.msra.mxu0 %v334
        %816 = vmatprep.subr.mxu0 0.0
        %817 = vmatpush1.msra.mxu0 %v333
        %818 = vmatprep.subr.mxu0 0.0
        %819 = vmatpush2.msra.mxu0 0.0
        %820 = vmatprep.subr.mxu0 0.0
        %821 = vmatpush2.msra.mxu0 0.0
        %822 = vmatprep.subr.mxu0 0.0
        %823 = vmatpush2.msra.mxu0 0.0
        %824 = vmatprep.subr.mxu0 0.0
        %825 = vmatpush2.msra.mxu0 0.0
        %826 = vmatprep.subr.mxu0 0.0
        %827 = vmatpush2.msra.mxu0 0.0
        %828 = vmatprep.subr.mxu0 0.0
        %829 = vmatpush2.msra.mxu0 0.0
        %830 = vmatprep.subr.mxu0 0.0
        %831 = vmatpush2.msra.mxu0 0.0
        %832 = vmatprep.subr.mxu0 0.0
        %833 = vmatpush2.msra.mxu0 0.0
        %834 = vmatprep.subr.mxu0 0.0
        %835 = vmatpush2.msra.mxu0 0.0
        %836 = vmatprep.subr.mxu0 0.0
        %837 = vmatpush2.msra.mxu0 0.0
        %838 = vmatprep.subr.mxu0 0.0
        %839 = vmatpush2.msra.mxu0 0.0
        %840 = vmatprep.subr.mxu0 0.0
        %841 = vmatpush2.msra.mxu0 0.0
        %842 = vmatprep.subr.mxu0 0.0
        %843 = vmatpush2.msra.mxu0 0.0
        %844 = vmatprep.subr.mxu0 0.0
        %845 = vmatpush2.msra.mxu0 0.0
        %846 = vmatprep.subr.mxu0 0.0
        %847 = vmatpush2.msra.mxu0 0.0
        %848 = vmatprep.subr.mxu0 0.0
        %849 = vmatpush2.msra.mxu0 0.0
        %850 = vmatprep.mubr.f32.mxu0 0.0
        %851 = vmatmul.mubr.f32.gmra.mxu0 %v714
        %v852 = vpop.f32.mrf.mxu0
        %v853 = vadd.f32 %v700, %v852
        %v854 = vpop.f32.mrf.mxu0
        %855 = vdwg.mxu0
        %856 = vmatprep.subr.mxu0 0.0
        %857 = vmatpush1.msra.mxu0 0.0
        %858 = vmatprep.subr.mxu0 0.0
        %859 = vmatpush1.msra.mxu0 0.0
        %860 = vmatprep.subr.mxu0 0.0
        %861 = vmatpush1.msra.mxu0 0.0
        %862 = vmatprep.subr.mxu0 0.0
        %863 = vmatpush1.msra.mxu0 0.0
        %864 = vmatprep.subr.mxu0 0.0
        %865 = vmatpush1.msra.mxu0 0.0
        %866 = vmatprep.subr.mxu0 0.0
        %867 = vmatpush1.msra.mxu0 0.0
        %868 = vmatprep.subr.mxu0 0.0
        %869 = vmatpush1.msra.mxu0 0.0
        %870 = vmatprep.subr.mxu0 0.0
        %871 = vmatpush1.msra.mxu0 0.0
        %872 = vmatprep.subr.mxu0 0.0
        %873 = vmatpush1.msra.mxu0 0.0
        %874 = vmatprep.subr.mxu0 0.0
        %875 = vmatpush1.msra.mxu0 0.0
        %876 = vmatprep.subr.mxu0 0.0
        %877 = vmatpush1.msra.mxu0 0.0
        %878 = vmatprep.subr.mxu0 0.0
        %879 = vmatpush1.msra.mxu0 0.0
        %880 = vmatprep.subr.mxu0 0.0
        %881 = vmatpush1.msra.mxu0 %v340
        %882 = vmatprep.subr.mxu0 0.0
        %883 = vmatpush1.msra.mxu0 %v339
        %884 = vmatprep.subr.mxu0 0.0
        %885 = vmatpush1.msra.mxu0 %v338
        %886 = vmatprep.subr.mxu0 0.0
        %887 = vmatpush1.msra.mxu0 %v337
        %888 = vmatprep.subr.mxu0 0.0
        %889 = vmatpush2.msra.mxu0 0.0
        %890 = vmatprep.subr.mxu0 0.0
        %891 = vmatpush2.msra.mxu0 0.0
        %892 = vmatprep.subr.mxu0 0.0
        %893 = vmatpush2.msra.mxu0 0.0
        %894 = vmatprep.subr.mxu0 0.0
        %895 = vmatpush2.msra.mxu0 0.0
        %896 = vmatprep.subr.mxu0 0.0
        %897 = vmatpush2.msra.mxu0 0.0
        %898 = vmatprep.subr.mxu0 0.0
        %899 = vmatpush2.msra.mxu0 0.0
        %900 = vmatprep.subr.mxu0 0.0
        %901 = vmatpush2.msra.mxu0 0.0
        %902 = vmatprep.subr.mxu0 0.0
        %903 = vmatpush2.msra.mxu0 0.0
        %904 = vmatprep.subr.mxu0 0.0
        %905 = vmatpush2.msra.mxu0 0.0
        %906 = vmatprep.subr.mxu0 0.0
        %907 = vmatpush2.msra.mxu0 0.0
        %908 = vmatprep.subr.mxu0 0.0
        %909 = vmatpush2.msra.mxu0 0.0
        %910 = vmatprep.subr.mxu0 0.0
        %911 = vmatpush2.msra.mxu0 0.0
        %912 = vmatprep.subr.mxu0 0.0
        %913 = vmatpush2.msra.mxu0 0.0
        %914 = vmatprep.subr.mxu0 0.0
        %915 = vmatpush2.msra.mxu0 0.0
        %916 = vmatprep.subr.mxu0 0.0
        %917 = vmatpush2.msra.mxu0 0.0
        %918 = vmatprep.subr.mxu0 0.0
        %919 = vmatpush2.msra.mxu0 0.0
        %920 = vmatprep.mubr.f32.mxu0 0.0
        %921 = vmatmul.mubr.f32.gmra.mxu0 %v714
        %v922 = vpop.f32.mrf.mxu0
        %v923 = vadd.f32 %v704, %v922
        %v924 = vpop.f32.mrf.mxu0
        %925 = vdwg.mxu0
        %926 = vmatprep.subr.mxu0 0.0
        %927 = vmatpush1.msra.mxu0 0.0
        %928 = vmatprep.subr.mxu0 0.0
        %929 = vmatpush1.msra.mxu0 0.0
        %930 = vmatprep.subr.mxu0 0.0
        %931 = vmatpush1.msra.mxu0 0.0
        %932 = vmatprep.subr.mxu0 0.0
        %933 = vmatpush1.msra.mxu0 0.0
        %934 = vmatprep.subr.mxu0 0.0
        %935 = vmatpush1.msra.mxu0 0.0
        %936 = vmatprep.subr.mxu0 0.0
        %937 = vmatpush1.msra.mxu0 0.0
        %938 = vmatprep.subr.mxu0 0.0
        %939 = vmatpush1.msra.mxu0 0.0
        %940 = vmatprep.subr.mxu0 0.0
        %941 = vmatpush1.msra.mxu0 0.0
        %942 = vmatprep.subr.mxu0 0.0
        %943 = vmatpush1.msra.mxu0 0.0
        %944 = vmatprep.subr.mxu0 0.0
        %945 = vmatpush1.msra.mxu0 0.0
        %946 = vmatprep.subr.mxu0 0.0
        %947 = vmatpush1.msra.mxu0 0.0
        %948 = vmatprep.subr.mxu0 0.0
        %949 = vmatpush1.msra.mxu0 0.0
        %950 = vmatprep.subr.mxu0 0.0
        %951 = vmatpush1.msra.mxu0 %v344
        %952 = vmatprep.subr.mxu0 0.0
        %953 = vmatpush1.msra.mxu0 %v343
        %954 = vmatprep.subr.mxu0 0.0
        %955 = vmatpush1.msra.mxu0 %v342
        %956 = vmatprep.subr.mxu0 0.0
        %957 = vmatpush1.msra.mxu0 %v341
        %958 = vmatprep.subr.mxu0 0.0
        %959 = vmatpush2.msra.mxu0 0.0
        %960 = vmatprep.subr.mxu0 0.0
        %961 = vmatpush2.msra.mxu0 0.0
        %962 = vmatprep.subr.mxu0 0.0
        %963 = vmatpush2.msra.mxu0 0.0
        %964 = vmatprep.subr.mxu0 0.0
        %965 = vmatpush2.msra.mxu0 0.0
        %966 = vmatprep.subr.mxu0 0.0
        %967 = vmatpush2.msra.mxu0 0.0
        %968 = vmatprep.subr.mxu0 0.0
        %969 = vmatpush2.msra.mxu0 0.0
        %970 = vmatprep.subr.mxu0 0.0
        %971 = vmatpush2.msra.mxu0 0.0
        %972 = vmatprep.subr.mxu0 0.0
        %973 = vmatpush2.msra.mxu0 0.0
        %974 = vmatprep.subr.mxu0 0.0
        %975 = vmatpush2.msra.mxu0 0.0
        %976 = vmatprep.subr.mxu0 0.0
        %977 = vmatpush2.msra.mxu0 0.0
        %978 = vmatprep.subr.mxu0 0.0
        %979 = vmatpush2.msra.mxu0 0.0
        %980 = vmatprep.subr.mxu0 0.0
        %981 = vmatpush2.msra.mxu0 0.0
        %982 = vmatprep.subr.mxu0 0.0
        %983 = vmatpush2.msra.mxu0 0.0
        %984 = vmatprep.subr.mxu0 0.0
        %985 = vmatpush2.msra.mxu0 0.0
        %986 = vmatprep.subr.mxu0 0.0
        %987 = vmatpush2.msra.mxu0 0.0
        %988 = vmatprep.subr.mxu0 0.0
        %989 = vmatpush2.msra.mxu0 0.0
        %990 = vmatprep.mubr.f32.mxu0 0.0
        %991 = vmatmul.mubr.f32.gmra.mxu0 %v714
        %v992 = vpop.f32.mrf.mxu0
        %v993 = vadd.f32 %v708, %v992
        %v994 = vpop.f32.mrf.mxu0
        %995 = vdwg.mxu0
        %v1000 = vlaneseq
        %v1001 = vshrl.u32 %v1000, 7
        %v1002 = vsub.s32 0, %v1001
        %v1003 = vrot.slane %v372, %v1002
        %v1004 = vlaneseq
        %v1005 = vshrl.u32 %v1004, 7
        %v1006 = vsub.s32 0, %v1005
        %v1007 = vrot.slane %v373, %v1006
        %v1008 = vlaneseq
        %v1009 = vshrl.u32 %v1008, 7
        %v1010 = vsub.s32 0, %v1009
        %v1011 = vrot.slane %v374, %v1010
        %v1012 = vlaneseq
        %v1013 = vshrl.u32 %v1012, 7
        %v1014 = vsub.s32 0, %v1013
        %v1015 = vrot.slane %v375, %v1014
        %1020 = vmatprep.subr.mxu0 0.0
        %1021 = vmatpush1.msra.mxu0 0.0
        %1022 = vmatprep.subr.mxu0 0.0
        %1023 = vmatpush1.msra.mxu0 0.0
        %1024 = vmatprep.subr.mxu0 0.0
        %1025 = vmatpush1.msra.mxu0 0.0
        %1026 = vmatprep.subr.mxu0 0.0
        %1027 = vmatpush1.msra.mxu0 0.0
        %1028 = vmatprep.subr.mxu0 0.0
        %1029 = vmatpush1.msra.mxu0 0.0
        %1030 = vmatprep.subr.mxu0 0.0
        %1031 = vmatpush1.msra.mxu0 0.0
        %1032 = vmatprep.subr.mxu0 0.0
        %1033 = vmatpush1.msra.mxu0 0.0
        %1034 = vmatprep.subr.mxu0 0.0
        %1035 = vmatpush1.msra.mxu0 0.0
        %1036 = vmatprep.subr.mxu0 0.0
        %1037 = vmatpush1.msra.mxu0 0.0
        %1038 = vmatprep.subr.mxu0 0.0
        %1039 = vmatpush1.msra.mxu0 0.0
        %1040 = vmatprep.subr.mxu0 0.0
        %1041 = vmatpush1.msra.mxu0 0.0
        %1042 = vmatprep.subr.mxu0 0.0
        %1043 = vmatpush1.msra.mxu0 0.0
        %1044 = vmatprep.subr.mxu0 0.0
        %1045 = vmatpush1.msra.mxu0 %v349
        %1046 = vmatprep.subr.mxu0 0.0
        %1047 = vmatpush1.msra.mxu0 %v348
        %1048 = vmatprep.subr.mxu0 0.0
        %1049 = vmatpush1.msra.mxu0 %v347
        %1050 = vmatprep.subr.mxu0 0.0
        %1051 = vmatpush1.msra.mxu0 %v346
        %1052 = vmatprep.subr.mxu0 0.0
        %1053 = vmatpush2.msra.mxu0 0.0
        %1054 = vmatprep.subr.mxu0 0.0
        %1055 = vmatpush2.msra.mxu0 0.0
        %1056 = vmatprep.subr.mxu0 0.0
        %1057 = vmatpush2.msra.mxu0 0.0
        %1058 = vmatprep.subr.mxu0 0.0
        %1059 = vmatpush2.msra.mxu0 0.0
        %1060 = vmatprep.subr.mxu0 0.0
        %1061 = vmatpush2.msra.mxu0 0.0
        %1062 = vmatprep.subr.mxu0 0.0
        %1063 = vmatpush2.msra.mxu0 0.0
        %1064 = vmatprep.subr.mxu0 0.0
        %1065 = vmatpush2.msra.mxu0 0.0
        %1066 = vmatprep.subr.mxu0 0.0
        %1067 = vmatpush2.msra.mxu0 0.0
        %1068 = vmatprep.subr.mxu0 0.0
        %1069 = vmatpush2.msra.mxu0 0.0
        %1070 = vmatprep.subr.mxu0 0.0
        %1071 = vmatpush2.msra.mxu0 0.0
        %1072 = vmatprep.subr.mxu0 0.0
        %1073 = vmatpush2.msra.mxu0 0.0
        %1074 = vmatprep.subr.mxu0 0.0
        %1075 = vmatpush2.msra.mxu0 0.0
        %1076 = vmatprep.subr.mxu0 0.0
        %1077 = vmatpush2.msra.mxu0 0.0
        %1078 = vmatprep.subr.mxu0 0.0
        %1079 = vmatpush2.msra.mxu0 0.0
        %1080 = vmatprep.subr.mxu0 0.0
        %1081 = vmatpush2.msra.mxu0 0.0
        %1082 = vmatprep.subr.mxu0 0.0
        %1083 = vmatpush2.msra.mxu0 0.0
        %1084 = vmatprep.mubr.f32.mxu0 0.0
        %1085 = vmatmul.mubr.f32.gmra.mxu0 %v714
        %v1086 = vpop.f32.mrf.mxu0
        %v1087 = vadd.f32 %v1003, %v1086
        %v1088 = vpop.f32.mrf.mxu0
        %1089 = vdwg.mxu0
        %1090 = vmatprep.subr.mxu0 0.0
        %1091 = vmatpush1.msra.mxu0 0.0
        %1092 = vmatprep.subr.mxu0 0.0
        %1093 = vmatpush1.msra.mxu0 0.0
        %1094 = vmatprep.subr.mxu0 0.0
        %1095 = vmatpush1.msra.mxu0 0.0
        %1096 = vmatprep.subr.mxu0 0.0
        %1097 = vmatpush1.msra.mxu0 0.0
        %1098 = vmatprep.subr.mxu0 0.0
        %1099 = vmatpush1.msra.mxu0 0.0
        %1100 = vmatprep.subr.mxu0 0.0
        %1101 = vmatpush1.msra.mxu0 0.0
        %1102 = vmatprep.subr.mxu0 0.0
        %1103 = vmatpush1.msra.mxu0 0.0
        %1104 = vmatprep.subr.mxu0 0.0
        %1105 = vmatpush1.msra.mxu0 0.0
        %1106 = vmatprep.subr.mxu0 0.0
        %1107 = vmatpush1.msra.mxu0 0.0
        %1108 = vmatprep.subr.mxu0 0.0
        %1109 = vmatpush1.msra.mxu0 0.0
        %1110 = vmatprep.subr.mxu0 0.0
        %1111 = vmatpush1.msra.mxu0 0.0
        %1112 = vmatprep.subr.mxu0 0.0
        %1113 = vmatpush1.msra.mxu0 0.0
        %1114 = vmatprep.subr.mxu0 0.0
        %1115 = vmatpush1.msra.mxu0 %v353
        %1116 = vmatprep.subr.mxu0 0.0
        %1117 = vmatpush1.msra.mxu0 %v352
        %1118 = vmatprep.subr.mxu0 0.0
        %1119 = vmatpush1.msra.mxu0 %v351
        %1120 = vmatprep.subr.mxu0 0.0
        %1121 = vmatpush1.msra.mxu0 %v350
        %1122 = vmatprep.subr.mxu0 0.0
        %1123 = vmatpush2.msra.mxu0 0.0
        %1124 = vmatprep.subr.mxu0 0.0
        %1125 = vmatpush2.msra.mxu0 0.0
        %1126 = vmatprep.subr.mxu0 0.0
        %1127 = vmatpush2.msra.mxu0 0.0
        %1128 = vmatprep.subr.mxu0 0.0
        %1129 = vmatpush2.msra.mxu0 0.0
        %1130 = vmatprep.subr.mxu0 0.0
        %1131 = vmatpush2.msra.mxu0 0.0
        %1132 = vmatprep.subr.mxu0 0.0
        %1133 = vmatpush2.msra.mxu0 0.0
        %1134 = vmatprep.subr.mxu0 0.0
        %1135 = vmatpush2.msra.mxu0 0.0
        %1136 = vmatprep.subr.mxu0 0.0
        %1137 = vmatpush2.msra.mxu0 0.0
        %1138 = vmatprep.subr.mxu0 0.0
        %1139 = vmatpush2.msra.mxu0 0.0
        %1140 = vmatprep.subr.mxu0 0.0
        %1141 = vmatpush2.msra.mxu0 0.0
        %1142 = vmatprep.subr.mxu0 0.0
        %1143 = vmatpush2.msra.mxu0 0.0
        %1144 = vmatprep.subr.mxu0 0.0
        %1145 = vmatpush2.msra.mxu0 0.0
        %1146 = vmatprep.subr.mxu0 0.0
        %1147 = vmatpush2.msra.mxu0 0.0
        %1148 = vmatprep.subr.mxu0 0.0
        %1149 = vmatpush2.msra.mxu0 0.0
        %1150 = vmatprep.subr.mxu0 0.0
        %1151 = vmatpush2.msra.mxu0 0.0
        %1152 = vmatprep.subr.mxu0 0.0
        %1153 = vmatpush2.msra.mxu0 0.0
        %1154 = vmatprep.mubr.f32.mxu0 0.0
        %1155 = vmatmul.mubr.f32.gmra.mxu0 %v714
        %v1156 = vpop.f32.mrf.mxu0
        %v1157 = vadd.f32 %v1007, %v1156
        %v1158 = vpop.f32.mrf.mxu0
        %1159 = vdwg.mxu0
        %1160 = vmatprep.subr.mxu0 0.0
        %1161 = vmatpush1.msra.mxu0 0.0
        %1162 = vmatprep.subr.mxu0 0.0
        %1163 = vmatpush1.msra.mxu0 0.0
        %1164 = vmatprep.subr.mxu0 0.0
        %1165 = vmatpush1.msra.mxu0 0.0
        %1166 = vmatprep.subr.mxu0 0.0
        %1167 = vmatpush1.msra.mxu0 0.0
        %1168 = vmatprep.subr.mxu0 0.0
        %1169 = vmatpush1.msra.mxu0 0.0
        %1170 = vmatprep.subr.mxu0 0.0
        %1171 = vmatpush1.msra.mxu0 0.0
        %1172 = vmatprep.subr.mxu0 0.0
        %1173 = vmatpush1.msra.mxu0 0.0
        %1174 = vmatprep.subr.mxu0 0.0
        %1175 = vmatpush1.msra.mxu0 0.0
        %1176 = vmatprep.subr.mxu0 0.0
        %1177 = vmatpush1.msra.mxu0 0.0
        %1178 = vmatprep.subr.mxu0 0.0
        %1179 = vmatpush1.msra.mxu0 0.0
        %1180 = vmatprep.subr.mxu0 0.0
        %1181 = vmatpush1.msra.mxu0 0.0
        %1182 = vmatprep.subr.mxu0 0.0
        %1183 = vmatpush1.msra.mxu0 0.0
        %1184 = vmatprep.subr.mxu0 0.0
        %1185 = vmatpush1.msra.mxu0 %v357
        %1186 = vmatprep.subr.mxu0 0.0
        %1187 = vmatpush1.msra.mxu0 %v356
        %1188 = vmatprep.subr.mxu0 0.0
        %1189 = vmatpush1.msra.mxu0 %v355
        %1190 = vmatprep.subr.mxu0 0.0
        %1191 = vmatpush1.msra.mxu0 %v354
        %1192 = vmatprep.subr.mxu0 0.0
        %1193 = vmatpush2.msra.mxu0 0.0
        %1194 = vmatprep.subr.mxu0 0.0
        %1195 = vmatpush2.msra.mxu0 0.0
        %1196 = vmatprep.subr.mxu0 0.0
        %1197 = vmatpush2.msra.mxu0 0.0
        %1198 = vmatprep.subr.mxu0 0.0
        %1199 = vmatpush2.msra.mxu0 0.0
        %1200 = vmatprep.subr.mxu0 0.0
        %1201 = vmatpush2.msra.mxu0 0.0
        %1202 = vmatprep.subr.mxu0 0.0
        %1203 = vmatpush2.msra.mxu0 0.0
        %1204 = vmatprep.subr.mxu0 0.0
        %1205 = vmatpush2.msra.mxu0 0.0
        %1206 = vmatprep.subr.mxu0 0.0
        %1207 = vmatpush2.msra.mxu0 0.0
        %1208 = vmatprep.subr.mxu0 0.0
        %1209 = vmatpush2.msra.mxu0 0.0
        %1210 = vmatprep.subr.mxu0 0.0
        %1211 = vmatpush2.msra.mxu0 0.0
        %1212 = vmatprep.subr.mxu0 0.0
        %1213 = vmatpush2.msra.mxu0 0.0
        %1214 = vmatprep.subr.mxu0 0.0
        %1215 = vmatpush2.msra.mxu0 0.0
        %1216 = vmatprep.subr.mxu0 0.0
        %1217 = vmatpush2.msra.mxu0 0.0
        %1218 = vmatprep.subr.mxu0 0.0
        %1219 = vmatpush2.msra.mxu0 0.0
        %1220 = vmatprep.subr.mxu0 0.0
        %1221 = vmatpush2.msra.mxu0 0.0
        %1222 = vmatprep.subr.mxu0 0.0
        %1223 = vmatpush2.msra.mxu0 0.0
        %1224 = vmatprep.mubr.f32.mxu0 0.0
        %1225 = vmatmul.mubr.f32.gmra.mxu0 %v714
        %v1226 = vpop.f32.mrf.mxu0
        %v1227 = vadd.f32 %v1011, %v1226
        %v1228 = vpop.f32.mrf.mxu0
        %1229 = vdwg.mxu0
        %1230 = vmatprep.subr.mxu0 0.0
        %1231 = vmatpush1.msra.mxu0 0.0
        %1232 = vmatprep.subr.mxu0 0.0
        %1233 = vmatpush1.msra.mxu0 0.0
        %1234 = vmatprep.subr.mxu0 0.0
        %1235 = vmatpush1.msra.mxu0 0.0
        %1236 = vmatprep.subr.mxu0 0.0
        %1237 = vmatpush1.msra.mxu0 0.0
        %1238 = vmatprep.subr.mxu0 0.0
        %1239 = vmatpush1.msra.mxu0 0.0
        %1240 = vmatprep.subr.mxu0 0.0
        %1241 = vmatpush1.msra.mxu0 0.0
        %1242 = vmatprep.subr.mxu0 0.0
        %1243 = vmatpush1.msra.mxu0 0.0
        %1244 = vmatprep.subr.mxu0 0.0
        %1245 = vmatpush1.msra.mxu0 0.0
        %1246 = vmatprep.subr.mxu0 0.0
        %1247 = vmatpush1.msra.mxu0 0.0
        %1248 = vmatprep.subr.mxu0 0.0
        %1249 = vmatpush1.msra.mxu0 0.0
        %1250 = vmatprep.subr.mxu0 0.0
        %1251 = vmatpush1.msra.mxu0 0.0
        %1252 = vmatprep.subr.mxu0 0.0
        %1253 = vmatpush1.msra.mxu0 0.0
        %1254 = vmatprep.subr.mxu0 0.0
        %1255 = vmatpush1.msra.mxu0 %v361
        %1256 = vmatprep.subr.mxu0 0.0
        %1257 = vmatpush1.msra.mxu0 %v360
        %1258 = vmatprep.subr.mxu0 0.0
        %1259 = vmatpush1.msra.mxu0 %v359
        %1260 = vmatprep.subr.mxu0 0.0
        %1261 = vmatpush1.msra.mxu0 %v358
        %1262 = vmatprep.subr.mxu0 0.0
        %1263 = vmatpush2.msra.mxu0 0.0
        %1264 = vmatprep.subr.mxu0 0.0
        %1265 = vmatpush2.msra.mxu0 0.0
        %1266 = vmatprep.subr.mxu0 0.0
        %1267 = vmatpush2.msra.mxu0 0.0
        %1268 = vmatprep.subr.mxu0 0.0
        %1269 = vmatpush2.msra.mxu0 0.0
        %1270 = vmatprep.subr.mxu0 0.0
        %1271 = vmatpush2.msra.mxu0 0.0
        %1272 = vmatprep.subr.mxu0 0.0
        %1273 = vmatpush2.msra.mxu0 0.0
        %1274 = vmatprep.subr.mxu0 0.0
        %1275 = vmatpush2.msra.mxu0 0.0
        %1276 = vmatprep.subr.mxu0 0.0
        %1277 = vmatpush2.msra.mxu0 0.0
        %1278 = vmatprep.subr.mxu0 0.0
        %1279 = vmatpush2.msra.mxu0 0.0
        %1280 = vmatprep.subr.mxu0 0.0
        %1281 = vmatpush2.msra.mxu0 0.0
        %1282 = vmatprep.subr.mxu0 0.0
        %1283 = vmatpush2.msra.mxu0 0.0
        %1284 = vmatprep.subr.mxu0 0.0
        %1285 = vmatpush2.msra.mxu0 0.0
        %1286 = vmatprep.subr.mxu0 0.0
        %1287 = vmatpush2.msra.mxu0 0.0
        %1288 = vmatprep.subr.mxu0 0.0
        %1289 = vmatpush2.msra.mxu0 0.0
        %1290 = vmatprep.subr.mxu0 0.0
        %1291 = vmatpush2.msra.mxu0 0.0
        %1292 = vmatprep.subr.mxu0 0.0
        %1293 = vmatpush2.msra.mxu0 0.0
        %1294 = vmatprep.mubr.f32.mxu0 0.0
        %1295 = vmatmul.mubr.f32.gmra.mxu0 %v714
        %v1296 = vpop.f32.mrf.mxu0
        %v1297 = vadd.f32 %v1015, %v1296
        %v1298 = vpop.f32.mrf.mxu0
        %1299 = vdwg.mxu0
        %vm1300 = vcmask 64512
        %v1302 = vsel %vm1300, %v476, 0
        %v1305 = vsel %vm1300, %v783, 0
        %1307 = vmatprep.subr.mxu0 0.0
        %1308 = vmatpush1.xpose.msra.mxu0 0.0
        %1309 = vmatprep.subr.mxu0 0.0
        %1310 = vmatpush1.xpose.msra.mxu0 0.0
        %1311 = vmatprep.subr.mxu0 0.0
        %1312 = vmatpush1.xpose.msra.mxu0 0.0
        %1313 = vmatprep.subr.mxu0 0.0
        %1314 = vmatpush1.xpose.msra.mxu0 0.0
        %1315 = vmatprep.subr.mxu0 0.0
        %1316 = vmatpush1.xpose.msra.mxu0 0.0
        %1317 = vmatprep.subr.mxu0 0.0
        %1318 = vmatpush1.xpose.msra.mxu0 0.0
        %1319 = vmatprep.subr.mxu0 0.0
        %1320 = vmatpush1.xpose.msra.mxu0 0.0
        %1321 = vmatprep.subr.mxu0 0.0
        %1322 = vmatpush1.xpose.msra.mxu0 0.0
        %1323 = vmatprep.subr.mxu0 0.0
        %1324 = vmatpush1.xpose.msra.mxu0 0.0
        %1325 = vmatprep.subr.mxu0 0.0
        %1326 = vmatpush1.xpose.msra.mxu0 0.0
        %1327 = vmatprep.subr.mxu0 0.0
        %1328 = vmatpush1.xpose.msra.mxu0 0.0
        %1329 = vmatprep.subr.mxu0 0.0
        %1330 = vmatpush1.xpose.msra.mxu0 0.0
        %1331 = vmatprep.subr.mxu0 0.0
        %1332 = vmatpush1.xpose.msra.mxu0 0.0
        %1333 = vmatprep.subr.mxu0 0.0
        %1334 = vmatpush1.xpose.msra.mxu0 0.0
        %1335 = vmatprep.subr.mxu0 0.0
        %1336 = vmatpush1.xpose.msra.mxu0 0.0
        %1337 = vmatprep.subr.mxu0 0.0
        %1338 = vmatpush1.xpose.msra.mxu0 %v1305
        %1339 = vmatprep.subr.mxu0 0.0
        %1340 = vmatpush2.xpose.msra.mxu0 0.0
        %1341 = vmatprep.subr.mxu0 0.0
        %1342 = vmatpush2.xpose.msra.mxu0 0.0
        %1343 = vmatprep.subr.mxu0 0.0
        %1344 = vmatpush2.xpose.msra.mxu0 0.0
        %1345 = vmatprep.subr.mxu0 0.0
        %1346 = vmatpush2.xpose.msra.mxu0 0.0
        %1347 = vmatprep.subr.mxu0 0.0
        %1348 = vmatpush2.xpose.msra.mxu0 0.0
        %1349 = vmatprep.subr.mxu0 0.0
        %1350 = vmatpush2.xpose.msra.mxu0 0.0
        %1351 = vmatprep.subr.mxu0 0.0
        %1352 = vmatpush2.xpose.msra.mxu0 0.0
        %1353 = vmatprep.subr.mxu0 0.0
        %1354 = vmatpush2.xpose.msra.mxu0 0.0
        %1355 = vmatprep.subr.mxu0 0.0
        %1356 = vmatpush2.xpose.msra.mxu0 0.0
        %1357 = vmatprep.subr.mxu0 0.0
        %1358 = vmatpush2.xpose.msra.mxu0 0.0
        %1359 = vmatprep.subr.mxu0 0.0
        %1360 = vmatpush2.xpose.msra.mxu0 0.0
        %1361 = vmatprep.subr.mxu0 0.0
        %1362 = vmatpush2.xpose.msra.mxu0 0.0
        %1363 = vmatprep.subr.mxu0 0.0
        %1364 = vmatpush2.xpose.msra.mxu0 0.0
        %1365 = vmatprep.subr.mxu0 0.0
        %1366 = vmatpush2.xpose.msra.mxu0 0.0
        %1367 = vmatprep.subr.mxu0 0.0
        %1368 = vmatpush2.xpose.msra.mxu0 0.0
        %1369 = vmatprep.subr.mxu0 0.0
        %1370 = vmatpush2.xpose.msra.mxu0 0.0
        %1371 = vmatprep.mubr.f32.mxu0 0.0
        %1372 = vmatmul.mubr.f32.gmra.mxu0 %v1302
        %v1373 = vpop.f32.mrf.mxu0
        %v1374 = vadd.f32 0.0, %v1373
        %v1375 = vpop.f32.mrf.mxu0
        %1376 = vdwg.mxu0
        %v1378 = vsel %vm1300, %v546, 0
        %v1381 = vsel %vm1300, %v853, 0
        %1383 = vmatprep.subr.mxu0 0.0
        %1384 = vmatpush1.xpose.msra.mxu0 0.0
        %1385 = vmatprep.subr.mxu0 0.0
        %1386 = vmatpush1.xpose.msra.mxu0 0.0
        %1387 = vmatprep.subr.mxu0 0.0
        %1388 = vmatpush1.xpose.msra.mxu0 0.0
        %1389 = vmatprep.subr.mxu0 0.0
        %1390 = vmatpush1.xpose.msra.mxu0 0.0
        %1391 = vmatprep.subr.mxu0 0.0
        %1392 = vmatpush1.xpose.msra.mxu0 0.0
        %1393 = vmatprep.subr.mxu0 0.0
        %1394 = vmatpush1.xpose.msra.mxu0 0.0
        %1395 = vmatprep.subr.mxu0 0.0
        %1396 = vmatpush1.xpose.msra.mxu0 0.0
        %1397 = vmatprep.subr.mxu0 0.0
        %1398 = vmatpush1.xpose.msra.mxu0 0.0
        %1399 = vmatprep.subr.mxu0 0.0
        %1400 = vmatpush1.xpose.msra.mxu0 0.0
        %1401 = vmatprep.subr.mxu0 0.0
        %1402 = vmatpush1.xpose.msra.mxu0 0.0
        %1403 = vmatprep.subr.mxu0 0.0
        %1404 = vmatpush1.xpose.msra.mxu0 0.0
        %1405 = vmatprep.subr.mxu0 0.0
        %1406 = vmatpush1.xpose.msra.mxu0 0.0
        %1407 = vmatprep.subr.mxu0 0.0
        %1408 = vmatpush1.xpose.msra.mxu0 0.0
        %1409 = vmatprep.subr.mxu0 0.0
        %1410 = vmatpush1.xpose.msra.mxu0 0.0
        %1411 = vmatprep.subr.mxu0 0.0
        %1412 = vmatpush1.xpose.msra.mxu0 0.0
        %1413 = vmatprep.subr.mxu0 0.0
        %1414 = vmatpush1.xpose.msra.mxu0 %v1381
        %1415 = vmatprep.subr.mxu0 0.0
        %1416 = vmatpush2.xpose.msra.mxu0 0.0
        %1417 = vmatprep.subr.mxu0 0.0
        %1418 = vmatpush2.xpose.msra.mxu0 0.0
        %1419 = vmatprep.subr.mxu0 0.0
        %1420 = vmatpush2.xpose.msra.mxu0 0.0
        %1421 = vmatprep.subr.mxu0 0.0
        %1422 = vmatpush2.xpose.msra.mxu0 0.0
        %1423 = vmatprep.subr.mxu0 0.0
        %1424 = vmatpush2.xpose.msra.mxu0 0.0
        %1425 = vmatprep.subr.mxu0 0.0
        %1426 = vmatpush2.xpose.msra.mxu0 0.0
        %1427 = vmatprep.subr.mxu0 0.0
        %1428 = vmatpush2.xpose.msra.mxu0 0.0
        %1429 = vmatprep.subr.mxu0 0.0
        %1430 = vmatpush2.xpose.msra.mxu0 0.0
        %1431 = vmatprep.subr.mxu0 0.0
        %1432 = vmatpush2.xpose.msra.mxu0 0.0
        %1433 = vmatprep.subr.mxu0 0.0
        %1434 = vmatpush2.xpose.msra.mxu0 0.0
        %1435 = vmatprep.subr.mxu0 0.0
        %1436 = vmatpush2.xpose.msra.mxu0 0.0
        %1437 = vmatprep.subr.mxu0 0.0
        %1438 = vmatpush2.xpose.msra.mxu0 0.0
        %1439 = vmatprep.subr.mxu0 0.0
        %1440 = vmatpush2.xpose.msra.mxu0 0.0
        %1441 = vmatprep.subr.mxu0 0.0
        %1442 = vmatpush2.xpose.msra.mxu0 0.0
        %1443 = vmatprep.subr.mxu0 0.0
        %1444 = vmatpush2.xpose.msra.mxu0 0.0
        %1445 = vmatprep.subr.mxu0 0.0
        %1446 = vmatpush2.xpose.msra.mxu0 0.0
        %1447 = vmatprep.mubr.f32.mxu0 0.0
        %1448 = vmatmul.mubr.f32.gmra.mxu0 %v1378
        %v1449 = vpop.f32.mrf.mxu0
        %v1450 = vadd.f32 0.0, %v1449
        %v1451 = vpop.f32.mrf.mxu0
        %1452 = vdwg.mxu0
        %v1454 = vsel %vm1300, %v616, 0
        %v1457 = vsel %vm1300, %v923, 0
        %1459 = vmatprep.subr.mxu0 0.0
        %1460 = vmatpush1.xpose.msra.mxu0 0.0
        %1461 = vmatprep.subr.mxu0 0.0
        %1462 = vmatpush1.xpose.msra.mxu0 0.0
        %1463 = vmatprep.subr.mxu0 0.0
        %1464 = vmatpush1.xpose.msra.mxu0 0.0
        %1465 = vmatprep.subr.mxu0 0.0
        %1466 = vmatpush1.xpose.msra.mxu0 0.0
        %1467 = vmatprep.subr.mxu0 0.0
        %1468 = vmatpush1.xpose.msra.mxu0 0.0
        %1469 = vmatprep.subr.mxu0 0.0
        %1470 = vmatpush1.xpose.msra.mxu0 0.0
        %1471 = vmatprep.subr.mxu0 0.0
        %1472 = vmatpush1.xpose.msra.mxu0 0.0
        %1473 = vmatprep.subr.mxu0 0.0
        %1474 = vmatpush1.xpose.msra.mxu0 0.0
        %1475 = vmatprep.subr.mxu0 0.0
        %1476 = vmatpush1.xpose.msra.mxu0 0.0
        %1477 = vmatprep.subr.mxu0 0.0
        %1478 = vmatpush1.xpose.msra.mxu0 0.0
        %1479 = vmatprep.subr.mxu0 0.0
        %1480 = vmatpush1.xpose.msra.mxu0 0.0
        %1481 = vmatprep.subr.mxu0 0.0
        %1482 = vmatpush1.xpose.msra.mxu0 0.0
        %1483 = vmatprep.subr.mxu0 0.0
        %1484 = vmatpush1.xpose.msra.mxu0 0.0
        %1485 = vmatprep.subr.mxu0 0.0
        %1486 = vmatpush1.xpose.msra.mxu0 0.0
        %1487 = vmatprep.subr.mxu0 0.0
        %1488 = vmatpush1.xpose.msra.mxu0 0.0
        %1489 = vmatprep.subr.mxu0 0.0
        %1490 = vmatpush1.xpose.msra.mxu0 %v1457
        %1491 = vmatprep.subr.mxu0 0.0
        %1492 = vmatpush2.xpose.msra.mxu0 0.0
        %1493 = vmatprep.subr.mxu0 0.0
        %1494 = vmatpush2.xpose.msra.mxu0 0.0
        %1495 = vmatprep.subr.mxu0 0.0
        %1496 = vmatpush2.xpose.msra.mxu0 0.0
        %1497 = vmatprep.subr.mxu0 0.0
        %1498 = vmatpush2.xpose.msra.mxu0 0.0
        %1499 = vmatprep.subr.mxu0 0.0
        %1500 = vmatpush2.xpose.msra.mxu0 0.0
        %1501 = vmatprep.subr.mxu0 0.0
        %1502 = vmatpush2.xpose.msra.mxu0 0.0
        %1503 = vmatprep.subr.mxu0 0.0
        %1504 = vmatpush2.xpose.msra.mxu0 0.0
        %1505 = vmatprep.subr.mxu0 0.0
        %1506 = vmatpush2.xpose.msra.mxu0 0.0
        %1507 = vmatprep.subr.mxu0 0.0
        %1508 = vmatpush2.xpose.msra.mxu0 0.0
        %1509 = vmatprep.subr.mxu0 0.0
        %1510 = vmatpush2.xpose.msra.mxu0 0.0
        %1511 = vmatprep.subr.mxu0 0.0
        %1512 = vmatpush2.xpose.msra.mxu0 0.0
        %1513 = vmatprep.subr.mxu0 0.0
        %1514 = vmatpush2.xpose.msra.mxu0 0.0
        %1515 = vmatprep.subr.mxu0 0.0
        %1516 = vmatpush2.xpose.msra.mxu0 0.0
        %1517 = vmatprep.subr.mxu0 0.0
        %1518 = vmatpush2.xpose.msra.mxu0 0.0
        %1519 = vmatprep.subr.mxu0 0.0
        %1520 = vmatpush2.xpose.msra.mxu0 0.0
        %1521 = vmatprep.subr.mxu0 0.0
        %1522 = vmatpush2.xpose.msra.mxu0 0.0
        %1523 = vmatprep.mubr.f32.mxu0 0.0
        %1524 = vmatmul.mubr.f32.gmra.mxu0 %v1454
        %v1525 = vpop.f32.mrf.mxu0
        %v1526 = vadd.f32 0.0, %v1525
        %v1527 = vpop.f32.mrf.mxu0
        %1528 = vdwg.mxu0
        %v1530 = vsel %vm1300, %v686, 0
        %v1533 = vsel %vm1300, %v993, 0
        %1535 = vmatprep.subr.mxu0 0.0
        %1536 = vmatpush1.xpose.msra.mxu0 0.0
        %1537 = vmatprep.subr.mxu0 0.0
        %1538 = vmatpush1.xpose.msra.mxu0 0.0
        %1539 = vmatprep.subr.mxu0 0.0
        %1540 = vmatpush1.xpose.msra.mxu0 0.0
        %1541 = vmatprep.subr.mxu0 0.0
        %1542 = vmatpush1.xpose.msra.mxu0 0.0
        %1543 = vmatprep.subr.mxu0 0.0
        %1544 = vmatpush1.xpose.msra.mxu0 0.0
        %1545 = vmatprep.subr.mxu0 0.0
        %1546 = vmatpush1.xpose.msra.mxu0 0.0
        %1547 = vmatprep.subr.mxu0 0.0
        %1548 = vmatpush1.xpose.msra.mxu0 0.0
        %1549 = vmatprep.subr.mxu0 0.0
        %1550 = vmatpush1.xpose.msra.mxu0 0.0
        %1551 = vmatprep.subr.mxu0 0.0
        %1552 = vmatpush1.xpose.msra.mxu0 0.0
        %1553 = vmatprep.subr.mxu0 0.0
        %1554 = vmatpush1.xpose.msra.mxu0 0.0
        %1555 = vmatprep.subr.mxu0 0.0
        %1556 = vmatpush1.xpose.msra.mxu0 0.0
        %1557 = vmatprep.subr.mxu0 0.0
        %1558 = vmatpush1.xpose.msra.mxu0 0.0
        %1559 = vmatprep.subr.mxu0 0.0
        %1560 = vmatpush1.xpose.msra.mxu0 0.0
        %1561 = vmatprep.subr.mxu0 0.0
        %1562 = vmatpush1.xpose.msra.mxu0 0.0
        %1563 = vmatprep.subr.mxu0 0.0
        %1564 = vmatpush1.xpose.msra.mxu0 0.0
        %1565 = vmatprep.subr.mxu0 0.0
        %1566 = vmatpush1.xpose.msra.mxu0 %v1533
        %1567 = vmatprep.subr.mxu0 0.0
        %1568 = vmatpush2.xpose.msra.mxu0 0.0
        %1569 = vmatprep.subr.mxu0 0.0
        %1570 = vmatpush2.xpose.msra.mxu0 0.0
        %1571 = vmatprep.subr.mxu0 0.0
        %1572 = vmatpush2.xpose.msra.mxu0 0.0
        %1573 = vmatprep.subr.mxu0 0.0
        %1574 = vmatpush2.xpose.msra.mxu0 0.0
        %1575 = vmatprep.subr.mxu0 0.0
        %1576 = vmatpush2.xpose.msra.mxu0 0.0
        %1577 = vmatprep.subr.mxu0 0.0
        %1578 = vmatpush2.xpose.msra.mxu0 0.0
        %1579 = vmatprep.subr.mxu0 0.0
        %1580 = vmatpush2.xpose.msra.mxu0 0.0
        %1581 = vmatprep.subr.mxu0 0.0
        %1582 = vmatpush2.xpose.msra.mxu0 0.0
        %1583 = vmatprep.subr.mxu0 0.0
        %1584 = vmatpush2.xpose.msra.mxu0 0.0
        %1585 = vmatprep.subr.mxu0 0.0
        %1586 = vmatpush2.xpose.msra.mxu0 0.0
        %1587 = vmatprep.subr.mxu0 0.0
        %1588 = vmatpush2.xpose.msra.mxu0 0.0
        %1589 = vmatprep.subr.mxu0 0.0
        %1590 = vmatpush2.xpose.msra.mxu0 0.0
        %1591 = vmatprep.subr.mxu0 0.0
        %1592 = vmatpush2.xpose.msra.mxu0 0.0
        %1593 = vmatprep.subr.mxu0 0.0
        %1594 = vmatpush2.xpose.msra.mxu0 0.0
        %1595 = vmatprep.subr.mxu0 0.0
        %1596 = vmatpush2.xpose.msra.mxu0 0.0
        %1597 = vmatprep.subr.mxu0 0.0
        %1598 = vmatpush2.xpose.msra.mxu0 0.0
        %1599 = vmatprep.mubr.f32.mxu0 0.0
        %1600 = vmatmul.mubr.f32.gmra.mxu0 %v1530
        %v1601 = vpop.f32.mrf.mxu0
        %v1602 = vadd.f32 0.0, %v1601
        %v1603 = vpop.f32.mrf.mxu0
        %1604 = vdwg.mxu0
        %v1605 = vsel %vm311, -1e-10, %v1374
        %v1606 = vsel %vm311, -1e-10, %v1450
        %v1607 = vsel %vm311, -1e-10, %v1526
        %v1608 = vsel %vm311, -1e-10, %v1602
        %v1609 = vmul.f32 %v1605, 0.17677669
        %v1610 = vmul.f32 %v1606, 0.17677669
        %v1611 = vmul.f32 %v1607, 0.17677669
        %v1612 = vmul.f32 %v1608, 0.17677669
        %v1613 = vsel %vm1300, %v1609, -inf
        %1614 = vmax.xlane.f32.xlu0 %v1613
        %v1615 = vpop.xlane.xlu0 %1614
        %v1616 = vsel %vm1300, %v1610, -inf
        %1617 = vmax.xlane.f32.xlu0 %v1616
        %v1618 = vpop.xlane.xlu0 %1617
        %v1619 = vsel %vm1300, %v1611, -inf
        %1620 = vmax.xlane.f32.xlu0 %v1619
        %v1621 = vpop.xlane.xlu0 %1620
        %v1622 = vsel %vm1300, %v1612, -inf
        %1623 = vmax.xlane.f32.xlu0 %v1622
        %v1624 = vpop.xlane.xlu0 %1623
        %v1625 = vsub.f32 %v1609, %v1615
        %v1626 = vsub.f32 %v1610, %v1618
        %v1627 = vsub.f32 %v1611, %v1621
        %v1628 = vsub.f32 %v1612, %v1624
        %v1629 = vmul.f32 %v1625, 1.442695
        %v1630 = vpow.pop %v1629
        %v1631 = vmul.f32 %v1626, 1.442695
        %v1632 = vpow.pop %v1631
        %v1633 = vmul.f32 %v1627, 1.442695
        %v1634 = vpow.pop %v1633
        %v1635 = vmul.f32 %v1628, 1.442695
        %v1636 = vpow.pop %v1635
        %v1637 = vsel %vm1300, %v1630, 0.0
        %1638 = vadd.xlane.f32.xlu0 %v1637
        %v1639 = vpop.xlane.xlu0 %1638
        %v1640 = vsel %vm1300, %v1632, 0.0
        %1641 = vadd.xlane.f32.xlu0 %v1640
        %v1642 = vpop.xlane.xlu0 %1641
        %v1643 = vsel %vm1300, %v1634, 0.0
        %1644 = vadd.xlane.f32.xlu0 %v1643
        %v1645 = vpop.xlane.xlu0 %1644
        %v1646 = vsel %vm1300, %v1636, 0.0
        %1647 = vadd.xlane.f32.xlu0 %v1646
        %v1648 = vpop.xlane.xlu0 %1647
        %v1649 = vrcp.pop %v1639
        %v1650 = vrcp.pop %v1642
        %v1651 = vrcp.pop %v1645
        %v1652 = vrcp.pop %v1648
        %v1653 = vmul.f32 %v1630, %v1649
        %v1654 = vmul.f32 %v1632, %v1650
        %v1655 = vmul.f32 %v1634, %v1651
        %v1656 = vmul.f32 %v1636, %v1652
        %v1658 = vsel %vm1300, %v1653, 0
        %1660 = vmatprep.subr.mxu0 0.0
        %1661 = vmatpush1.msra.mxu0 0.0
        %1662 = vmatprep.subr.mxu0 0.0
        %1663 = vmatpush1.msra.mxu0 0.0
        %1664 = vmatprep.subr.mxu0 0.0
        %1665 = vmatpush1.msra.mxu0 0.0
        %1666 = vmatprep.subr.mxu0 0.0
        %1667 = vmatpush1.msra.mxu0 0.0
        %1668 = vmatprep.subr.mxu0 0.0
        %1669 = vmatpush1.msra.mxu0 0.0
        %1670 = vmatprep.subr.mxu0 0.0
        %1671 = vmatpush1.msra.mxu0 0.0
        %1672 = vmatprep.subr.mxu0 0.0
        %1673 = vmatpush1.msra.mxu0 0.0
        %1674 = vmatprep.subr.mxu0 0.0
        %1675 = vmatpush1.msra.mxu0 0.0
        %1676 = vmatprep.subr.mxu0 0.0
        %1677 = vmatpush1.msra.mxu0 0.0
        %1678 = vmatprep.subr.mxu0 0.0
        %1679 = vmatpush1.msra.mxu0 0.0
        %1680 = vmatprep.subr.mxu0 0.0
        %1681 = vmatpush1.msra.mxu0 0.0
        %1682 = vmatprep.subr.mxu0 0.0
        %1683 = vmatpush1.msra.mxu0 0.0
        %1684 = vmatprep.subr.mxu0 0.0
        %1685 = vmatpush1.msra.mxu0 0.0
        %1686 = vmatprep.subr.mxu0 0.0
        %1687 = vmatpush1.msra.mxu0 0.0
        %1688 = vmatprep.subr.mxu0 0.0
        %1689 = vmatpush1.msra.mxu0 0.0
        %1690 = vmatprep.subr.mxu0 0.0
        %1691 = vmatpush1.msra.mxu0 %v1087
        %1692 = vmatprep.subr.mxu0 0.0
        %1693 = vmatpush2.msra.mxu0 0.0
        %1694 = vmatprep.subr.mxu0 0.0
        %1695 = vmatpush2.msra.mxu0 0.0
        %1696 = vmatprep.subr.mxu0 0.0
        %1697 = vmatpush2.msra.mxu0 0.0
        %1698 = vmatprep.subr.mxu0 0.0
        %1699 = vmatpush2.msra.mxu0 0.0
        %1700 = vmatprep.subr.mxu0 0.0
        %1701 = vmatpush2.msra.mxu0 0.0
        %1702 = vmatprep.subr.mxu0 0.0
        %1703 = vmatpush2.msra.mxu0 0.0
        %1704 = vmatprep.subr.mxu0 0.0
        %1705 = vmatpush2.msra.mxu0 0.0
        %1706 = vmatprep.subr.mxu0 0.0
        %1707 = vmatpush2.msra.mxu0 0.0
        %1708 = vmatprep.subr.mxu0 0.0
        %1709 = vmatpush2.msra.mxu0 0.0
        %1710 = vmatprep.subr.mxu0 0.0
        %1711 = vmatpush2.msra.mxu0 0.0
        %1712 = vmatprep.subr.mxu0 0.0
        %1713 = vmatpush2.msra.mxu0 0.0
        %1714 = vmatprep.subr.mxu0 0.0
        %1715 = vmatpush2.msra.mxu0 0.0
        %1716 = vmatprep.subr.mxu0 0.0
        %1717 = vmatpush2.msra.mxu0 0.0
        %1718 = vmatprep.subr.mxu0 0.0
        %1719 = vmatpush2.msra.mxu0 0.0
        %1720 = vmatprep.subr.mxu0 0.0
        %1721 = vmatpush2.msra.mxu0 0.0
        %1722 = vmatprep.subr.mxu0 0.0
        %1723 = vmatpush2.msra.mxu0 0.0
        %1724 = vmatprep.mubr.f32.mxu0 0.0
        %1725 = vmatmul.mubr.f32.gmra.mxu0 %v1658
        %v1726 = vpop.f32.mrf.mxu0
        %v1727 = vadd.f32 0.0, %v1726
        %v1728 = vpop.f32.mrf.mxu0
        %1729 = vdwg.mxu0
        %v1731 = vsel %vm1300, %v1654, 0
        %1733 = vmatprep.subr.mxu0 0.0
        %1734 = vmatpush1.msra.mxu0 0.0
        %1735 = vmatprep.subr.mxu0 0.0
        %1736 = vmatpush1.msra.mxu0 0.0
        %1737 = vmatprep.subr.mxu0 0.0
        %1738 = vmatpush1.msra.mxu0 0.0
        %1739 = vmatprep.subr.mxu0 0.0
        %1740 = vmatpush1.msra.mxu0 0.0
        %1741 = vmatprep.subr.mxu0 0.0
        %1742 = vmatpush1.msra.mxu0 0.0
        %1743 = vmatprep.subr.mxu0 0.0
        %1744 = vmatpush1.msra.mxu0 0.0
        %1745 = vmatprep.subr.mxu0 0.0
        %1746 = vmatpush1.msra.mxu0 0.0
        %1747 = vmatprep.subr.mxu0 0.0
        %1748 = vmatpush1.msra.mxu0 0.0
        %1749 = vmatprep.subr.mxu0 0.0
        %1750 = vmatpush1.msra.mxu0 0.0
        %1751 = vmatprep.subr.mxu0 0.0
        %1752 = vmatpush1.msra.mxu0 0.0
        %1753 = vmatprep.subr.mxu0 0.0
        %1754 = vmatpush1.msra.mxu0 0.0
        %1755 = vmatprep.subr.mxu0 0.0
        %1756 = vmatpush1.msra.mxu0 0.0
        %1757 = vmatprep.subr.mxu0 0.0
        %1758 = vmatpush1.msra.mxu0 0.0
        %1759 = vmatprep.subr.mxu0 0.0
        %1760 = vmatpush1.msra.mxu0 0.0
        %1761 = vmatprep.subr.mxu0 0.0
        %1762 = vmatpush1.msra.mxu0 0.0
        %1763 = vmatprep.subr.mxu0 0.0
        %1764 = vmatpush1.msra.mxu0 %v1157
        %1765 = vmatprep.subr.mxu0 0.0
        %1766 = vmatpush2.msra.mxu0 0.0
        %1767 = vmatprep.subr.mxu0 0.0
        %1768 = vmatpush2.msra.mxu0 0.0
        %1769 = vmatprep.subr.mxu0 0.0
        %1770 = vmatpush2.msra.mxu0 0.0
        %1771 = vmatprep.subr.mxu0 0.0
        %1772 = vmatpush2.msra.mxu0 0.0
        %1773 = vmatprep.subr.mxu0 0.0
        %1774 = vmatpush2.msra.mxu0 0.0
        %1775 = vmatprep.subr.mxu0 0.0
        %1776 = vmatpush2.msra.mxu0 0.0
        %1777 = vmatprep.subr.mxu0 0.0
        %1778 = vmatpush2.msra.mxu0 0.0
        %1779 = vmatprep.subr.mxu0 0.0
        %1780 = vmatpush2.msra.mxu0 0.0
        %1781 = vmatprep.subr.mxu0 0.0
        %1782 = vmatpush2.msra.mxu0 0.0
        %1783 = vmatprep.subr.mxu0 0.0
        %1784 = vmatpush2.msra.mxu0 0.0
        %1785 = vmatprep.subr.mxu0 0.0
        %1786 = vmatpush2.msra.mxu0 0.0
        %1787 = vmatprep.subr.mxu0 0.0
        %1788 = vmatpush2.msra.mxu0 0.0
        %1789 = vmatprep.subr.mxu0 0.0
        %1790 = vmatpush2.msra.mxu0 0.0
        %1791 = vmatprep.subr.mxu0 0.0
        %1792 = vmatpush2.msra.mxu0 0.0
        %1793 = vmatprep.subr.mxu0 0.0
        %1794 = vmatpush2.msra.mxu0 0.0
        %1795 = vmatprep.subr.mxu0 0.0
        %1796 = vmatpush2.msra.mxu0 0.0
        %1797 = vmatprep.mubr.f32.mxu0 0.0
        %1798 = vmatmul.mubr.f32.gmra.mxu0 %v1731
        %v1799 = vpop.f32.mrf.mxu0
        %v1800 = vadd.f32 0.0, %v1799
        %v1801 = vpop.f32.mrf.mxu0
        %1802 = vdwg.mxu0
        %v1804 = vsel %vm1300, %v1655, 0
        %1806 = vmatprep.subr.mxu0 0.0
        %1807 = vmatpush1.msra.mxu0 0.0
        %1808 = vmatprep.subr.mxu0 0.0
        %1809 = vmatpush1.msra.mxu0 0.0
        %1810 = vmatprep.subr.mxu0 0.0
        %1811 = vmatpush1.msra.mxu0 0.0
        %1812 = vmatprep.subr.mxu0 0.0
        %1813 = vmatpush1.msra.mxu0 0.0
        %1814 = vmatprep.subr.mxu0 0.0
        %1815 = vmatpush1.msra.mxu0 0.0
        %1816 = vmatprep.subr.mxu0 0.0
        %1817 = vmatpush1.msra.mxu0 0.0
        %1818 = vmatprep.subr.mxu0 0.0
        %1819 = vmatpush1.msra.mxu0 0.0
        %1820 = vmatprep.subr.mxu0 0.0
        %1821 = vmatpush1.msra.mxu0 0.0
        %1822 = vmatprep.subr.mxu0 0.0
        %1823 = vmatpush1.msra.mxu0 0.0
        %1824 = vmatprep.subr.mxu0 0.0
        %1825 = vmatpush1.msra.mxu0 0.0
        %1826 = vmatprep.subr.mxu0 0.0
        %1827 = vmatpush1.msra.mxu0 0.0
        %1828 = vmatprep.subr.mxu0 0.0
        %1829 = vmatpush1.msra.mxu0 0.0
        %1830 = vmatprep.subr.mxu0 0.0
        %1831 = vmatpush1.msra.mxu0 0.0
        %1832 = vmatprep.subr.mxu0 0.0
        %1833 = vmatpush1.msra.mxu0 0.0
        %1834 = vmatprep.subr.mxu0 0.0
        %1835 = vmatpush1.msra.mxu0 0.0
        %1836 = vmatprep.subr.mxu0 0.0
        %1837 = vmatpush1.msra.mxu0 %v1227
        %1838 = vmatprep.subr.mxu0 0.0
        %1839 = vmatpush2.msra.mxu0 0.0
        %1840 = vmatprep.subr.mxu0 0.0
        %1841 = vmatpush2.msra.mxu0 0.0
        %1842 = vmatprep.subr.mxu0 0.0
        %1843 = vmatpush2.msra.mxu0 0.0
        %1844 = vmatprep.subr.mxu0 0.0
        %1845 = vmatpush2.msra.mxu0 0.0
        %1846 = vmatprep.subr.mxu0 0.0
        %1847 = vmatpush2.msra.mxu0 0.0
        %1848 = vmatprep.subr.mxu0 0.0
        %1849 = vmatpush2.msra.mxu0 0.0
        %1850 = vmatprep.subr.mxu0 0.0
        %1851 = vmatpush2.msra.mxu0 0.0
        %1852 = vmatprep.subr.mxu0 0.0
        %1853 = vmatpush2.msra.mxu0 0.0
        %1854 = vmatprep.subr.mxu0 0.0
        %1855 = vmatpush2.msra.mxu0 0.0
        %1856 = vmatprep.subr.mxu0 0.0
        %1857 = vmatpush2.msra.mxu0 0.0
        %1858 = vmatprep.subr.mxu0 0.0
        %1859 = vmatpush2.msra.mxu0 0.0
        %1860 = vmatprep.subr.mxu0 0.0
        %1861 = vmatpush2.msra.mxu0 0.0
        %1862 = vmatprep.subr.mxu0 0.0
        %1863 = vmatpush2.msra.mxu0 0.0
        %1864 = vmatprep.subr.mxu0 0.0
        %1865 = vmatpush2.msra.mxu0 0.0
        %1866 = vmatprep.subr.mxu0 0.0
        %1867 = vmatpush2.msra.mxu0 0.0
        %1868 = vmatprep.subr.mxu0 0.0
        %1869 = vmatpush2.msra.mxu0 0.0
        %1870 = vmatprep.mubr.f32.mxu0 0.0
        %1871 = vmatmul.mubr.f32.gmra.mxu0 %v1804
        %v1872 = vpop.f32.mrf.mxu0
        %v1873 = vadd.f32 0.0, %v1872
        %v1874 = vpop.f32.mrf.mxu0
        %1875 = vdwg.mxu0
        %v1877 = vsel %vm1300, %v1656, 0
        %1879 = vmatprep.subr.mxu0 0.0
        %1880 = vmatpush1.msra.mxu0 0.0
        %1881 = vmatprep.subr.mxu0 0.0
        %1882 = vmatpush1.msra.mxu0 0.0
        %1883 = vmatprep.subr.mxu0 0.0
        %1884 = vmatpush1.msra.mxu0 0.0
        %1885 = vmatprep.subr.mxu0 0.0
        %1886 = vmatpush1.msra.mxu0 0.0
        %1887 = vmatprep.subr.mxu0 0.0
        %1888 = vmatpush1.msra.mxu0 0.0
        %1889 = vmatprep.subr.mxu0 0.0
        %1890 = vmatpush1.msra.mxu0 0.0
        %1891 = vmatprep.subr.mxu0 0.0
        %1892 = vmatpush1.msra.mxu0 0.0
        %1893 = vmatprep.subr.mxu0 0.0
        %1894 = vmatpush1.msra.mxu0 0.0
        %1895 = vmatprep.subr.mxu0 0.0
        %1896 = vmatpush1.msra.mxu0 0.0
        %1897 = vmatprep.subr.mxu0 0.0
        %1898 = vmatpush1.msra.mxu0 0.0
        %1899 = vmatprep.subr.mxu0 0.0
        %1900 = vmatpush1.msra.mxu0 0.0
        %1901 = vmatprep.subr.mxu0 0.0
        %1902 = vmatpush1.msra.mxu0 0.0
        %1903 = vmatprep.subr.mxu0 0.0
        %1904 = vmatpush1.msra.mxu0 0.0
        %1905 = vmatprep.subr.mxu0 0.0
        %1906 = vmatpush1.msra.mxu0 0.0
        %1907 = vmatprep.subr.mxu0 0.0
        %1908 = vmatpush1.msra.mxu0 0.0
        %1909 = vmatprep.subr.mxu0 0.0
        %1910 = vmatpush1.msra.mxu0 %v1297
        %1911 = vmatprep.subr.mxu0 0.0
        %1912 = vmatpush2.msra.mxu0 0.0
        %1913 = vmatprep.subr.mxu0 0.0
        %1914 = vmatpush2.msra.mxu0 0.0
        %1915 = vmatprep.subr.mxu0 0.0
        %1916 = vmatpush2.msra.mxu0 0.0
        %1917 = vmatprep.subr.mxu0 0.0
        %1918 = vmatpush2.msra.mxu0 0.0
        %1919 = vmatprep.subr.mxu0 0.0
        %1920 = vmatpush2.msra.mxu0 0.0
        %1921 = vmatprep.subr.mxu0 0.0
        %1922 = vmatpush2.msra.mxu0 0.0
        %1923 = vmatprep.subr.mxu0 0.0
        %1924 = vmatpush2.msra.mxu0 0.0
        %1925 = vmatprep.subr.mxu0 0.0
        %1926 = vmatpush2.msra.mxu0 0.0
        %1927 = vmatprep.subr.mxu0 0.0
        %1928 = vmatpush2.msra.mxu0 0.0
        %1929 = vmatprep.subr.mxu0 0.0
        %1930 = vmatpush2.msra.mxu0 0.0
        %1931 = vmatprep.subr.mxu0 0.0
        %1932 = vmatpush2.msra.mxu0 0.0
        %1933 = vmatprep.subr.mxu0 0.0
        %1934 = vmatpush2.msra.mxu0 0.0
        %1935 = vmatprep.subr.mxu0 0.0
        %1936 = vmatpush2.msra.mxu0 0.0
        %1937 = vmatprep.subr.mxu0 0.0
        %1938 = vmatpush2.msra.mxu0 0.0
        %1939 = vmatprep.subr.mxu0 0.0
        %1940 = vmatpush2.msra.mxu0 0.0
        %1941 = vmatprep.subr.mxu0 0.0
        %1942 = vmatpush2.msra.mxu0 0.0
        %1943 = vmatprep.mubr.f32.mxu0 0.0
        %1944 = vmatmul.mubr.f32.gmra.mxu0 %v1877
        %v1945 = vpop.f32.mrf.mxu0
        %v1946 = vadd.f32 0.0, %v1945
        %v1947 = vpop.f32.mrf.mxu0
        %1948 = vdwg.mxu0
        %v1950 = vsel %vm1300, %v1727, 0
        %1952 = vmatprep.subr.mxu0 0.0
        %1953 = vmatpush1.msra.mxu0 0.0
        %1954 = vmatprep.subr.mxu0 0.0
        %1955 = vmatpush1.msra.mxu0 0.0
        %1956 = vmatprep.subr.mxu0 0.0
        %1957 = vmatpush1.msra.mxu0 0.0
        %1958 = vmatprep.subr.mxu0 0.0
        %1959 = vmatpush1.msra.mxu0 0.0
        %1960 = vmatprep.subr.mxu0 0.0
        %1961 = vmatpush1.msra.mxu0 0.0
        %1962 = vmatprep.subr.mxu0 0.0
        %1963 = vmatpush1.msra.mxu0 0.0
        %1964 = vmatprep.subr.mxu0 0.0
        %1965 = vmatpush1.msra.mxu0 0.0
        %1966 = vmatprep.subr.mxu0 0.0
        %1967 = vmatpush1.msra.mxu0 0.0
        %1968 = vmatprep.subr.mxu0 0.0
        %1969 = vmatpush1.msra.mxu0 0.0
        %1970 = vmatprep.subr.mxu0 0.0
        %1971 = vmatpush1.msra.mxu0 0.0
        %1972 = vmatprep.subr.mxu0 0.0
        %1973 = vmatpush1.msra.mxu0 0.0
        %1974 = vmatprep.subr.mxu0 0.0
        %1975 = vmatpush1.msra.mxu0 0.0
        %1976 = vmatprep.subr.mxu0 0.0
        %1977 = vmatpush1.msra.mxu0 0.0
        %1978 = vmatprep.subr.mxu0 0.0
        %1979 = vmatpush1.msra.mxu0 0.0
        %1980 = vmatprep.subr.mxu0 0.0
        %1981 = vmatpush1.msra.mxu0 0.0
        %1982 = vmatprep.subr.mxu0 0.0
        %1983 = vmatpush1.msra.mxu0 %v376
        %1984 = vmatprep.subr.mxu0 0.0
        %1985 = vmatpush2.msra.mxu0 0.0
        %1986 = vmatprep.subr.mxu0 0.0
        %1987 = vmatpush2.msra.mxu0 0.0
        %1988 = vmatprep.subr.mxu0 0.0
        %1989 = vmatpush2.msra.mxu0 0.0
        %1990 = vmatprep.subr.mxu0 0.0
        %1991 = vmatpush2.msra.mxu0 0.0
        %1992 = vmatprep.subr.mxu0 0.0
        %1993 = vmatpush2.msra.mxu0 0.0
        %1994 = vmatprep.subr.mxu0 0.0
        %1995 = vmatpush2.msra.mxu0 0.0
        %1996 = vmatprep.subr.mxu0 0.0
        %1997 = vmatpush2.msra.mxu0 0.0
        %1998 = vmatprep.subr.mxu0 0.0
        %1999 = vmatpush2.msra.mxu0 0.0
        %2000 = vmatprep.subr.mxu0 0.0
        %2001 = vmatpush2.msra.mxu0 0.0
        %2002 = vmatprep.subr.mxu0 0.0
        %2003 = vmatpush2.msra.mxu0 0.0
        %2004 = vmatprep.subr.mxu0 0.0
        %2005 = vmatpush2.msra.mxu0 0.0
        %2006 = vmatprep.subr.mxu0 0.0
        %2007 = vmatpush2.msra.mxu0 0.0
        %2008 = vmatprep.subr.mxu0 0.0
        %2009 = vmatpush2.msra.mxu0 0.0
        %2010 = vmatprep.subr.mxu0 0.0
        %2011 = vmatpush2.msra.mxu0 0.0
        %2012 = vmatprep.subr.mxu0 0.0
        %2013 = vmatpush2.msra.mxu0 0.0
        %2014 = vmatprep.subr.mxu0 0.0
        %2015 = vmatpush2.msra.mxu0 0.0
        %2016 = vmatprep.mubr.f32.mxu0 0.0
        %2017 = vmatmul.mubr.f32.gmra.mxu0 %v1950
        %v2018 = vpop.f32.mrf.mxu0
        %v2019 = vadd.f32 0.0, %v2018
        %v2020 = vpop.f32.mrf.mxu0
        %2021 = vdwg.mxu0
        %v2023 = vsel %vm1300, %v1800, 0
        %2025 = vmatprep.subr.mxu0 0.0
        %2026 = vmatpush1.msra.mxu0 0.0
        %2027 = vmatprep.subr.mxu0 0.0
        %2028 = vmatpush1.msra.mxu0 0.0
        %2029 = vmatprep.subr.mxu0 0.0
        %2030 = vmatpush1.msra.mxu0 0.0
        %2031 = vmatprep.subr.mxu0 0.0
        %2032 = vmatpush1.msra.mxu0 0.0
        %2033 = vmatprep.subr.mxu0 0.0
        %2034 = vmatpush1.msra.mxu0 0.0
        %2035 = vmatprep.subr.mxu0 0.0
        %2036 = vmatpush1.msra.mxu0 0.0
        %2037 = vmatprep.subr.mxu0 0.0
        %2038 = vmatpush1.msra.mxu0 0.0
        %2039 = vmatprep.subr.mxu0 0.0
        %2040 = vmatpush1.msra.mxu0 0.0
        %2041 = vmatprep.subr.mxu0 0.0
        %2042 = vmatpush1.msra.mxu0 0.0
        %2043 = vmatprep.subr.mxu0 0.0
        %2044 = vmatpush1.msra.mxu0 0.0
        %2045 = vmatprep.subr.mxu0 0.0
        %2046 = vmatpush1.msra.mxu0 0.0
        %2047 = vmatprep.subr.mxu0 0.0
        %2048 = vmatpush1.msra.mxu0 0.0
        %2049 = vmatprep.subr.mxu0 0.0
        %2050 = vmatpush1.msra.mxu0 0.0
        %2051 = vmatprep.subr.mxu0 0.0
        %2052 = vmatpush1.msra.mxu0 0.0
        %2053 = vmatprep.subr.mxu0 0.0
        %2054 = vmatpush1.msra.mxu0 0.0
        %2055 = vmatprep.subr.mxu0 0.0
        %2056 = vmatpush1.msra.mxu0 %v377
        %2057 = vmatprep.subr.mxu0 0.0
        %2058 = vmatpush2.msra.mxu0 0.0
        %2059 = vmatprep.subr.mxu0 0.0
        %2060 = vmatpush2.msra.mxu0 0.0
        %2061 = vmatprep.subr.mxu0 0.0
        %2062 = vmatpush2.msra.mxu0 0.0
        %2063 = vmatprep.subr.mxu0 0.0
        %2064 = vmatpush2.msra.mxu0 0.0
        %2065 = vmatprep.subr.mxu0 0.0
        %2066 = vmatpush2.msra.mxu0 0.0
        %2067 = vmatprep.subr.mxu0 0.0
        %2068 = vmatpush2.msra.mxu0 0.0
        %2069 = vmatprep.subr.mxu0 0.0
        %2070 = vmatpush2.msra.mxu0 0.0
        %2071 = vmatprep.subr.mxu0 0.0
        %2072 = vmatpush2.msra.mxu0 0.0
        %2073 = vmatprep.subr.mxu0 0.0
        %2074 = vmatpush2.msra.mxu0 0.0
        %2075 = vmatprep.subr.mxu0 0.0
        %2076 = vmatpush2.msra.mxu0 0.0
        %2077 = vmatprep.subr.mxu0 0.0
        %2078 = vmatpush2.msra.mxu0 0.0
        %2079 = vmatprep.subr.mxu0 0.0
        %2080 = vmatpush2.msra.mxu0 0.0
        %2081 = vmatprep.subr.mxu0 0.0
        %2082 = vmatpush2.msra.mxu0 0.0
        %2083 = vmatprep.subr.mxu0 0.0
        %2084 = vmatpush2.msra.mxu0 0.0
        %2085 = vmatprep.subr.mxu0 0.0
        %2086 = vmatpush2.msra.mxu0 0.0
        %2087 = vmatprep.subr.mxu0 0.0
        %2088 = vmatpush2.msra.mxu0 0.0
        %2089 = vmatprep.mubr.f32.mxu0 0.0
        %2090 = vmatmul.mubr.f32.gmra.mxu0 %v2023
        %v2091 = vpop.f32.mrf.mxu0
        %v2092 = vadd.f32 0.0, %v2091
        %v2093 = vpop.f32.mrf.mxu0
        %2094 = vdwg.mxu0
        %v2096 = vsel %vm1300, %v1873, 0
        %2098 = vmatprep.subr.mxu0 0.0
        %2099 = vmatpush1.msra.mxu0 0.0
        %2100 = vmatprep.subr.mxu0 0.0
        %2101 = vmatpush1.msra.mxu0 0.0
        %2102 = vmatprep.subr.mxu0 0.0
        %2103 = vmatpush1.msra.mxu0 0.0
        %2104 = vmatprep.subr.mxu0 0.0
        %2105 = vmatpush1.msra.mxu0 0.0
        %2106 = vmatprep.subr.mxu0 0.0
        %2107 = vmatpush1.msra.mxu0 0.0
        %2108 = vmatprep.subr.mxu0 0.0
        %2109 = vmatpush1.msra.mxu0 0.0
        %2110 = vmatprep.subr.mxu0 0.0
        %2111 = vmatpush1.msra.mxu0 0.0
        %2112 = vmatprep.subr.mxu0 0.0
        %2113 = vmatpush1.msra.mxu0 0.0
        %2114 = vmatprep.subr.mxu0 0.0
        %2115 = vmatpush1.msra.mxu0 0.0
        %2116 = vmatprep.subr.mxu0 0.0
        %2117 = vmatpush1.msra.mxu0 0.0
        %2118 = vmatprep.subr.mxu0 0.0
        %2119 = vmatpush1.msra.mxu0 0.0
        %2120 = vmatprep.subr.mxu0 0.0
        %2121 = vmatpush1.msra.mxu0 0.0
        %2122 = vmatprep.subr.mxu0 0.0
        %2123 = vmatpush1.msra.mxu0 0.0
        %2124 = vmatprep.subr.mxu0 0.0
        %2125 = vmatpush1.msra.mxu0 0.0
        %2126 = vmatprep.subr.mxu0 0.0
        %2127 = vmatpush1.msra.mxu0 0.0
        %2128 = vmatprep.subr.mxu0 0.0
        %2129 = vmatpush1.msra.mxu0 %v378
        %2130 = vmatprep.subr.mxu0 0.0
        %2131 = vmatpush2.msra.mxu0 0.0
        %2132 = vmatprep.subr.mxu0 0.0
        %2133 = vmatpush2.msra.mxu0 0.0
        %2134 = vmatprep.subr.mxu0 0.0
        %2135 = vmatpush2.msra.mxu0 0.0
        %2136 = vmatprep.subr.mxu0 0.0
        %2137 = vmatpush2.msra.mxu0 0.0
        %2138 = vmatprep.subr.mxu0 0.0
        %2139 = vmatpush2.msra.mxu0 0.0
        %2140 = vmatprep.subr.mxu0 0.0
        %2141 = vmatpush2.msra.mxu0 0.0
        %2142 = vmatprep.subr.mxu0 0.0
        %2143 = vmatpush2.msra.mxu0 0.0
        %2144 = vmatprep.subr.mxu0 0.0
        %2145 = vmatpush2.msra.mxu0 0.0
        %2146 = vmatprep.subr.mxu0 0.0
        %2147 = vmatpush2.msra.mxu0 0.0
        %2148 = vmatprep.subr.mxu0 0.0
        %2149 = vmatpush2.msra.mxu0 0.0
        %2150 = vmatprep.subr.mxu0 0.0
        %2151 = vmatpush2.msra.mxu0 0.0
        %2152 = vmatprep.subr.mxu0 0.0
        %2153 = vmatpush2.msra.mxu0 0.0
        %2154 = vmatprep.subr.mxu0 0.0
        %2155 = vmatpush2.msra.mxu0 0.0
        %2156 = vmatprep.subr.mxu0 0.0
        %2157 = vmatpush2.msra.mxu0 0.0
        %2158 = vmatprep.subr.mxu0 0.0
        %2159 = vmatpush2.msra.mxu0 0.0
        %2160 = vmatprep.subr.mxu0 0.0
        %2161 = vmatpush2.msra.mxu0 0.0
        %2162 = vmatprep.mubr.f32.mxu0 0.0
        %2163 = vmatmul.mubr.f32.gmra.mxu0 %v2096
        %v2164 = vpop.f32.mrf.mxu0
        %v2165 = vadd.f32 0.0, %v2164
        %v2166 = vpop.f32.mrf.mxu0
        %2167 = vdwg.mxu0
        %v2169 = vsel %vm1300, %v1946, 0
        %2171 = vmatprep.subr.mxu0 0.0
        %2172 = vmatpush1.msra.mxu0 0.0
        %2173 = vmatprep.subr.mxu0 0.0
        %2174 = vmatpush1.msra.mxu0 0.0
        %2175 = vmatprep.subr.mxu0 0.0
        %2176 = vmatpush1.msra.mxu0 0.0
        %2177 = vmatprep.subr.mxu0 0.0
        %2178 = vmatpush1.msra.mxu0 0.0
        %2179 = vmatprep.subr.mxu0 0.0
        %2180 = vmatpush1.msra.mxu0 0.0
        %2181 = vmatprep.subr.mxu0 0.0
        %2182 = vmatpush1.msra.mxu0 0.0
        %2183 = vmatprep.subr.mxu0 0.0
        %2184 = vmatpush1.msra.mxu0 0.0
        %2185 = vmatprep.subr.mxu0 0.0
        %2186 = vmatpush1.msra.mxu0 0.0
        %2187 = vmatprep.subr.mxu0 0.0
        %2188 = vmatpush1.msra.mxu0 0.0
        %2189 = vmatprep.subr.mxu0 0.0
        %2190 = vmatpush1.msra.mxu0 0.0
        %2191 = vmatprep.subr.mxu0 0.0
        %2192 = vmatpush1.msra.mxu0 0.0
        %2193 = vmatprep.subr.mxu0 0.0
        %2194 = vmatpush1.msra.mxu0 0.0
        %2195 = vmatprep.subr.mxu0 0.0
        %2196 = vmatpush1.msra.mxu0 0.0
        %2197 = vmatprep.subr.mxu0 0.0
        %2198 = vmatpush1.msra.mxu0 0.0
        %2199 = vmatprep.subr.mxu0 0.0
        %2200 = vmatpush1.msra.mxu0 0.0
        %2201 = vmatprep.subr.mxu0 0.0
        %2202 = vmatpush1.msra.mxu0 %v379
        %2203 = vmatprep.subr.mxu0 0.0
        %2204 = vmatpush2.msra.mxu0 0.0
        %2205 = vmatprep.subr.mxu0 0.0
        %2206 = vmatpush2.msra.mxu0 0.0
        %2207 = vmatprep.subr.mxu0 0.0
        %2208 = vmatpush2.msra.mxu0 0.0
        %2209 = vmatprep.subr.mxu0 0.0
        %2210 = vmatpush2.msra.mxu0 0.0
        %2211 = vmatprep.subr.mxu0 0.0
        %2212 = vmatpush2.msra.mxu0 0.0
        %2213 = vmatprep.subr.mxu0 0.0
        %2214 = vmatpush2.msra.mxu0 0.0
        %2215 = vmatprep.subr.mxu0 0.0
        %2216 = vmatpush2.msra.mxu0 0.0
        %2217 = vmatprep.subr.mxu0 0.0
        %2218 = vmatpush2.msra.mxu0 0.0
        %2219 = vmatprep.subr.mxu0 0.0
        %2220 = vmatpush2.msra.mxu0 0.0
        %2221 = vmatprep.subr.mxu0 0.0
        %2222 = vmatpush2.msra.mxu0 0.0
        %2223 = vmatprep.subr.mxu0 0.0
        %2224 = vmatpush2.msra.mxu0 0.0
        %2225 = vmatprep.subr.mxu0 0.0
        %2226 = vmatpush2.msra.mxu0 0.0
        %2227 = vmatprep.subr.mxu0 0.0
        %2228 = vmatpush2.msra.mxu0 0.0
        %2229 = vmatprep.subr.mxu0 0.0
        %2230 = vmatpush2.msra.mxu0 0.0
        %2231 = vmatprep.subr.mxu0 0.0
        %2232 = vmatpush2.msra.mxu0 0.0
        %2233 = vmatprep.subr.mxu0 0.0
        %2234 = vmatpush2.msra.mxu0 0.0
        %2235 = vmatprep.mubr.f32.mxu0 0.0
        %2236 = vmatmul.mubr.f32.gmra.mxu0 %v2169
        %v2237 = vpop.f32.mrf.mxu0
        %v2238 = vadd.f32 0.0, %v2237
        %v2239 = vpop.f32.mrf.mxu0
        %2240 = vdwg.mxu0
        %v2241 = vsel %vm405, %v2019, 0.0
        %v2242 = vsel %vm405, %v2092, 0.0
        %v2243 = vadd.f32 %v2241, %v2242
        %v2244 = vsel %vm405, %v2165, 0.0
        %v2245 = vadd.f32 %v2243, %v2244
        %v2246 = vsel %vm405, %v2238, 0.0
        %v2247 = vadd.f32 %v2245, %v2246
        %v2248 = vlaneseq
        %v2249 = vshrl.u32 %v2248, 7
        %v2250 = vsub.s32 0, %v2249
        %v2251 = vrot.slane %v380, %v2250
        %v2252 = vadd.f32 %v2247, %v2251
        %v2253 = vadd.f32 %v2252, %v308
        %v2254 = vsel %vm405, %v2253, 0.0
        %2255 = vadd.xlane.f32.xlu0 %v2254
        %v2256 = vpop.xlane.xlu0 %2255
        %v2257 = vrcp.pop 32.0
        %v2258 = vmul.f32 %v2256, %v2257
        %v2259 = vsub.f32 %v2253, %v2258
        %v2260 = vmul.f32 %v2259, %v2259
        %v2261 = vsel %vm405, %v2260, 0.0
        %2262 = vadd.xlane.f32.xlu0 %v2261
        %v2263 = vpop.xlane.xlu0 %2262
        %v2264 = vmul.f32 %v2263, %v2257
        %v2265 = vadd.f32 %v2264, 1e-05
        %v2266 = vrsqrt.pop %v2265
        %v2267 = vmul.f32 %v2259, %v2266
        %v2268 = vlaneseq
        %v2269 = vshrl.u32 %v2268, 7
        %v2270 = vsub.s32 1, %v2269
        %v2271 = vrot.slane %v380, %v2270
        %v2272 = vmul.f32 %v2271, %v2267
        %v2273 = vlaneseq
        %v2274 = vshrl.u32 %v2273, 7
        %v2275 = vsub.s32 2, %v2274
        %v2276 = vrot.slane %v380, %v2275
        %v2277 = vadd.f32 %v2272, %v2276
        %s2278 = scalar_lea.vmem %s3, 384
        %v2279 = vld [vmem:[%s2278] sm:$0xff]
        %v2280 = vld [vmem:[%s2278 + $0x8] sm:$0xff]
        %v2281 = vld [vmem:[%s2278 + $0x10] sm:$0xff]
        %v2282 = vld [vmem:[%s2278 + $0x18] sm:$0xff]
        %v2283 = vld [vmem:[%s2278 + $0x20] sm:$0xff]
        %v2284 = vld [vmem:[%s2278 + $0x28] sm:$0xff]
        %v2285 = vld [vmem:[%s2278 + $0x30] sm:$0xff]
        %v2286 = vld [vmem:[%s2278 + $0x38] sm:$0xff]
        %v2287 = vld [vmem:[%s2278 + $0x40] sm:$0xff]
        %v2288 = vld [vmem:[%s2278 + $0x48] sm:$0xff]
        %v2289 = vld [vmem:[%s2278 + $0x50] sm:$0xff]
        %v2290 = vld [vmem:[%s2278 + $0x58] sm:$0xff]
        %v2291 = vld [vmem:[%s2278 + $0x60] sm:$0xff]
        %v2292 = vld [vmem:[%s2278 + $0x68] sm:$0xff]
        %v2293 = vld [vmem:[%s2278 + $0x70] sm:$0xff]
        %v2294 = vld [vmem:[%s2278 + $0x78] sm:$0xff]
        %s2295 = scalar_lea.vmem %s3, 512
        %v2296 = vld [vmem:[%s2295] sm:$0xff]
        %v2297 = vld [vmem:[%s2295 + $0x8] sm:$0xff]
        %v2298 = vld [vmem:[%s2295 + $0x10] sm:$0xff]
        %v2299 = vld [vmem:[%s2295 + $0x18] sm:$0xff]
        %v2300 = vld [vmem:[%s2295 + $0x20] sm:$0xff]
        %v2301 = vld [vmem:[%s2295 + $0x28] sm:$0xff]
        %v2302 = vld [vmem:[%s2295 + $0x30] sm:$0xff]
        %v2303 = vld [vmem:[%s2295 + $0x38] sm:$0xff]
        %v2304 = vld [vmem:[%s2295 + $0x40] sm:$0xff]
        %v2305 = vld [vmem:[%s2295 + $0x48] sm:$0xff]
        %v2306 = vld [vmem:[%s2295 + $0x50] sm:$0xff]
        %v2307 = vld [vmem:[%s2295 + $0x58] sm:$0xff]
        %v2308 = vld [vmem:[%s2295 + $0x60] sm:$0xff]
        %v2309 = vld [vmem:[%s2295 + $0x68] sm:$0xff]
        %v2310 = vld [vmem:[%s2295 + $0x70] sm:$0xff]
        %v2311 = vld [vmem:[%s2295 + $0x78] sm:$0xff]
        %s2312 = scalar_lea.vmem %s3, 640
        %v2313 = vld [vmem:[%s2312] sm:$0xff]
        %v2314 = vld [vmem:[%s2312 + $0x8] sm:$0xff]
        %v2315 = vld [vmem:[%s2312 + $0x10] sm:$0xff]
        %v2316 = vld [vmem:[%s2312 + $0x18] sm:$0xff]
        %v2317 = vld [vmem:[%s2312 + $0x20] sm:$0xff]
        %v2318 = vld [vmem:[%s2312 + $0x28] sm:$0xff]
        %v2319 = vld [vmem:[%s2312 + $0x30] sm:$0xff]
        %v2320 = vld [vmem:[%s2312 + $0x38] sm:$0xff]
        %v2321 = vld [vmem:[%s2312 + $0x40] sm:$0xff]
        %v2322 = vld [vmem:[%s2312 + $0x48] sm:$0xff]
        %v2323 = vld [vmem:[%s2312 + $0x50] sm:$0xff]
        %v2324 = vld [vmem:[%s2312 + $0x58] sm:$0xff]
        %v2325 = vld [vmem:[%s2312 + $0x60] sm:$0xff]
        %v2326 = vld [vmem:[%s2312 + $0x68] sm:$0xff]
        %v2327 = vld [vmem:[%s2312 + $0x70] sm:$0xff]
        %v2328 = vld [vmem:[%s2312 + $0x78] sm:$0xff]
        %s2329 = scalar_lea.vmem %s5, 12
        %v2330 = vld [vmem:[%s2329] sm:$0x1]
        %v2331 = vld [vmem:[%s2329 + $0x1] sm:$0x1]
        %v2332 = vld [vmem:[%s2329 + $0x2] sm:$0x1]
        %v2333 = vld [vmem:[%s2329 + $0x3] sm:$0x1]
        %s2334 = scalar_lea.vmem %s5, 16
        %v2335 = vld [vmem:[%s2334] sm:$0x1]
        %v2336 = vld [vmem:[%s2334 + $0x1] sm:$0x1]
        %v2337 = vld [vmem:[%s2334 + $0x2] sm:$0x1]
        %v2338 = vld [vmem:[%s2334 + $0x3] sm:$0x1]
        %s2339 = scalar_lea.vmem %s5, 20
        %v2340 = vld [vmem:[%s2339] sm:$0x1]
        %v2341 = vld [vmem:[%s2339 + $0x1] sm:$0x1]
        %v2342 = vld [vmem:[%s2339 + $0x2] sm:$0x1]
        %v2343 = vld [vmem:[%s2339 + $0x3] sm:$0x1]
        %s2344 = scalar_lea.vmem %s4, 32
        %v2345 = vld [vmem:[%s2344] sm:$0xff]
        %v2346 = vld [vmem:[%s2344 + $0x8] sm:$0xff]
        %v2347 = vld [vmem:[%s2344 + $0x10] sm:$0xff]
        %v2348 = vld [vmem:[%s2344 + $0x18] sm:$0xff]
        %s2349 = scalar_lea.vmem %s6, 8
        %v2350 = vld [vmem:[%s2349] sm:$0xff]
        %v2355 = vlaneseq
        %v2356 = vshrl.u32 %v2355, 7
        %v2357 = vsub.s32 0, %v2356
        %v2358 = vrot.slane %v2330, %v2357
        %v2359 = vlaneseq
        %v2360 = vshrl.u32 %v2359, 7
        %v2361 = vsub.s32 0, %v2360
        %v2362 = vrot.slane %v2331, %v2361
        %v2363 = vlaneseq
        %v2364 = vshrl.u32 %v2363, 7
        %v2365 = vsub.s32 0, %v2364
        %v2366 = vrot.slane %v2332, %v2365
        %v2367 = vlaneseq
        %v2368 = vshrl.u32 %v2367, 7
        %v2369 = vsub.s32 0, %v2368
        %v2370 = vrot.slane %v2333, %v2369
        %v2376 = vsel %vm405, %v2277, 0
        %2378 = vmatprep.subr.mxu0 0.0
        %2379 = vmatpush1.msra.mxu0 0.0
        %2380 = vmatprep.subr.mxu0 0.0
        %2381 = vmatpush1.msra.mxu0 0.0
        %2382 = vmatprep.subr.mxu0 0.0
        %2383 = vmatpush1.msra.mxu0 0.0
        %2384 = vmatprep.subr.mxu0 0.0
        %2385 = vmatpush1.msra.mxu0 0.0
        %2386 = vmatprep.subr.mxu0 0.0
        %2387 = vmatpush1.msra.mxu0 0.0
        %2388 = vmatprep.subr.mxu0 0.0
        %2389 = vmatpush1.msra.mxu0 0.0
        %2390 = vmatprep.subr.mxu0 0.0
        %2391 = vmatpush1.msra.mxu0 0.0
        %2392 = vmatprep.subr.mxu0 0.0
        %2393 = vmatpush1.msra.mxu0 0.0
        %2394 = vmatprep.subr.mxu0 0.0
        %2395 = vmatpush1.msra.mxu0 0.0
        %2396 = vmatprep.subr.mxu0 0.0
        %2397 = vmatpush1.msra.mxu0 0.0
        %2398 = vmatprep.subr.mxu0 0.0
        %2399 = vmatpush1.msra.mxu0 0.0
        %2400 = vmatprep.subr.mxu0 0.0
        %2401 = vmatpush1.msra.mxu0 0.0
        %2402 = vmatprep.subr.mxu0 0.0
        %2403 = vmatpush1.msra.mxu0 %v2282
        %2404 = vmatprep.subr.mxu0 0.0
        %2405 = vmatpush1.msra.mxu0 %v2281
        %2406 = vmatprep.subr.mxu0 0.0
        %2407 = vmatpush1.msra.mxu0 %v2280
        %2408 = vmatprep.subr.mxu0 0.0
        %2409 = vmatpush1.msra.mxu0 %v2279
        %2410 = vmatprep.subr.mxu0 0.0
        %2411 = vmatpush2.msra.mxu0 0.0
        %2412 = vmatprep.subr.mxu0 0.0
        %2413 = vmatpush2.msra.mxu0 0.0
        %2414 = vmatprep.subr.mxu0 0.0
        %2415 = vmatpush2.msra.mxu0 0.0
        %2416 = vmatprep.subr.mxu0 0.0
        %2417 = vmatpush2.msra.mxu0 0.0
        %2418 = vmatprep.subr.mxu0 0.0
        %2419 = vmatpush2.msra.mxu0 0.0
        %2420 = vmatprep.subr.mxu0 0.0
        %2421 = vmatpush2.msra.mxu0 0.0
        %2422 = vmatprep.subr.mxu0 0.0
        %2423 = vmatpush2.msra.mxu0 0.0
        %2424 = vmatprep.subr.mxu0 0.0
        %2425 = vmatpush2.msra.mxu0 0.0
        %2426 = vmatprep.subr.mxu0 0.0
        %2427 = vmatpush2.msra.mxu0 0.0
        %2428 = vmatprep.subr.mxu0 0.0
        %2429 = vmatpush2.msra.mxu0 0.0
        %2430 = vmatprep.subr.mxu0 0.0
        %2431 = vmatpush2.msra.mxu0 0.0
        %2432 = vmatprep.subr.mxu0 0.0
        %2433 = vmatpush2.msra.mxu0 0.0
        %2434 = vmatprep.subr.mxu0 0.0
        %2435 = vmatpush2.msra.mxu0 0.0
        %2436 = vmatprep.subr.mxu0 0.0
        %2437 = vmatpush2.msra.mxu0 0.0
        %2438 = vmatprep.subr.mxu0 0.0
        %2439 = vmatpush2.msra.mxu0 0.0
        %2440 = vmatprep.subr.mxu0 0.0
        %2441 = vmatpush2.msra.mxu0 0.0
        %2442 = vmatprep.mubr.f32.mxu0 0.0
        %2443 = vmatmul.mubr.f32.gmra.mxu0 %v2376
        %v2444 = vpop.f32.mrf.mxu0
        %v2445 = vadd.f32 %v2358, %v2444
        %v2446 = vpop.f32.mrf.mxu0
        %2447 = vdwg.mxu0
        %2448 = vmatprep.subr.mxu0 0.0
        %2449 = vmatpush1.msra.mxu0 0.0
        %2450 = vmatprep.subr.mxu0 0.0
        %2451 = vmatpush1.msra.mxu0 0.0
        %2452 = vmatprep.subr.mxu0 0.0
        %2453 = vmatpush1.msra.mxu0 0.0
        %2454 = vmatprep.subr.mxu0 0.0
        %2455 = vmatpush1.msra.mxu0 0.0
        %2456 = vmatprep.subr.mxu0 0.0
        %2457 = vmatpush1.msra.mxu0 0.0
        %2458 = vmatprep.subr.mxu0 0.0
        %2459 = vmatpush1.msra.mxu0 0.0
        %2460 = vmatprep.subr.mxu0 0.0
        %2461 = vmatpush1.msra.mxu0 0.0
        %2462 = vmatprep.subr.mxu0 0.0
        %2463 = vmatpush1.msra.mxu0 0.0
        %2464 = vmatprep.subr.mxu0 0.0
        %2465 = vmatpush1.msra.mxu0 0.0
        %2466 = vmatprep.subr.mxu0 0.0
        %2467 = vmatpush1.msra.mxu0 0.0
        %2468 = vmatprep.subr.mxu0 0.0
        %2469 = vmatpush1.msra.mxu0 0.0
        %2470 = vmatprep.subr.mxu0 0.0
        %2471 = vmatpush1.msra.mxu0 0.0
        %2472 = vmatprep.subr.mxu0 0.0
        %2473 = vmatpush1.msra.mxu0 %v2286
        %2474 = vmatprep.subr.mxu0 0.0
        %2475 = vmatpush1.msra.mxu0 %v2285
        %2476 = vmatprep.subr.mxu0 0.0
        %2477 = vmatpush1.msra.mxu0 %v2284
        %2478 = vmatprep.subr.mxu0 0.0
        %2479 = vmatpush1.msra.mxu0 %v2283
        %2480 = vmatprep.subr.mxu0 0.0
        %2481 = vmatpush2.msra.mxu0 0.0
        %2482 = vmatprep.subr.mxu0 0.0
        %2483 = vmatpush2.msra.mxu0 0.0
        %2484 = vmatprep.subr.mxu0 0.0
        %2485 = vmatpush2.msra.mxu0 0.0
        %2486 = vmatprep.subr.mxu0 0.0
        %2487 = vmatpush2.msra.mxu0 0.0
        %2488 = vmatprep.subr.mxu0 0.0
        %2489 = vmatpush2.msra.mxu0 0.0
        %2490 = vmatprep.subr.mxu0 0.0
        %2491 = vmatpush2.msra.mxu0 0.0
        %2492 = vmatprep.subr.mxu0 0.0
        %2493 = vmatpush2.msra.mxu0 0.0
        %2494 = vmatprep.subr.mxu0 0.0
        %2495 = vmatpush2.msra.mxu0 0.0
        %2496 = vmatprep.subr.mxu0 0.0
        %2497 = vmatpush2.msra.mxu0 0.0
        %2498 = vmatprep.subr.mxu0 0.0
        %2499 = vmatpush2.msra.mxu0 0.0
        %2500 = vmatprep.subr.mxu0 0.0
        %2501 = vmatpush2.msra.mxu0 0.0
        %2502 = vmatprep.subr.mxu0 0.0
        %2503 = vmatpush2.msra.mxu0 0.0
        %2504 = vmatprep.subr.mxu0 0.0
        %2505 = vmatpush2.msra.mxu0 0.0
        %2506 = vmatprep.subr.mxu0 0.0
        %2507 = vmatpush2.msra.mxu0 0.0
        %2508 = vmatprep.subr.mxu0 0.0
        %2509 = vmatpush2.msra.mxu0 0.0
        %2510 = vmatprep.subr.mxu0 0.0
        %2511 = vmatpush2.msra.mxu0 0.0
        %2512 = vmatprep.mubr.f32.mxu0 0.0
        %2513 = vmatmul.mubr.f32.gmra.mxu0 %v2376
        %v2514 = vpop.f32.mrf.mxu0
        %v2515 = vadd.f32 %v2362, %v2514
        %v2516 = vpop.f32.mrf.mxu0
        %2517 = vdwg.mxu0
        %2518 = vmatprep.subr.mxu0 0.0
        %2519 = vmatpush1.msra.mxu0 0.0
        %2520 = vmatprep.subr.mxu0 0.0
        %2521 = vmatpush1.msra.mxu0 0.0
        %2522 = vmatprep.subr.mxu0 0.0
        %2523 = vmatpush1.msra.mxu0 0.0
        %2524 = vmatprep.subr.mxu0 0.0
        %2525 = vmatpush1.msra.mxu0 0.0
        %2526 = vmatprep.subr.mxu0 0.0
        %2527 = vmatpush1.msra.mxu0 0.0
        %2528 = vmatprep.subr.mxu0 0.0
        %2529 = vmatpush1.msra.mxu0 0.0
        %2530 = vmatprep.subr.mxu0 0.0
        %2531 = vmatpush1.msra.mxu0 0.0
        %2532 = vmatprep.subr.mxu0 0.0
        %2533 = vmatpush1.msra.mxu0 0.0
        %2534 = vmatprep.subr.mxu0 0.0
        %2535 = vmatpush1.msra.mxu0 0.0
        %2536 = vmatprep.subr.mxu0 0.0
        %2537 = vmatpush1.msra.mxu0 0.0
        %2538 = vmatprep.subr.mxu0 0.0
        %2539 = vmatpush1.msra.mxu0 0.0
        %2540 = vmatprep.subr.mxu0 0.0
        %2541 = vmatpush1.msra.mxu0 0.0
        %2542 = vmatprep.subr.mxu0 0.0
        %2543 = vmatpush1.msra.mxu0 %v2290
        %2544 = vmatprep.subr.mxu0 0.0
        %2545 = vmatpush1.msra.mxu0 %v2289
        %2546 = vmatprep.subr.mxu0 0.0
        %2547 = vmatpush1.msra.mxu0 %v2288
        %2548 = vmatprep.subr.mxu0 0.0
        %2549 = vmatpush1.msra.mxu0 %v2287
        %2550 = vmatprep.subr.mxu0 0.0
        %2551 = vmatpush2.msra.mxu0 0.0
        %2552 = vmatprep.subr.mxu0 0.0
        %2553 = vmatpush2.msra.mxu0 0.0
        %2554 = vmatprep.subr.mxu0 0.0
        %2555 = vmatpush2.msra.mxu0 0.0
        %2556 = vmatprep.subr.mxu0 0.0
        %2557 = vmatpush2.msra.mxu0 0.0
        %2558 = vmatprep.subr.mxu0 0.0
        %2559 = vmatpush2.msra.mxu0 0.0
        %2560 = vmatprep.subr.mxu0 0.0
        %2561 = vmatpush2.msra.mxu0 0.0
        %2562 = vmatprep.subr.mxu0 0.0
        %2563 = vmatpush2.msra.mxu0 0.0
        %2564 = vmatprep.subr.mxu0 0.0
        %2565 = vmatpush2.msra.mxu0 0.0
        %2566 = vmatprep.subr.mxu0 0.0
        %2567 = vmatpush2.msra.mxu0 0.0
        %2568 = vmatprep.subr.mxu0 0.0
        %2569 = vmatpush2.msra.mxu0 0.0
        %2570 = vmatprep.subr.mxu0 0.0
        %2571 = vmatpush2.msra.mxu0 0.0
        %2572 = vmatprep.subr.mxu0 0.0
        %2573 = vmatpush2.msra.mxu0 0.0
        %2574 = vmatprep.subr.mxu0 0.0
        %2575 = vmatpush2.msra.mxu0 0.0
        %2576 = vmatprep.subr.mxu0 0.0
        %2577 = vmatpush2.msra.mxu0 0.0
        %2578 = vmatprep.subr.mxu0 0.0
        %2579 = vmatpush2.msra.mxu0 0.0
        %2580 = vmatprep.subr.mxu0 0.0
        %2581 = vmatpush2.msra.mxu0 0.0
        %2582 = vmatprep.mubr.f32.mxu0 0.0
        %2583 = vmatmul.mubr.f32.gmra.mxu0 %v2376
        %v2584 = vpop.f32.mrf.mxu0
        %v2585 = vadd.f32 %v2366, %v2584
        %v2586 = vpop.f32.mrf.mxu0
        %2587 = vdwg.mxu0
        %2588 = vmatprep.subr.mxu0 0.0
        %2589 = vmatpush1.msra.mxu0 0.0
        %2590 = vmatprep.subr.mxu0 0.0
        %2591 = vmatpush1.msra.mxu0 0.0
        %2592 = vmatprep.subr.mxu0 0.0
        %2593 = vmatpush1.msra.mxu0 0.0
        %2594 = vmatprep.subr.mxu0 0.0
        %2595 = vmatpush1.msra.mxu0 0.0
        %2596 = vmatprep.subr.mxu0 0.0
        %2597 = vmatpush1.msra.mxu0 0.0
        %2598 = vmatprep.subr.mxu0 0.0
        %2599 = vmatpush1.msra.mxu0 0.0
        %2600 = vmatprep.subr.mxu0 0.0
        %2601 = vmatpush1.msra.mxu0 0.0
        %2602 = vmatprep.subr.mxu0 0.0
        %2603 = vmatpush1.msra.mxu0 0.0
        %2604 = vmatprep.subr.mxu0 0.0
        %2605 = vmatpush1.msra.mxu0 0.0
        %2606 = vmatprep.subr.mxu0 0.0
        %2607 = vmatpush1.msra.mxu0 0.0
        %2608 = vmatprep.subr.mxu0 0.0
        %2609 = vmatpush1.msra.mxu0 0.0
        %2610 = vmatprep.subr.mxu0 0.0
        %2611 = vmatpush1.msra.mxu0 0.0
        %2612 = vmatprep.subr.mxu0 0.0
        %2613 = vmatpush1.msra.mxu0 %v2294
        %2614 = vmatprep.subr.mxu0 0.0
        %2615 = vmatpush1.msra.mxu0 %v2293
        %2616 = vmatprep.subr.mxu0 0.0
        %2617 = vmatpush1.msra.mxu0 %v2292
        %2618 = vmatprep.subr.mxu0 0.0
        %2619 = vmatpush1.msra.mxu0 %v2291
        %2620 = vmatprep.subr.mxu0 0.0
        %2621 = vmatpush2.msra.mxu0 0.0
        %2622 = vmatprep.subr.mxu0 0.0
        %2623 = vmatpush2.msra.mxu0 0.0
        %2624 = vmatprep.subr.mxu0 0.0
        %2625 = vmatpush2.msra.mxu0 0.0
        %2626 = vmatprep.subr.mxu0 0.0
        %2627 = vmatpush2.msra.mxu0 0.0
        %2628 = vmatprep.subr.mxu0 0.0
        %2629 = vmatpush2.msra.mxu0 0.0
        %2630 = vmatprep.subr.mxu0 0.0
        %2631 = vmatpush2.msra.mxu0 0.0
        %2632 = vmatprep.subr.mxu0 0.0
        %2633 = vmatpush2.msra.mxu0 0.0
        %2634 = vmatprep.subr.mxu0 0.0
        %2635 = vmatpush2.msra.mxu0 0.0
        %2636 = vmatprep.subr.mxu0 0.0
        %2637 = vmatpush2.msra.mxu0 0.0
        %2638 = vmatprep.subr.mxu0 0.0
        %2639 = vmatpush2.msra.mxu0 0.0
        %2640 = vmatprep.subr.mxu0 0.0
        %2641 = vmatpush2.msra.mxu0 0.0
        %2642 = vmatprep.subr.mxu0 0.0
        %2643 = vmatpush2.msra.mxu0 0.0
        %2644 = vmatprep.subr.mxu0 0.0
        %2645 = vmatpush2.msra.mxu0 0.0
        %2646 = vmatprep.subr.mxu0 0.0
        %2647 = vmatpush2.msra.mxu0 0.0
        %2648 = vmatprep.subr.mxu0 0.0
        %2649 = vmatpush2.msra.mxu0 0.0
        %2650 = vmatprep.subr.mxu0 0.0
        %2651 = vmatpush2.msra.mxu0 0.0
        %2652 = vmatprep.mubr.f32.mxu0 0.0
        %2653 = vmatmul.mubr.f32.gmra.mxu0 %v2376
        %v2654 = vpop.f32.mrf.mxu0
        %v2655 = vadd.f32 %v2370, %v2654
        %v2656 = vpop.f32.mrf.mxu0
        %2657 = vdwg.mxu0
        %v2662 = vlaneseq
        %v2663 = vshrl.u32 %v2662, 7
        %v2664 = vsub.s32 0, %v2663
        %v2665 = vrot.slane %v2335, %v2664
        %v2666 = vlaneseq
        %v2667 = vshrl.u32 %v2666, 7
        %v2668 = vsub.s32 0, %v2667
        %v2669 = vrot.slane %v2336, %v2668
        %v2670 = vlaneseq
        %v2671 = vshrl.u32 %v2670, 7
        %v2672 = vsub.s32 0, %v2671
        %v2673 = vrot.slane %v2337, %v2672
        %v2674 = vlaneseq
        %v2675 = vshrl.u32 %v2674, 7
        %v2676 = vsub.s32 0, %v2675
        %v2677 = vrot.slane %v2338, %v2676
        %2682 = vmatprep.subr.mxu0 0.0
        %2683 = vmatpush1.msra.mxu0 0.0
        %2684 = vmatprep.subr.mxu0 0.0
        %2685 = vmatpush1.msra.mxu0 0.0
        %2686 = vmatprep.subr.mxu0 0.0
        %2687 = vmatpush1.msra.mxu0 0.0
        %2688 = vmatprep.subr.mxu0 0.0
        %2689 = vmatpush1.msra.mxu0 0.0
        %2690 = vmatprep.subr.mxu0 0.0
        %2691 = vmatpush1.msra.mxu0 0.0
        %2692 = vmatprep.subr.mxu0 0.0
        %2693 = vmatpush1.msra.mxu0 0.0
        %2694 = vmatprep.subr.mxu0 0.0
        %2695 = vmatpush1.msra.mxu0 0.0
        %2696 = vmatprep.subr.mxu0 0.0
        %2697 = vmatpush1.msra.mxu0 0.0
        %2698 = vmatprep.subr.mxu0 0.0
        %2699 = vmatpush1.msra.mxu0 0.0
        %2700 = vmatprep.subr.mxu0 0.0
        %2701 = vmatpush1.msra.mxu0 0.0
        %2702 = vmatprep.subr.mxu0 0.0
        %2703 = vmatpush1.msra.mxu0 0.0
        %2704 = vmatprep.subr.mxu0 0.0
        %2705 = vmatpush1.msra.mxu0 0.0
        %2706 = vmatprep.subr.mxu0 0.0
        %2707 = vmatpush1.msra.mxu0 %v2299
        %2708 = vmatprep.subr.mxu0 0.0
        %2709 = vmatpush1.msra.mxu0 %v2298
        %2710 = vmatprep.subr.mxu0 0.0
        %2711 = vmatpush1.msra.mxu0 %v2297
        %2712 = vmatprep.subr.mxu0 0.0
        %2713 = vmatpush1.msra.mxu0 %v2296
        %2714 = vmatprep.subr.mxu0 0.0
        %2715 = vmatpush2.msra.mxu0 0.0
        %2716 = vmatprep.subr.mxu0 0.0
        %2717 = vmatpush2.msra.mxu0 0.0
        %2718 = vmatprep.subr.mxu0 0.0
        %2719 = vmatpush2.msra.mxu0 0.0
        %2720 = vmatprep.subr.mxu0 0.0
        %2721 = vmatpush2.msra.mxu0 0.0
        %2722 = vmatprep.subr.mxu0 0.0
        %2723 = vmatpush2.msra.mxu0 0.0
        %2724 = vmatprep.subr.mxu0 0.0
        %2725 = vmatpush2.msra.mxu0 0.0
        %2726 = vmatprep.subr.mxu0 0.0
        %2727 = vmatpush2.msra.mxu0 0.0
        %2728 = vmatprep.subr.mxu0 0.0
        %2729 = vmatpush2.msra.mxu0 0.0
        %2730 = vmatprep.subr.mxu0 0.0
        %2731 = vmatpush2.msra.mxu0 0.0
        %2732 = vmatprep.subr.mxu0 0.0
        %2733 = vmatpush2.msra.mxu0 0.0
        %2734 = vmatprep.subr.mxu0 0.0
        %2735 = vmatpush2.msra.mxu0 0.0
        %2736 = vmatprep.subr.mxu0 0.0
        %2737 = vmatpush2.msra.mxu0 0.0
        %2738 = vmatprep.subr.mxu0 0.0
        %2739 = vmatpush2.msra.mxu0 0.0
        %2740 = vmatprep.subr.mxu0 0.0
        %2741 = vmatpush2.msra.mxu0 0.0
        %2742 = vmatprep.subr.mxu0 0.0
        %2743 = vmatpush2.msra.mxu0 0.0
        %2744 = vmatprep.subr.mxu0 0.0
        %2745 = vmatpush2.msra.mxu0 0.0
        %2746 = vmatprep.mubr.f32.mxu0 0.0
        %2747 = vmatmul.mubr.f32.gmra.mxu0 %v714
        %v2748 = vpop.f32.mrf.mxu0
        %v2749 = vadd.f32 %v2665, %v2748
        %v2750 = vpop.f32.mrf.mxu0
        %2751 = vdwg.mxu0
        %2752 = vmatprep.subr.mxu0 0.0
        %2753 = vmatpush1.msra.mxu0 0.0
        %2754 = vmatprep.subr.mxu0 0.0
        %2755 = vmatpush1.msra.mxu0 0.0
        %2756 = vmatprep.subr.mxu0 0.0
        %2757 = vmatpush1.msra.mxu0 0.0
        %2758 = vmatprep.subr.mxu0 0.0
        %2759 = vmatpush1.msra.mxu0 0.0
        %2760 = vmatprep.subr.mxu0 0.0
        %2761 = vmatpush1.msra.mxu0 0.0
        %2762 = vmatprep.subr.mxu0 0.0
        %2763 = vmatpush1.msra.mxu0 0.0
        %2764 = vmatprep.subr.mxu0 0.0
        %2765 = vmatpush1.msra.mxu0 0.0
        %2766 = vmatprep.subr.mxu0 0.0
        %2767 = vmatpush1.msra.mxu0 0.0
        %2768 = vmatprep.subr.mxu0 0.0
        %2769 = vmatpush1.msra.mxu0 0.0
        %2770 = vmatprep.subr.mxu0 0.0
        %2771 = vmatpush1.msra.mxu0 0.0
        %2772 = vmatprep.subr.mxu0 0.0
        %2773 = vmatpush1.msra.mxu0 0.0
        %2774 = vmatprep.subr.mxu0 0.0
        %2775 = vmatpush1.msra.mxu0 0.0
        %2776 = vmatprep.subr.mxu0 0.0
        %2777 = vmatpush1.msra.mxu0 %v2303
        %2778 = vmatprep.subr.mxu0 0.0
        %2779 = vmatpush1.msra.mxu0 %v2302
        %2780 = vmatprep.subr.mxu0 0.0
        %2781 = vmatpush1.msra.mxu0 %v2301
        %2782 = vmatprep.subr.mxu0 0.0
        %2783 = vmatpush1.msra.mxu0 %v2300
        %2784 = vmatprep.subr.mxu0 0.0
        %2785 = vmatpush2.msra.mxu0 0.0
        %2786 = vmatprep.subr.mxu0 0.0
        %2787 = vmatpush2.msra.mxu0 0.0
        %2788 = vmatprep.subr.mxu0 0.0
        %2789 = vmatpush2.msra.mxu0 0.0
        %2790 = vmatprep.subr.mxu0 0.0
        %2791 = vmatpush2.msra.mxu0 0.0
        %2792 = vmatprep.subr.mxu0 0.0
        %2793 = vmatpush2.msra.mxu0 0.0
        %2794 = vmatprep.subr.mxu0 0.0
        %2795 = vmatpush2.msra.mxu0 0.0
        %2796 = vmatprep.subr.mxu0 0.0
        %2797 = vmatpush2.msra.mxu0 0.0
        %2798 = vmatprep.subr.mxu0 0.0
        %2799 = vmatpush2.msra.mxu0 0.0
        %2800 = vmatprep.subr.mxu0 0.0
        %2801 = vmatpush2.msra.mxu0 0.0
        %2802 = vmatprep.subr.mxu0 0.0
        %2803 = vmatpush2.msra.mxu0 0.0
        %2804 = vmatprep.subr.mxu0 0.0
        %2805 = vmatpush2.msra.mxu0 0.0
        %2806 = vmatprep.subr.mxu0 0.0
        %2807 = vmatpush2.msra.mxu0 0.0
        %2808 = vmatprep.subr.mxu0 0.0
        %2809 = vmatpush2.msra.mxu0 0.0
        %2810 = vmatprep.subr.mxu0 0.0
        %2811 = vmatpush2.msra.mxu0 0.0
        %2812 = vmatprep.subr.mxu0 0.0
        %2813 = vmatpush2.msra.mxu0 0.0
        %2814 = vmatprep.subr.mxu0 0.0
        %2815 = vmatpush2.msra.mxu0 0.0
        %2816 = vmatprep.mubr.f32.mxu0 0.0
        %2817 = vmatmul.mubr.f32.gmra.mxu0 %v714
        %v2818 = vpop.f32.mrf.mxu0
        %v2819 = vadd.f32 %v2669, %v2818
        %v2820 = vpop.f32.mrf.mxu0
        %2821 = vdwg.mxu0
        %2822 = vmatprep.subr.mxu0 0.0
        %2823 = vmatpush1.msra.mxu0 0.0
        %2824 = vmatprep.subr.mxu0 0.0
        %2825 = vmatpush1.msra.mxu0 0.0
        %2826 = vmatprep.subr.mxu0 0.0
        %2827 = vmatpush1.msra.mxu0 0.0
        %2828 = vmatprep.subr.mxu0 0.0
        %2829 = vmatpush1.msra.mxu0 0.0
        %2830 = vmatprep.subr.mxu0 0.0
        %2831 = vmatpush1.msra.mxu0 0.0
        %2832 = vmatprep.subr.mxu0 0.0
        %2833 = vmatpush1.msra.mxu0 0.0
        %2834 = vmatprep.subr.mxu0 0.0
        %2835 = vmatpush1.msra.mxu0 0.0
        %2836 = vmatprep.subr.mxu0 0.0
        %2837 = vmatpush1.msra.mxu0 0.0
        %2838 = vmatprep.subr.mxu0 0.0
        %2839 = vmatpush1.msra.mxu0 0.0
        %2840 = vmatprep.subr.mxu0 0.0
        %2841 = vmatpush1.msra.mxu0 0.0
        %2842 = vmatprep.subr.mxu0 0.0
        %2843 = vmatpush1.msra.mxu0 0.0
        %2844 = vmatprep.subr.mxu0 0.0
        %2845 = vmatpush1.msra.mxu0 0.0
        %2846 = vmatprep.subr.mxu0 0.0
        %2847 = vmatpush1.msra.mxu0 %v2307
        %2848 = vmatprep.subr.mxu0 0.0
        %2849 = vmatpush1.msra.mxu0 %v2306
        %2850 = vmatprep.subr.mxu0 0.0
        %2851 = vmatpush1.msra.mxu0 %v2305
        %2852 = vmatprep.subr.mxu0 0.0
        %2853 = vmatpush1.msra.mxu0 %v2304
        %2854 = vmatprep.subr.mxu0 0.0
        %2855 = vmatpush2.msra.mxu0 0.0
        %2856 = vmatprep.subr.mxu0 0.0
        %2857 = vmatpush2.msra.mxu0 0.0
        %2858 = vmatprep.subr.mxu0 0.0
        %2859 = vmatpush2.msra.mxu0 0.0
        %2860 = vmatprep.subr.mxu0 0.0
        %2861 = vmatpush2.msra.mxu0 0.0
        %2862 = vmatprep.subr.mxu0 0.0
        %2863 = vmatpush2.msra.mxu0 0.0
        %2864 = vmatprep.subr.mxu0 0.0
        %2865 = vmatpush2.msra.mxu0 0.0
        %2866 = vmatprep.subr.mxu0 0.0
        %2867 = vmatpush2.msra.mxu0 0.0
        %2868 = vmatprep.subr.mxu0 0.0
        %2869 = vmatpush2.msra.mxu0 0.0
        %2870 = vmatprep.subr.mxu0 0.0
        %2871 = vmatpush2.msra.mxu0 0.0
        %2872 = vmatprep.subr.mxu0 0.0
        %2873 = vmatpush2.msra.mxu0 0.0
        %2874 = vmatprep.subr.mxu0 0.0
        %2875 = vmatpush2.msra.mxu0 0.0
        %2876 = vmatprep.subr.mxu0 0.0
        %2877 = vmatpush2.msra.mxu0 0.0
        %2878 = vmatprep.subr.mxu0 0.0
        %2879 = vmatpush2.msra.mxu0 0.0
        %2880 = vmatprep.subr.mxu0 0.0
        %2881 = vmatpush2.msra.mxu0 0.0
        %2882 = vmatprep.subr.mxu0 0.0
        %2883 = vmatpush2.msra.mxu0 0.0
        %2884 = vmatprep.subr.mxu0 0.0
        %2885 = vmatpush2.msra.mxu0 0.0
        %2886 = vmatprep.mubr.f32.mxu0 0.0
        %2887 = vmatmul.mubr.f32.gmra.mxu0 %v714
        %v2888 = vpop.f32.mrf.mxu0
        %v2889 = vadd.f32 %v2673, %v2888
        %v2890 = vpop.f32.mrf.mxu0
        %2891 = vdwg.mxu0
        %2892 = vmatprep.subr.mxu0 0.0
        %2893 = vmatpush1.msra.mxu0 0.0
        %2894 = vmatprep.subr.mxu0 0.0
        %2895 = vmatpush1.msra.mxu0 0.0
        %2896 = vmatprep.subr.mxu0 0.0
        %2897 = vmatpush1.msra.mxu0 0.0
        %2898 = vmatprep.subr.mxu0 0.0
        %2899 = vmatpush1.msra.mxu0 0.0
        %2900 = vmatprep.subr.mxu0 0.0
        %2901 = vmatpush1.msra.mxu0 0.0
        %2902 = vmatprep.subr.mxu0 0.0
        %2903 = vmatpush1.msra.mxu0 0.0
        %2904 = vmatprep.subr.mxu0 0.0
        %2905 = vmatpush1.msra.mxu0 0.0
        %2906 = vmatprep.subr.mxu0 0.0
        %2907 = vmatpush1.msra.mxu0 0.0
        %2908 = vmatprep.subr.mxu0 0.0
        %2909 = vmatpush1.msra.mxu0 0.0
        %2910 = vmatprep.subr.mxu0 0.0
        %2911 = vmatpush1.msra.mxu0 0.0
        %2912 = vmatprep.subr.mxu0 0.0
        %2913 = vmatpush1.msra.mxu0 0.0
        %2914 = vmatprep.subr.mxu0 0.0
        %2915 = vmatpush1.msra.mxu0 0.0
        %2916 = vmatprep.subr.mxu0 0.0
        %2917 = vmatpush1.msra.mxu0 %v2311
        %2918 = vmatprep.subr.mxu0 0.0
        %2919 = vmatpush1.msra.mxu0 %v2310
        %2920 = vmatprep.subr.mxu0 0.0
        %2921 = vmatpush1.msra.mxu0 %v2309
        %2922 = vmatprep.subr.mxu0 0.0
        %2923 = vmatpush1.msra.mxu0 %v2308
        %2924 = vmatprep.subr.mxu0 0.0
        %2925 = vmatpush2.msra.mxu0 0.0
        %2926 = vmatprep.subr.mxu0 0.0
        %2927 = vmatpush2.msra.mxu0 0.0
        %2928 = vmatprep.subr.mxu0 0.0
        %2929 = vmatpush2.msra.mxu0 0.0
        %2930 = vmatprep.subr.mxu0 0.0
        %2931 = vmatpush2.msra.mxu0 0.0
        %2932 = vmatprep.subr.mxu0 0.0
        %2933 = vmatpush2.msra.mxu0 0.0
        %2934 = vmatprep.subr.mxu0 0.0
        %2935 = vmatpush2.msra.mxu0 0.0
        %2936 = vmatprep.subr.mxu0 0.0
        %2937 = vmatpush2.msra.mxu0 0.0
        %2938 = vmatprep.subr.mxu0 0.0
        %2939 = vmatpush2.msra.mxu0 0.0
        %2940 = vmatprep.subr.mxu0 0.0
        %2941 = vmatpush2.msra.mxu0 0.0
        %2942 = vmatprep.subr.mxu0 0.0
        %2943 = vmatpush2.msra.mxu0 0.0
        %2944 = vmatprep.subr.mxu0 0.0
        %2945 = vmatpush2.msra.mxu0 0.0
        %2946 = vmatprep.subr.mxu0 0.0
        %2947 = vmatpush2.msra.mxu0 0.0
        %2948 = vmatprep.subr.mxu0 0.0
        %2949 = vmatpush2.msra.mxu0 0.0
        %2950 = vmatprep.subr.mxu0 0.0
        %2951 = vmatpush2.msra.mxu0 0.0
        %2952 = vmatprep.subr.mxu0 0.0
        %2953 = vmatpush2.msra.mxu0 0.0
        %2954 = vmatprep.subr.mxu0 0.0
        %2955 = vmatpush2.msra.mxu0 0.0
        %2956 = vmatprep.mubr.f32.mxu0 0.0
        %2957 = vmatmul.mubr.f32.gmra.mxu0 %v714
        %v2958 = vpop.f32.mrf.mxu0
        %v2959 = vadd.f32 %v2677, %v2958
        %v2960 = vpop.f32.mrf.mxu0
        %2961 = vdwg.mxu0
        %v2966 = vlaneseq
        %v2967 = vshrl.u32 %v2966, 7
        %v2968 = vsub.s32 0, %v2967
        %v2969 = vrot.slane %v2340, %v2968
        %v2970 = vlaneseq
        %v2971 = vshrl.u32 %v2970, 7
        %v2972 = vsub.s32 0, %v2971
        %v2973 = vrot.slane %v2341, %v2972
        %v2974 = vlaneseq
        %v2975 = vshrl.u32 %v2974, 7
        %v2976 = vsub.s32 0, %v2975
        %v2977 = vrot.slane %v2342, %v2976
        %v2978 = vlaneseq
        %v2979 = vshrl.u32 %v2978, 7
        %v2980 = vsub.s32 0, %v2979
        %v2981 = vrot.slane %v2343, %v2980
        %2986 = vmatprep.subr.mxu0 0.0
        %2987 = vmatpush1.msra.mxu0 0.0
        %2988 = vmatprep.subr.mxu0 0.0
        %2989 = vmatpush1.msra.mxu0 0.0
        %2990 = vmatprep.subr.mxu0 0.0
        %2991 = vmatpush1.msra.mxu0 0.0
        %2992 = vmatprep.subr.mxu0 0.0
        %2993 = vmatpush1.msra.mxu0 0.0
        %2994 = vmatprep.subr.mxu0 0.0
        %2995 = vmatpush1.msra.mxu0 0.0
        %2996 = vmatprep.subr.mxu0 0.0
        %2997 = vmatpush1.msra.mxu0 0.0
        %2998 = vmatprep.subr.mxu0 0.0
        %2999 = vmatpush1.msra.mxu0 0.0
        %3000 = vmatprep.subr.mxu0 0.0
        %3001 = vmatpush1.msra.mxu0 0.0
        %3002 = vmatprep.subr.mxu0 0.0
        %3003 = vmatpush1.msra.mxu0 0.0
        %3004 = vmatprep.subr.mxu0 0.0
        %3005 = vmatpush1.msra.mxu0 0.0
        %3006 = vmatprep.subr.mxu0 0.0
        %3007 = vmatpush1.msra.mxu0 0.0
        %3008 = vmatprep.subr.mxu0 0.0
        %3009 = vmatpush1.msra.mxu0 0.0
        %3010 = vmatprep.subr.mxu0 0.0
        %3011 = vmatpush1.msra.mxu0 %v2316
        %3012 = vmatprep.subr.mxu0 0.0
        %3013 = vmatpush1.msra.mxu0 %v2315
        %3014 = vmatprep.subr.mxu0 0.0
        %3015 = vmatpush1.msra.mxu0 %v2314
        %3016 = vmatprep.subr.mxu0 0.0
        %3017 = vmatpush1.msra.mxu0 %v2313
        %3018 = vmatprep.subr.mxu0 0.0
        %3019 = vmatpush2.msra.mxu0 0.0
        %3020 = vmatprep.subr.mxu0 0.0
        %3021 = vmatpush2.msra.mxu0 0.0
        %3022 = vmatprep.subr.mxu0 0.0
        %3023 = vmatpush2.msra.mxu0 0.0
        %3024 = vmatprep.subr.mxu0 0.0
        %3025 = vmatpush2.msra.mxu0 0.0
        %3026 = vmatprep.subr.mxu0 0.0
        %3027 = vmatpush2.msra.mxu0 0.0
        %3028 = vmatprep.subr.mxu0 0.0
        %3029 = vmatpush2.msra.mxu0 0.0
        %3030 = vmatprep.subr.mxu0 0.0
        %3031 = vmatpush2.msra.mxu0 0.0
        %3032 = vmatprep.subr.mxu0 0.0
        %3033 = vmatpush2.msra.mxu0 0.0
        %3034 = vmatprep.subr.mxu0 0.0
        %3035 = vmatpush2.msra.mxu0 0.0
        %3036 = vmatprep.subr.mxu0 0.0
        %3037 = vmatpush2.msra.mxu0 0.0
        %3038 = vmatprep.subr.mxu0 0.0
        %3039 = vmatpush2.msra.mxu0 0.0
        %3040 = vmatprep.subr.mxu0 0.0
        %3041 = vmatpush2.msra.mxu0 0.0
        %3042 = vmatprep.subr.mxu0 0.0
        %3043 = vmatpush2.msra.mxu0 0.0
        %3044 = vmatprep.subr.mxu0 0.0
        %3045 = vmatpush2.msra.mxu0 0.0
        %3046 = vmatprep.subr.mxu0 0.0
        %3047 = vmatpush2.msra.mxu0 0.0
        %3048 = vmatprep.subr.mxu0 0.0
        %3049 = vmatpush2.msra.mxu0 0.0
        %3050 = vmatprep.mubr.f32.mxu0 0.0
        %3051 = vmatmul.mubr.f32.gmra.mxu0 %v714
        %v3052 = vpop.f32.mrf.mxu0
        %v3053 = vadd.f32 %v2969, %v3052
        %v3054 = vpop.f32.mrf.mxu0
        %3055 = vdwg.mxu0
        %3056 = vmatprep.subr.mxu0 0.0
        %3057 = vmatpush1.msra.mxu0 0.0
        %3058 = vmatprep.subr.mxu0 0.0
        %3059 = vmatpush1.msra.mxu0 0.0
        %3060 = vmatprep.subr.mxu0 0.0
        %3061 = vmatpush1.msra.mxu0 0.0
        %3062 = vmatprep.subr.mxu0 0.0
        %3063 = vmatpush1.msra.mxu0 0.0
        %3064 = vmatprep.subr.mxu0 0.0
        %3065 = vmatpush1.msra.mxu0 0.0
        %3066 = vmatprep.subr.mxu0 0.0
        %3067 = vmatpush1.msra.mxu0 0.0
        %3068 = vmatprep.subr.mxu0 0.0
        %3069 = vmatpush1.msra.mxu0 0.0
        %3070 = vmatprep.subr.mxu0 0.0
        %3071 = vmatpush1.msra.mxu0 0.0
        %3072 = vmatprep.subr.mxu0 0.0
        %3073 = vmatpush1.msra.mxu0 0.0
        %3074 = vmatprep.subr.mxu0 0.0
        %3075 = vmatpush1.msra.mxu0 0.0
        %3076 = vmatprep.subr.mxu0 0.0
        %3077 = vmatpush1.msra.mxu0 0.0
        %3078 = vmatprep.subr.mxu0 0.0
        %3079 = vmatpush1.msra.mxu0 0.0
        %3080 = vmatprep.subr.mxu0 0.0
        %3081 = vmatpush1.msra.mxu0 %v2320
        %3082 = vmatprep.subr.mxu0 0.0
        %3083 = vmatpush1.msra.mxu0 %v2319
        %3084 = vmatprep.subr.mxu0 0.0
        %3085 = vmatpush1.msra.mxu0 %v2318
        %3086 = vmatprep.subr.mxu0 0.0
        %3087 = vmatpush1.msra.mxu0 %v2317
        %3088 = vmatprep.subr.mxu0 0.0
        %3089 = vmatpush2.msra.mxu0 0.0
        %3090 = vmatprep.subr.mxu0 0.0
        %3091 = vmatpush2.msra.mxu0 0.0
        %3092 = vmatprep.subr.mxu0 0.0
        %3093 = vmatpush2.msra.mxu0 0.0
        %3094 = vmatprep.subr.mxu0 0.0
        %3095 = vmatpush2.msra.mxu0 0.0
        %3096 = vmatprep.subr.mxu0 0.0
        %3097 = vmatpush2.msra.mxu0 0.0
        %3098 = vmatprep.subr.mxu0 0.0
        %3099 = vmatpush2.msra.mxu0 0.0
        %3100 = vmatprep.subr.mxu0 0.0
        %3101 = vmatpush2.msra.mxu0 0.0
        %3102 = vmatprep.subr.mxu0 0.0
        %3103 = vmatpush2.msra.mxu0 0.0
        %3104 = vmatprep.subr.mxu0 0.0
        %3105 = vmatpush2.msra.mxu0 0.0
        %3106 = vmatprep.subr.mxu0 0.0
        %3107 = vmatpush2.msra.mxu0 0.0
        %3108 = vmatprep.subr.mxu0 0.0
        %3109 = vmatpush2.msra.mxu0 0.0
        %3110 = vmatprep.subr.mxu0 0.0
        %3111 = vmatpush2.msra.mxu0 0.0
        %3112 = vmatprep.subr.mxu0 0.0
        %3113 = vmatpush2.msra.mxu0 0.0
        %3114 = vmatprep.subr.mxu0 0.0
        %3115 = vmatpush2.msra.mxu0 0.0
        %3116 = vmatprep.subr.mxu0 0.0
        %3117 = vmatpush2.msra.mxu0 0.0
        %3118 = vmatprep.subr.mxu0 0.0
        %3119 = vmatpush2.msra.mxu0 0.0
        %3120 = vmatprep.mubr.f32.mxu0 0.0
        %3121 = vmatmul.mubr.f32.gmra.mxu0 %v714
        %v3122 = vpop.f32.mrf.mxu0
        %v3123 = vadd.f32 %v2973, %v3122
        %v3124 = vpop.f32.mrf.mxu0
        %3125 = vdwg.mxu0
        %3126 = vmatprep.subr.mxu0 0.0
        %3127 = vmatpush1.msra.mxu0 0.0
        %3128 = vmatprep.subr.mxu0 0.0
        %3129 = vmatpush1.msra.mxu0 0.0
        %3130 = vmatprep.subr.mxu0 0.0
        %3131 = vmatpush1.msra.mxu0 0.0
        %3132 = vmatprep.subr.mxu0 0.0
        %3133 = vmatpush1.msra.mxu0 0.0
        %3134 = vmatprep.subr.mxu0 0.0
        %3135 = vmatpush1.msra.mxu0 0.0
        %3136 = vmatprep.subr.mxu0 0.0
        %3137 = vmatpush1.msra.mxu0 0.0
        %3138 = vmatprep.subr.mxu0 0.0
        %3139 = vmatpush1.msra.mxu0 0.0
        %3140 = vmatprep.subr.mxu0 0.0
        %3141 = vmatpush1.msra.mxu0 0.0
        %3142 = vmatprep.subr.mxu0 0.0
        %3143 = vmatpush1.msra.mxu0 0.0
        %3144 = vmatprep.subr.mxu0 0.0
        %3145 = vmatpush1.msra.mxu0 0.0
        %3146 = vmatprep.subr.mxu0 0.0
        %3147 = vmatpush1.msra.mxu0 0.0
        %3148 = vmatprep.subr.mxu0 0.0
        %3149 = vmatpush1.msra.mxu0 0.0
        %3150 = vmatprep.subr.mxu0 0.0
        %3151 = vmatpush1.msra.mxu0 %v2324
        %3152 = vmatprep.subr.mxu0 0.0
        %3153 = vmatpush1.msra.mxu0 %v2323
        %3154 = vmatprep.subr.mxu0 0.0
        %3155 = vmatpush1.msra.mxu0 %v2322
        %3156 = vmatprep.subr.mxu0 0.0
        %3157 = vmatpush1.msra.mxu0 %v2321
        %3158 = vmatprep.subr.mxu0 0.0
        %3159 = vmatpush2.msra.mxu0 0.0
        %3160 = vmatprep.subr.mxu0 0.0
        %3161 = vmatpush2.msra.mxu0 0.0
        %3162 = vmatprep.subr.mxu0 0.0
        %3163 = vmatpush2.msra.mxu0 0.0
        %3164 = vmatprep.subr.mxu0 0.0
        %3165 = vmatpush2.msra.mxu0 0.0
        %3166 = vmatprep.subr.mxu0 0.0
        %3167 = vmatpush2.msra.mxu0 0.0
        %3168 = vmatprep.subr.mxu0 0.0
        %3169 = vmatpush2.msra.mxu0 0.0
        %3170 = vmatprep.subr.mxu0 0.0
        %3171 = vmatpush2.msra.mxu0 0.0
        %3172 = vmatprep.subr.mxu0 0.0
        %3173 = vmatpush2.msra.mxu0 0.0
        %3174 = vmatprep.subr.mxu0 0.0
        %3175 = vmatpush2.msra.mxu0 0.0
        %3176 = vmatprep.subr.mxu0 0.0
        %3177 = vmatpush2.msra.mxu0 0.0
        %3178 = vmatprep.subr.mxu0 0.0
        %3179 = vmatpush2.msra.mxu0 0.0
        %3180 = vmatprep.subr.mxu0 0.0
        %3181 = vmatpush2.msra.mxu0 0.0
        %3182 = vmatprep.subr.mxu0 0.0
        %3183 = vmatpush2.msra.mxu0 0.0
        %3184 = vmatprep.subr.mxu0 0.0
        %3185 = vmatpush2.msra.mxu0 0.0
        %3186 = vmatprep.subr.mxu0 0.0
        %3187 = vmatpush2.msra.mxu0 0.0
        %3188 = vmatprep.subr.mxu0 0.0
        %3189 = vmatpush2.msra.mxu0 0.0
        %3190 = vmatprep.mubr.f32.mxu0 0.0
        %3191 = vmatmul.mubr.f32.gmra.mxu0 %v714
        %v3192 = vpop.f32.mrf.mxu0
        %v3193 = vadd.f32 %v2977, %v3192
        %v3194 = vpop.f32.mrf.mxu0
        %3195 = vdwg.mxu0
        %3196 = vmatprep.subr.mxu0 0.0
        %3197 = vmatpush1.msra.mxu0 0.0
        %3198 = vmatprep.subr.mxu0 0.0
        %3199 = vmatpush1.msra.mxu0 0.0
        %3200 = vmatprep.subr.mxu0 0.0
        %3201 = vmatpush1.msra.mxu0 0.0
        %3202 = vmatprep.subr.mxu0 0.0
        %3203 = vmatpush1.msra.mxu0 0.0
        %3204 = vmatprep.subr.mxu0 0.0
        %3205 = vmatpush1.msra.mxu0 0.0
        %3206 = vmatprep.subr.mxu0 0.0
        %3207 = vmatpush1.msra.mxu0 0.0
        %3208 = vmatprep.subr.mxu0 0.0
        %3209 = vmatpush1.msra.mxu0 0.0
        %3210 = vmatprep.subr.mxu0 0.0
        %3211 = vmatpush1.msra.mxu0 0.0
        %3212 = vmatprep.subr.mxu0 0.0
        %3213 = vmatpush1.msra.mxu0 0.0
        %3214 = vmatprep.subr.mxu0 0.0
        %3215 = vmatpush1.msra.mxu0 0.0
        %3216 = vmatprep.subr.mxu0 0.0
        %3217 = vmatpush1.msra.mxu0 0.0
        %3218 = vmatprep.subr.mxu0 0.0
        %3219 = vmatpush1.msra.mxu0 0.0
        %3220 = vmatprep.subr.mxu0 0.0
        %3221 = vmatpush1.msra.mxu0 %v2328
        %3222 = vmatprep.subr.mxu0 0.0
        %3223 = vmatpush1.msra.mxu0 %v2327
        %3224 = vmatprep.subr.mxu0 0.0
        %3225 = vmatpush1.msra.mxu0 %v2326
        %3226 = vmatprep.subr.mxu0 0.0
        %3227 = vmatpush1.msra.mxu0 %v2325
        %3228 = vmatprep.subr.mxu0 0.0
        %3229 = vmatpush2.msra.mxu0 0.0
        %3230 = vmatprep.subr.mxu0 0.0
        %3231 = vmatpush2.msra.mxu0 0.0
        %3232 = vmatprep.subr.mxu0 0.0
        %3233 = vmatpush2.msra.mxu0 0.0
        %3234 = vmatprep.subr.mxu0 0.0
        %3235 = vmatpush2.msra.mxu0 0.0
        %3236 = vmatprep.subr.mxu0 0.0
        %3237 = vmatpush2.msra.mxu0 0.0
        %3238 = vmatprep.subr.mxu0 0.0
        %3239 = vmatpush2.msra.mxu0 0.0
        %3240 = vmatprep.subr.mxu0 0.0
        %3241 = vmatpush2.msra.mxu0 0.0
        %3242 = vmatprep.subr.mxu0 0.0
        %3243 = vmatpush2.msra.mxu0 0.0
        %3244 = vmatprep.subr.mxu0 0.0
        %3245 = vmatpush2.msra.mxu0 0.0
        %3246 = vmatprep.subr.mxu0 0.0
        %3247 = vmatpush2.msra.mxu0 0.0
        %3248 = vmatprep.subr.mxu0 0.0
        %3249 = vmatpush2.msra.mxu0 0.0
        %3250 = vmatprep.subr.mxu0 0.0
        %3251 = vmatpush2.msra.mxu0 0.0
        %3252 = vmatprep.subr.mxu0 0.0
        %3253 = vmatpush2.msra.mxu0 0.0
        %3254 = vmatprep.subr.mxu0 0.0
        %3255 = vmatpush2.msra.mxu0 0.0
        %3256 = vmatprep.subr.mxu0 0.0
        %3257 = vmatpush2.msra.mxu0 0.0
        %3258 = vmatprep.subr.mxu0 0.0
        %3259 = vmatpush2.msra.mxu0 0.0
        %3260 = vmatprep.mubr.f32.mxu0 0.0
        %3261 = vmatmul.mubr.f32.gmra.mxu0 %v714
        %v3262 = vpop.f32.mrf.mxu0
        %v3263 = vadd.f32 %v2981, %v3262
        %v3264 = vpop.f32.mrf.mxu0
        %3265 = vdwg.mxu0
        %v3267 = vsel %vm1300, %v2445, 0
        %v3270 = vsel %vm1300, %v2749, 0
        %3272 = vmatprep.subr.mxu0 0.0
        %3273 = vmatpush1.xpose.msra.mxu0 0.0
        %3274 = vmatprep.subr.mxu0 0.0
        %3275 = vmatpush1.xpose.msra.mxu0 0.0
        %3276 = vmatprep.subr.mxu0 0.0
        %3277 = vmatpush1.xpose.msra.mxu0 0.0
        %3278 = vmatprep.subr.mxu0 0.0
        %3279 = vmatpush1.xpose.msra.mxu0 0.0
        %3280 = vmatprep.subr.mxu0 0.0
        %3281 = vmatpush1.xpose.msra.mxu0 0.0
        %3282 = vmatprep.subr.mxu0 0.0
        %3283 = vmatpush1.xpose.msra.mxu0 0.0
        %3284 = vmatprep.subr.mxu0 0.0
        %3285 = vmatpush1.xpose.msra.mxu0 0.0
        %3286 = vmatprep.subr.mxu0 0.0
        %3287 = vmatpush1.xpose.msra.mxu0 0.0
        %3288 = vmatprep.subr.mxu0 0.0
        %3289 = vmatpush1.xpose.msra.mxu0 0.0
        %3290 = vmatprep.subr.mxu0 0.0
        %3291 = vmatpush1.xpose.msra.mxu0 0.0
        %3292 = vmatprep.subr.mxu0 0.0
        %3293 = vmatpush1.xpose.msra.mxu0 0.0
        %3294 = vmatprep.subr.mxu0 0.0
        %3295 = vmatpush1.xpose.msra.mxu0 0.0
        %3296 = vmatprep.subr.mxu0 0.0
        %3297 = vmatpush1.xpose.msra.mxu0 0.0
        %3298 = vmatprep.subr.mxu0 0.0
        %3299 = vmatpush1.xpose.msra.mxu0 0.0
        %3300 = vmatprep.subr.mxu0 0.0
        %3301 = vmatpush1.xpose.msra.mxu0 0.0
        %3302 = vmatprep.subr.mxu0 0.0
        %3303 = vmatpush1.xpose.msra.mxu0 %v3270
        %3304 = vmatprep.subr.mxu0 0.0
        %3305 = vmatpush2.xpose.msra.mxu0 0.0
        %3306 = vmatprep.subr.mxu0 0.0
        %3307 = vmatpush2.xpose.msra.mxu0 0.0
        %3308 = vmatprep.subr.mxu0 0.0
        %3309 = vmatpush2.xpose.msra.mxu0 0.0
        %3310 = vmatprep.subr.mxu0 0.0
        %3311 = vmatpush2.xpose.msra.mxu0 0.0
        %3312 = vmatprep.subr.mxu0 0.0
        %3313 = vmatpush2.xpose.msra.mxu0 0.0
        %3314 = vmatprep.subr.mxu0 0.0
        %3315 = vmatpush2.xpose.msra.mxu0 0.0
        %3316 = vmatprep.subr.mxu0 0.0
        %3317 = vmatpush2.xpose.msra.mxu0 0.0
        %3318 = vmatprep.subr.mxu0 0.0
        %3319 = vmatpush2.xpose.msra.mxu0 0.0
        %3320 = vmatprep.subr.mxu0 0.0
        %3321 = vmatpush2.xpose.msra.mxu0 0.0
        %3322 = vmatprep.subr.mxu0 0.0
        %3323 = vmatpush2.xpose.msra.mxu0 0.0
        %3324 = vmatprep.subr.mxu0 0.0
        %3325 = vmatpush2.xpose.msra.mxu0 0.0
        %3326 = vmatprep.subr.mxu0 0.0
        %3327 = vmatpush2.xpose.msra.mxu0 0.0
        %3328 = vmatprep.subr.mxu0 0.0
        %3329 = vmatpush2.xpose.msra.mxu0 0.0
        %3330 = vmatprep.subr.mxu0 0.0
        %3331 = vmatpush2.xpose.msra.mxu0 0.0
        %3332 = vmatprep.subr.mxu0 0.0
        %3333 = vmatpush2.xpose.msra.mxu0 0.0
        %3334 = vmatprep.subr.mxu0 0.0
        %3335 = vmatpush2.xpose.msra.mxu0 0.0
        %3336 = vmatprep.mubr.f32.mxu0 0.0
        %3337 = vmatmul.mubr.f32.gmra.mxu0 %v3267
        %v3338 = vpop.f32.mrf.mxu0
        %v3339 = vadd.f32 0.0, %v3338
        %v3340 = vpop.f32.mrf.mxu0
        %3341 = vdwg.mxu0
        %v3343 = vsel %vm1300, %v2515, 0
        %v3346 = vsel %vm1300, %v2819, 0
        %3348 = vmatprep.subr.mxu0 0.0
        %3349 = vmatpush1.xpose.msra.mxu0 0.0
        %3350 = vmatprep.subr.mxu0 0.0
        %3351 = vmatpush1.xpose.msra.mxu0 0.0
        %3352 = vmatprep.subr.mxu0 0.0
        %3353 = vmatpush1.xpose.msra.mxu0 0.0
        %3354 = vmatprep.subr.mxu0 0.0
        %3355 = vmatpush1.xpose.msra.mxu0 0.0
        %3356 = vmatprep.subr.mxu0 0.0
        %3357 = vmatpush1.xpose.msra.mxu0 0.0
        %3358 = vmatprep.subr.mxu0 0.0
        %3359 = vmatpush1.xpose.msra.mxu0 0.0
        %3360 = vmatprep.subr.mxu0 0.0
        %3361 = vmatpush1.xpose.msra.mxu0 0.0
        %3362 = vmatprep.subr.mxu0 0.0
        %3363 = vmatpush1.xpose.msra.mxu0 0.0
        %3364 = vmatprep.subr.mxu0 0.0
        %3365 = vmatpush1.xpose.msra.mxu0 0.0
        %3366 = vmatprep.subr.mxu0 0.0
        %3367 = vmatpush1.xpose.msra.mxu0 0.0
        %3368 = vmatprep.subr.mxu0 0.0
        %3369 = vmatpush1.xpose.msra.mxu0 0.0
        %3370 = vmatprep.subr.mxu0 0.0
        %3371 = vmatpush1.xpose.msra.mxu0 0.0
        %3372 = vmatprep.subr.mxu0 0.0
        %3373 = vmatpush1.xpose.msra.mxu0 0.0
        %3374 = vmatprep.subr.mxu0 0.0
        %3375 = vmatpush1.xpose.msra.mxu0 0.0
        %3376 = vmatprep.subr.mxu0 0.0
        %3377 = vmatpush1.xpose.msra.mxu0 0.0
        %3378 = vmatprep.subr.mxu0 0.0
        %3379 = vmatpush1.xpose.msra.mxu0 %v3346
        %3380 = vmatprep.subr.mxu0 0.0
        %3381 = vmatpush2.xpose.msra.mxu0 0.0
        %3382 = vmatprep.subr.mxu0 0.0
        %3383 = vmatpush2.xpose.msra.mxu0 0.0
        %3384 = vmatprep.subr.mxu0 0.0
        %3385 = vmatpush2.xpose.msra.mxu0 0.0
        %3386 = vmatprep.subr.mxu0 0.0
        %3387 = vmatpush2.xpose.msra.mxu0 0.0
        %3388 = vmatprep.subr.mxu0 0.0
        %3389 = vmatpush2.xpose.msra.mxu0 0.0
        %3390 = vmatprep.subr.mxu0 0.0
        %3391 = vmatpush2.xpose.msra.mxu0 0.0
        %3392 = vmatprep.subr.mxu0 0.0
        %3393 = vmatpush2.xpose.msra.mxu0 0.0
        %3394 = vmatprep.subr.mxu0 0.0
        %3395 = vmatpush2.xpose.msra.mxu0 0.0
        %3396 = vmatprep.subr.mxu0 0.0
        %3397 = vmatpush2.xpose.msra.mxu0 0.0
        %3398 = vmatprep.subr.mxu0 0.0
        %3399 = vmatpush2.xpose.msra.mxu0 0.0
        %3400 = vmatprep.subr.mxu0 0.0
        %3401 = vmatpush2.xpose.msra.mxu0 0.0
        %3402 = vmatprep.subr.mxu0 0.0
        %3403 = vmatpush2.xpose.msra.mxu0 0.0
        %3404 = vmatprep.subr.mxu0 0.0
        %3405 = vmatpush2.xpose.msra.mxu0 0.0
        %3406 = vmatprep.subr.mxu0 0.0
        %3407 = vmatpush2.xpose.msra.mxu0 0.0
        %3408 = vmatprep.subr.mxu0 0.0
        %3409 = vmatpush2.xpose.msra.mxu0 0.0
        %3410 = vmatprep.subr.mxu0 0.0
        %3411 = vmatpush2.xpose.msra.mxu0 0.0
        %3412 = vmatprep.mubr.f32.mxu0 0.0
        %3413 = vmatmul.mubr.f32.gmra.mxu0 %v3343
        %v3414 = vpop.f32.mrf.mxu0
        %v3415 = vadd.f32 0.0, %v3414
        %v3416 = vpop.f32.mrf.mxu0
        %3417 = vdwg.mxu0
        %v3419 = vsel %vm1300, %v2585, 0
        %v3422 = vsel %vm1300, %v2889, 0
        %3424 = vmatprep.subr.mxu0 0.0
        %3425 = vmatpush1.xpose.msra.mxu0 0.0
        %3426 = vmatprep.subr.mxu0 0.0
        %3427 = vmatpush1.xpose.msra.mxu0 0.0
        %3428 = vmatprep.subr.mxu0 0.0
        %3429 = vmatpush1.xpose.msra.mxu0 0.0
        %3430 = vmatprep.subr.mxu0 0.0
        %3431 = vmatpush1.xpose.msra.mxu0 0.0
        %3432 = vmatprep.subr.mxu0 0.0
        %3433 = vmatpush1.xpose.msra.mxu0 0.0
        %3434 = vmatprep.subr.mxu0 0.0
        %3435 = vmatpush1.xpose.msra.mxu0 0.0
        %3436 = vmatprep.subr.mxu0 0.0
        %3437 = vmatpush1.xpose.msra.mxu0 0.0
        %3438 = vmatprep.subr.mxu0 0.0
        %3439 = vmatpush1.xpose.msra.mxu0 0.0
        %3440 = vmatprep.subr.mxu0 0.0
        %3441 = vmatpush1.xpose.msra.mxu0 0.0
        %3442 = vmatprep.subr.mxu0 0.0
        %3443 = vmatpush1.xpose.msra.mxu0 0.0
        %3444 = vmatprep.subr.mxu0 0.0
        %3445 = vmatpush1.xpose.msra.mxu0 0.0
        %3446 = vmatprep.subr.mxu0 0.0
        %3447 = vmatpush1.xpose.msra.mxu0 0.0
        %3448 = vmatprep.subr.mxu0 0.0
        %3449 = vmatpush1.xpose.msra.mxu0 0.0
        %3450 = vmatprep.subr.mxu0 0.0
        %3451 = vmatpush1.xpose.msra.mxu0 0.0
        %3452 = vmatprep.subr.mxu0 0.0
        %3453 = vmatpush1.xpose.msra.mxu0 0.0
        %3454 = vmatprep.subr.mxu0 0.0
        %3455 = vmatpush1.xpose.msra.mxu0 %v3422
        %3456 = vmatprep.subr.mxu0 0.0
        %3457 = vmatpush2.xpose.msra.mxu0 0.0
        %3458 = vmatprep.subr.mxu0 0.0
        %3459 = vmatpush2.xpose.msra.mxu0 0.0
        %3460 = vmatprep.subr.mxu0 0.0
        %3461 = vmatpush2.xpose.msra.mxu0 0.0
        %3462 = vmatprep.subr.mxu0 0.0
        %3463 = vmatpush2.xpose.msra.mxu0 0.0
        %3464 = vmatprep.subr.mxu0 0.0
        %3465 = vmatpush2.xpose.msra.mxu0 0.0
        %3466 = vmatprep.subr.mxu0 0.0
        %3467 = vmatpush2.xpose.msra.mxu0 0.0
        %3468 = vmatprep.subr.mxu0 0.0
        %3469 = vmatpush2.xpose.msra.mxu0 0.0
        %3470 = vmatprep.subr.mxu0 0.0
        %3471 = vmatpush2.xpose.msra.mxu0 0.0
        %3472 = vmatprep.subr.mxu0 0.0
        %3473 = vmatpush2.xpose.msra.mxu0 0.0
        %3474 = vmatprep.subr.mxu0 0.0
        %3475 = vmatpush2.xpose.msra.mxu0 0.0
        %3476 = vmatprep.subr.mxu0 0.0
        %3477 = vmatpush2.xpose.msra.mxu0 0.0
        %3478 = vmatprep.subr.mxu0 0.0
        %3479 = vmatpush2.xpose.msra.mxu0 0.0
        %3480 = vmatprep.subr.mxu0 0.0
        %3481 = vmatpush2.xpose.msra.mxu0 0.0
        %3482 = vmatprep.subr.mxu0 0.0
        %3483 = vmatpush2.xpose.msra.mxu0 0.0
        %3484 = vmatprep.subr.mxu0 0.0
        %3485 = vmatpush2.xpose.msra.mxu0 0.0
        %3486 = vmatprep.subr.mxu0 0.0
        %3487 = vmatpush2.xpose.msra.mxu0 0.0
        %3488 = vmatprep.mubr.f32.mxu0 0.0
        %3489 = vmatmul.mubr.f32.gmra.mxu0 %v3419
        %v3490 = vpop.f32.mrf.mxu0
        %v3491 = vadd.f32 0.0, %v3490
        %v3492 = vpop.f32.mrf.mxu0
        %3493 = vdwg.mxu0
        %v3495 = vsel %vm1300, %v2655, 0
        %v3498 = vsel %vm1300, %v2959, 0
        %3500 = vmatprep.subr.mxu0 0.0
        %3501 = vmatpush1.xpose.msra.mxu0 0.0
        %3502 = vmatprep.subr.mxu0 0.0
        %3503 = vmatpush1.xpose.msra.mxu0 0.0
        %3504 = vmatprep.subr.mxu0 0.0
        %3505 = vmatpush1.xpose.msra.mxu0 0.0
        %3506 = vmatprep.subr.mxu0 0.0
        %3507 = vmatpush1.xpose.msra.mxu0 0.0
        %3508 = vmatprep.subr.mxu0 0.0
        %3509 = vmatpush1.xpose.msra.mxu0 0.0
        %3510 = vmatprep.subr.mxu0 0.0
        %3511 = vmatpush1.xpose.msra.mxu0 0.0
        %3512 = vmatprep.subr.mxu0 0.0
        %3513 = vmatpush1.xpose.msra.mxu0 0.0
        %3514 = vmatprep.subr.mxu0 0.0
        %3515 = vmatpush1.xpose.msra.mxu0 0.0
        %3516 = vmatprep.subr.mxu0 0.0
        %3517 = vmatpush1.xpose.msra.mxu0 0.0
        %3518 = vmatprep.subr.mxu0 0.0
        %3519 = vmatpush1.xpose.msra.mxu0 0.0
        %3520 = vmatprep.subr.mxu0 0.0
        %3521 = vmatpush1.xpose.msra.mxu0 0.0
        %3522 = vmatprep.subr.mxu0 0.0
        %3523 = vmatpush1.xpose.msra.mxu0 0.0
        %3524 = vmatprep.subr.mxu0 0.0
        %3525 = vmatpush1.xpose.msra.mxu0 0.0
        %3526 = vmatprep.subr.mxu0 0.0
        %3527 = vmatpush1.xpose.msra.mxu0 0.0
        %3528 = vmatprep.subr.mxu0 0.0
        %3529 = vmatpush1.xpose.msra.mxu0 0.0
        %3530 = vmatprep.subr.mxu0 0.0
        %3531 = vmatpush1.xpose.msra.mxu0 %v3498
        %3532 = vmatprep.subr.mxu0 0.0
        %3533 = vmatpush2.xpose.msra.mxu0 0.0
        %3534 = vmatprep.subr.mxu0 0.0
        %3535 = vmatpush2.xpose.msra.mxu0 0.0
        %3536 = vmatprep.subr.mxu0 0.0
        %3537 = vmatpush2.xpose.msra.mxu0 0.0
        %3538 = vmatprep.subr.mxu0 0.0
        %3539 = vmatpush2.xpose.msra.mxu0 0.0
        %3540 = vmatprep.subr.mxu0 0.0
        %3541 = vmatpush2.xpose.msra.mxu0 0.0
        %3542 = vmatprep.subr.mxu0 0.0
        %3543 = vmatpush2.xpose.msra.mxu0 0.0
        %3544 = vmatprep.subr.mxu0 0.0
        %3545 = vmatpush2.xpose.msra.mxu0 0.0
        %3546 = vmatprep.subr.mxu0 0.0
        %3547 = vmatpush2.xpose.msra.mxu0 0.0
        %3548 = vmatprep.subr.mxu0 0.0
        %3549 = vmatpush2.xpose.msra.mxu0 0.0
        %3550 = vmatprep.subr.mxu0 0.0
        %3551 = vmatpush2.xpose.msra.mxu0 0.0
        %3552 = vmatprep.subr.mxu0 0.0
        %3553 = vmatpush2.xpose.msra.mxu0 0.0
        %3554 = vmatprep.subr.mxu0 0.0
        %3555 = vmatpush2.xpose.msra.mxu0 0.0
        %3556 = vmatprep.subr.mxu0 0.0
        %3557 = vmatpush2.xpose.msra.mxu0 0.0
        %3558 = vmatprep.subr.mxu0 0.0
        %3559 = vmatpush2.xpose.msra.mxu0 0.0
        %3560 = vmatprep.subr.mxu0 0.0
        %3561 = vmatpush2.xpose.msra.mxu0 0.0
        %3562 = vmatprep.subr.mxu0 0.0
        %3563 = vmatpush2.xpose.msra.mxu0 0.0
        %3564 = vmatprep.mubr.f32.mxu0 0.0
        %3565 = vmatmul.mubr.f32.gmra.mxu0 %v3495
        %v3566 = vpop.f32.mrf.mxu0
        %v3567 = vadd.f32 0.0, %v3566
        %v3568 = vpop.f32.mrf.mxu0
        %3569 = vdwg.mxu0
        %v3570 = vsel %vm311, -1e-10, %v3339
        %v3571 = vsel %vm311, -1e-10, %v3415
        %v3572 = vsel %vm311, -1e-10, %v3491
        %v3573 = vsel %vm311, -1e-10, %v3567
        %v3574 = vmul.f32 %v3570, 0.17677669
        %v3575 = vmul.f32 %v3571, 0.17677669
        %v3576 = vmul.f32 %v3572, 0.17677669
        %v3577 = vmul.f32 %v3573, 0.17677669
        %v3578 = vsel %vm1300, %v3574, -inf
        %3579 = vmax.xlane.f32.xlu0 %v3578
        %v3580 = vpop.xlane.xlu0 %3579
        %v3581 = vsel %vm1300, %v3575, -inf
        %3582 = vmax.xlane.f32.xlu0 %v3581
        %v3583 = vpop.xlane.xlu0 %3582
        %v3584 = vsel %vm1300, %v3576, -inf
        %3585 = vmax.xlane.f32.xlu0 %v3584
        %v3586 = vpop.xlane.xlu0 %3585
        %v3587 = vsel %vm1300, %v3577, -inf
        %3588 = vmax.xlane.f32.xlu0 %v3587
        %v3589 = vpop.xlane.xlu0 %3588
        %v3590 = vsub.f32 %v3574, %v3580
        %v3591 = vsub.f32 %v3575, %v3583
        %v3592 = vsub.f32 %v3576, %v3586
        %v3593 = vsub.f32 %v3577, %v3589
        %v3594 = vmul.f32 %v3590, 1.442695
        %v3595 = vpow.pop %v3594
        %v3596 = vmul.f32 %v3591, 1.442695
        %v3597 = vpow.pop %v3596
        %v3598 = vmul.f32 %v3592, 1.442695
        %v3599 = vpow.pop %v3598
        %v3600 = vmul.f32 %v3593, 1.442695
        %v3601 = vpow.pop %v3600
        %v3602 = vsel %vm1300, %v3595, 0.0
        %3603 = vadd.xlane.f32.xlu0 %v3602
        %v3604 = vpop.xlane.xlu0 %3603
        %v3605 = vsel %vm1300, %v3597, 0.0
        %3606 = vadd.xlane.f32.xlu0 %v3605
        %v3607 = vpop.xlane.xlu0 %3606
        %v3608 = vsel %vm1300, %v3599, 0.0
        %3609 = vadd.xlane.f32.xlu0 %v3608
        %v3610 = vpop.xlane.xlu0 %3609
        %v3611 = vsel %vm1300, %v3601, 0.0
        %3612 = vadd.xlane.f32.xlu0 %v3611
        %v3613 = vpop.xlane.xlu0 %3612
        %v3614 = vrcp.pop %v3604
        %v3615 = vrcp.pop %v3607
        %v3616 = vrcp.pop %v3610
        %v3617 = vrcp.pop %v3613
        %v3618 = vmul.f32 %v3595, %v3614
        %v3619 = vmul.f32 %v3597, %v3615
        %v3620 = vmul.f32 %v3599, %v3616
        %v3621 = vmul.f32 %v3601, %v3617
        %v3623 = vsel %vm1300, %v3618, 0
        %3625 = vmatprep.subr.mxu0 0.0
        %3626 = vmatpush1.msra.mxu0 0.0
        %3627 = vmatprep.subr.mxu0 0.0
        %3628 = vmatpush1.msra.mxu0 0.0
        %3629 = vmatprep.subr.mxu0 0.0
        %3630 = vmatpush1.msra.mxu0 0.0
        %3631 = vmatprep.subr.mxu0 0.0
        %3632 = vmatpush1.msra.mxu0 0.0
        %3633 = vmatprep.subr.mxu0 0.0
        %3634 = vmatpush1.msra.mxu0 0.0
        %3635 = vmatprep.subr.mxu0 0.0
        %3636 = vmatpush1.msra.mxu0 0.0
        %3637 = vmatprep.subr.mxu0 0.0
        %3638 = vmatpush1.msra.mxu0 0.0
        %3639 = vmatprep.subr.mxu0 0.0
        %3640 = vmatpush1.msra.mxu0 0.0
        %3641 = vmatprep.subr.mxu0 0.0
        %3642 = vmatpush1.msra.mxu0 0.0
        %3643 = vmatprep.subr.mxu0 0.0
        %3644 = vmatpush1.msra.mxu0 0.0
        %3645 = vmatprep.subr.mxu0 0.0
        %3646 = vmatpush1.msra.mxu0 0.0
        %3647 = vmatprep.subr.mxu0 0.0
        %3648 = vmatpush1.msra.mxu0 0.0
        %3649 = vmatprep.subr.mxu0 0.0
        %3650 = vmatpush1.msra.mxu0 0.0
        %3651 = vmatprep.subr.mxu0 0.0
        %3652 = vmatpush1.msra.mxu0 0.0
        %3653 = vmatprep.subr.mxu0 0.0
        %3654 = vmatpush1.msra.mxu0 0.0
        %3655 = vmatprep.subr.mxu0 0.0
        %3656 = vmatpush1.msra.mxu0 %v3053
        %3657 = vmatprep.subr.mxu0 0.0
        %3658 = vmatpush2.msra.mxu0 0.0
        %3659 = vmatprep.subr.mxu0 0.0
        %3660 = vmatpush2.msra.mxu0 0.0
        %3661 = vmatprep.subr.mxu0 0.0
        %3662 = vmatpush2.msra.mxu0 0.0
        %3663 = vmatprep.subr.mxu0 0.0
        %3664 = vmatpush2.msra.mxu0 0.0
        %3665 = vmatprep.subr.mxu0 0.0
        %3666 = vmatpush2.msra.mxu0 0.0
        %3667 = vmatprep.subr.mxu0 0.0
        %3668 = vmatpush2.msra.mxu0 0.0
        %3669 = vmatprep.subr.mxu0 0.0
        %3670 = vmatpush2.msra.mxu0 0.0
        %3671 = vmatprep.subr.mxu0 0.0
        %3672 = vmatpush2.msra.mxu0 0.0
        %3673 = vmatprep.subr.mxu0 0.0
        %3674 = vmatpush2.msra.mxu0 0.0
        %3675 = vmatprep.subr.mxu0 0.0
        %3676 = vmatpush2.msra.mxu0 0.0
        %3677 = vmatprep.subr.mxu0 0.0
        %3678 = vmatpush2.msra.mxu0 0.0
        %3679 = vmatprep.subr.mxu0 0.0
        %3680 = vmatpush2.msra.mxu0 0.0
        %3681 = vmatprep.subr.mxu0 0.0
        %3682 = vmatpush2.msra.mxu0 0.0
        %3683 = vmatprep.subr.mxu0 0.0
        %3684 = vmatpush2.msra.mxu0 0.0
        %3685 = vmatprep.subr.mxu0 0.0
        %3686 = vmatpush2.msra.mxu0 0.0
        %3687 = vmatprep.subr.mxu0 0.0
        %3688 = vmatpush2.msra.mxu0 0.0
        %3689 = vmatprep.mubr.f32.mxu0 0.0
        %3690 = vmatmul.mubr.f32.gmra.mxu0 %v3623
        %v3691 = vpop.f32.mrf.mxu0
        %v3692 = vadd.f32 0.0, %v3691
        %v3693 = vpop.f32.mrf.mxu0
        %3694 = vdwg.mxu0
        %v3696 = vsel %vm1300, %v3619, 0
        %3698 = vmatprep.subr.mxu0 0.0
        %3699 = vmatpush1.msra.mxu0 0.0
        %3700 = vmatprep.subr.mxu0 0.0
        %3701 = vmatpush1.msra.mxu0 0.0
        %3702 = vmatprep.subr.mxu0 0.0
        %3703 = vmatpush1.msra.mxu0 0.0
        %3704 = vmatprep.subr.mxu0 0.0
        %3705 = vmatpush1.msra.mxu0 0.0
        %3706 = vmatprep.subr.mxu0 0.0
        %3707 = vmatpush1.msra.mxu0 0.0
        %3708 = vmatprep.subr.mxu0 0.0
        %3709 = vmatpush1.msra.mxu0 0.0
        %3710 = vmatprep.subr.mxu0 0.0
        %3711 = vmatpush1.msra.mxu0 0.0
        %3712 = vmatprep.subr.mxu0 0.0
        %3713 = vmatpush1.msra.mxu0 0.0
        %3714 = vmatprep.subr.mxu0 0.0
        %3715 = vmatpush1.msra.mxu0 0.0
        %3716 = vmatprep.subr.mxu0 0.0
        %3717 = vmatpush1.msra.mxu0 0.0
        %3718 = vmatprep.subr.mxu0 0.0
        %3719 = vmatpush1.msra.mxu0 0.0
        %3720 = vmatprep.subr.mxu0 0.0
        %3721 = vmatpush1.msra.mxu0 0.0
        %3722 = vmatprep.subr.mxu0 0.0
        %3723 = vmatpush1.msra.mxu0 0.0
        %3724 = vmatprep.subr.mxu0 0.0
        %3725 = vmatpush1.msra.mxu0 0.0
        %3726 = vmatprep.subr.mxu0 0.0
        %3727 = vmatpush1.msra.mxu0 0.0
        %3728 = vmatprep.subr.mxu0 0.0
        %3729 = vmatpush1.msra.mxu0 %v3123
        %3730 = vmatprep.subr.mxu0 0.0
        %3731 = vmatpush2.msra.mxu0 0.0
        %3732 = vmatprep.subr.mxu0 0.0
        %3733 = vmatpush2.msra.mxu0 0.0
        %3734 = vmatprep.subr.mxu0 0.0
        %3735 = vmatpush2.msra.mxu0 0.0
        %3736 = vmatprep.subr.mxu0 0.0
        %3737 = vmatpush2.msra.mxu0 0.0
        %3738 = vmatprep.subr.mxu0 0.0
        %3739 = vmatpush2.msra.mxu0 0.0
        %3740 = vmatprep.subr.mxu0 0.0
        %3741 = vmatpush2.msra.mxu0 0.0
        %3742 = vmatprep.subr.mxu0 0.0
        %3743 = vmatpush2.msra.mxu0 0.0
        %3744 = vmatprep.subr.mxu0 0.0
        %3745 = vmatpush2.msra.mxu0 0.0
        %3746 = vmatprep.subr.mxu0 0.0
        %3747 = vmatpush2.msra.mxu0 0.0
        %3748 = vmatprep.subr.mxu0 0.0
        %3749 = vmatpush2.msra.mxu0 0.0
        %3750 = vmatprep.subr.mxu0 0.0
        %3751 = vmatpush2.msra.mxu0 0.0
        %3752 = vmatprep.subr.mxu0 0.0
        %3753 = vmatpush2.msra.mxu0 0.0
        %3754 = vmatprep.subr.mxu0 0.0
        %3755 = vmatpush2.msra.mxu0 0.0
        %3756 = vmatprep.subr.mxu0 0.0
        %3757 = vmatpush2.msra.mxu0 0.0
        %3758 = vmatprep.subr.mxu0 0.0
        %3759 = vmatpush2.msra.mxu0 0.0
        %3760 = vmatprep.subr.mxu0 0.0
        %3761 = vmatpush2.msra.mxu0 0.0
        %3762 = vmatprep.mubr.f32.mxu0 0.0
        %3763 = vmatmul.mubr.f32.gmra.mxu0 %v3696
        %v3764 = vpop.f32.mrf.mxu0
        %v3765 = vadd.f32 0.0, %v3764
        %v3766 = vpop.f32.mrf.mxu0
        %3767 = vdwg.mxu0
        %v3769 = vsel %vm1300, %v3620, 0
        %3771 = vmatprep.subr.mxu0 0.0
        %3772 = vmatpush1.msra.mxu0 0.0
        %3773 = vmatprep.subr.mxu0 0.0
        %3774 = vmatpush1.msra.mxu0 0.0
        %3775 = vmatprep.subr.mxu0 0.0
        %3776 = vmatpush1.msra.mxu0 0.0
        %3777 = vmatprep.subr.mxu0 0.0
        %3778 = vmatpush1.msra.mxu0 0.0
        %3779 = vmatprep.subr.mxu0 0.0
        %3780 = vmatpush1.msra.mxu0 0.0
        %3781 = vmatprep.subr.mxu0 0.0
        %3782 = vmatpush1.msra.mxu0 0.0
        %3783 = vmatprep.subr.mxu0 0.0
        %3784 = vmatpush1.msra.mxu0 0.0
        %3785 = vmatprep.subr.mxu0 0.0
        %3786 = vmatpush1.msra.mxu0 0.0
        %3787 = vmatprep.subr.mxu0 0.0
        %3788 = vmatpush1.msra.mxu0 0.0
        %3789 = vmatprep.subr.mxu0 0.0
        %3790 = vmatpush1.msra.mxu0 0.0
        %3791 = vmatprep.subr.mxu0 0.0
        %3792 = vmatpush1.msra.mxu0 0.0
        %3793 = vmatprep.subr.mxu0 0.0
        %3794 = vmatpush1.msra.mxu0 0.0
        %3795 = vmatprep.subr.mxu0 0.0
        %3796 = vmatpush1.msra.mxu0 0.0
        %3797 = vmatprep.subr.mxu0 0.0
        %3798 = vmatpush1.msra.mxu0 0.0
        %3799 = vmatprep.subr.mxu0 0.0
        %3800 = vmatpush1.msra.mxu0 0.0
        %3801 = vmatprep.subr.mxu0 0.0
        %3802 = vmatpush1.msra.mxu0 %v3193
        %3803 = vmatprep.subr.mxu0 0.0
        %3804 = vmatpush2.msra.mxu0 0.0
        %3805 = vmatprep.subr.mxu0 0.0
        %3806 = vmatpush2.msra.mxu0 0.0
        %3807 = vmatprep.subr.mxu0 0.0
        %3808 = vmatpush2.msra.mxu0 0.0
        %3809 = vmatprep.subr.mxu0 0.0
        %3810 = vmatpush2.msra.mxu0 0.0
        %3811 = vmatprep.subr.mxu0 0.0
        %3812 = vmatpush2.msra.mxu0 0.0
        %3813 = vmatprep.subr.mxu0 0.0
        %3814 = vmatpush2.msra.mxu0 0.0
        %3815 = vmatprep.subr.mxu0 0.0
        %3816 = vmatpush2.msra.mxu0 0.0
        %3817 = vmatprep.subr.mxu0 0.0
        %3818 = vmatpush2.msra.mxu0 0.0
        %3819 = vmatprep.subr.mxu0 0.0
        %3820 = vmatpush2.msra.mxu0 0.0
        %3821 = vmatprep.subr.mxu0 0.0
        %3822 = vmatpush2.msra.mxu0 0.0
        %3823 = vmatprep.subr.mxu0 0.0
        %3824 = vmatpush2.msra.mxu0 0.0
        %3825 = vmatprep.subr.mxu0 0.0
        %3826 = vmatpush2.msra.mxu0 0.0
        %3827 = vmatprep.subr.mxu0 0.0
        %3828 = vmatpush2.msra.mxu0 0.0
        %3829 = vmatprep.subr.mxu0 0.0
        %3830 = vmatpush2.msra.mxu0 0.0
        %3831 = vmatprep.subr.mxu0 0.0
        %3832 = vmatpush2.msra.mxu0 0.0
        %3833 = vmatprep.subr.mxu0 0.0
        %3834 = vmatpush2.msra.mxu0 0.0
        %3835 = vmatprep.mubr.f32.mxu0 0.0
        %3836 = vmatmul.mubr.f32.gmra.mxu0 %v3769
        %v3837 = vpop.f32.mrf.mxu0
        %v3838 = vadd.f32 0.0, %v3837
        %v3839 = vpop.f32.mrf.mxu0
        %3840 = vdwg.mxu0
        %v3842 = vsel %vm1300, %v3621, 0
        %3844 = vmatprep.subr.mxu0 0.0
        %3845 = vmatpush1.msra.mxu0 0.0
        %3846 = vmatprep.subr.mxu0 0.0
        %3847 = vmatpush1.msra.mxu0 0.0
        %3848 = vmatprep.subr.mxu0 0.0
        %3849 = vmatpush1.msra.mxu0 0.0
        %3850 = vmatprep.subr.mxu0 0.0
        %3851 = vmatpush1.msra.mxu0 0.0
        %3852 = vmatprep.subr.mxu0 0.0
        %3853 = vmatpush1.msra.mxu0 0.0
        %3854 = vmatprep.subr.mxu0 0.0
        %3855 = vmatpush1.msra.mxu0 0.0
        %3856 = vmatprep.subr.mxu0 0.0
        %3857 = vmatpush1.msra.mxu0 0.0
        %3858 = vmatprep.subr.mxu0 0.0
        %3859 = vmatpush1.msra.mxu0 0.0
        %3860 = vmatprep.subr.mxu0 0.0
        %3861 = vmatpush1.msra.mxu0 0.0
        %3862 = vmatprep.subr.mxu0 0.0
        %3863 = vmatpush1.msra.mxu0 0.0
        %3864 = vmatprep.subr.mxu0 0.0
        %3865 = vmatpush1.msra.mxu0 0.0
        %3866 = vmatprep.subr.mxu0 0.0
        %3867 = vmatpush1.msra.mxu0 0.0
        %3868 = vmatprep.subr.mxu0 0.0
        %3869 = vmatpush1.msra.mxu0 0.0
        %3870 = vmatprep.subr.mxu0 0.0
        %3871 = vmatpush1.msra.mxu0 0.0
        %3872 = vmatprep.subr.mxu0 0.0
        %3873 = vmatpush1.msra.mxu0 0.0
        %3874 = vmatprep.subr.mxu0 0.0
        %3875 = vmatpush1.msra.mxu0 %v3263
        %3876 = vmatprep.subr.mxu0 0.0
        %3877 = vmatpush2.msra.mxu0 0.0
        %3878 = vmatprep.subr.mxu0 0.0
        %3879 = vmatpush2.msra.mxu0 0.0
        %3880 = vmatprep.subr.mxu0 0.0
        %3881 = vmatpush2.msra.mxu0 0.0
        %3882 = vmatprep.subr.mxu0 0.0
        %3883 = vmatpush2.msra.mxu0 0.0
        %3884 = vmatprep.subr.mxu0 0.0
        %3885 = vmatpush2.msra.mxu0 0.0
        %3886 = vmatprep.subr.mxu0 0.0
        %3887 = vmatpush2.msra.mxu0 0.0
        %3888 = vmatprep.subr.mxu0 0.0
        %3889 = vmatpush2.msra.mxu0 0.0
        %3890 = vmatprep.subr.mxu0 0.0
        %3891 = vmatpush2.msra.mxu0 0.0
        %3892 = vmatprep.subr.mxu0 0.0
        %3893 = vmatpush2.msra.mxu0 0.0
        %3894 = vmatprep.subr.mxu0 0.0
        %3895 = vmatpush2.msra.mxu0 0.0
        %3896 = vmatprep.subr.mxu0 0.0
        %3897 = vmatpush2.msra.mxu0 0.0
        %3898 = vmatprep.subr.mxu0 0.0
        %3899 = vmatpush2.msra.mxu0 0.0
        %3900 = vmatprep.subr.mxu0 0.0
        %3901 = vmatpush2.msra.mxu0 0.0
        %3902 = vmatprep.subr.mxu0 0.0
        %3903 = vmatpush2.msra.mxu0 0.0
        %3904 = vmatprep.subr.mxu0 0.0
        %3905 = vmatpush2.msra.mxu0 0.0
        %3906 = vmatprep.subr.mxu0 0.0
        %3907 = vmatpush2.msra.mxu0 0.0
        %3908 = vmatprep.mubr.f32.mxu0 0.0
        %3909 = vmatmul.mubr.f32.gmra.mxu0 %v3842
        %v3910 = vpop.f32.mrf.mxu0
        %v3911 = vadd.f32 0.0, %v3910
        %v3912 = vpop.f32.mrf.mxu0
        %3913 = vdwg.mxu0
        %v3915 = vsel %vm1300, %v3692, 0
        %3917 = vmatprep.subr.mxu0 0.0
        %3918 = vmatpush1.msra.mxu0 0.0
        %3919 = vmatprep.subr.mxu0 0.0
        %3920 = vmatpush1.msra.mxu0 0.0
        %3921 = vmatprep.subr.mxu0 0.0
        %3922 = vmatpush1.msra.mxu0 0.0
        %3923 = vmatprep.subr.mxu0 0.0
        %3924 = vmatpush1.msra.mxu0 0.0
        %3925 = vmatprep.subr.mxu0 0.0
        %3926 = vmatpush1.msra.mxu0 0.0
        %3927 = vmatprep.subr.mxu0 0.0
        %3928 = vmatpush1.msra.mxu0 0.0
        %3929 = vmatprep.subr.mxu0 0.0
        %3930 = vmatpush1.msra.mxu0 0.0
        %3931 = vmatprep.subr.mxu0 0.0
        %3932 = vmatpush1.msra.mxu0 0.0
        %3933 = vmatprep.subr.mxu0 0.0
        %3934 = vmatpush1.msra.mxu0 0.0
        %3935 = vmatprep.subr.mxu0 0.0
        %3936 = vmatpush1.msra.mxu0 0.0
        %3937 = vmatprep.subr.mxu0 0.0
        %3938 = vmatpush1.msra.mxu0 0.0
        %3939 = vmatprep.subr.mxu0 0.0
        %3940 = vmatpush1.msra.mxu0 0.0
        %3941 = vmatprep.subr.mxu0 0.0
        %3942 = vmatpush1.msra.mxu0 0.0
        %3943 = vmatprep.subr.mxu0 0.0
        %3944 = vmatpush1.msra.mxu0 0.0
        %3945 = vmatprep.subr.mxu0 0.0
        %3946 = vmatpush1.msra.mxu0 0.0
        %3947 = vmatprep.subr.mxu0 0.0
        %3948 = vmatpush1.msra.mxu0 %v2345
        %3949 = vmatprep.subr.mxu0 0.0
        %3950 = vmatpush2.msra.mxu0 0.0
        %3951 = vmatprep.subr.mxu0 0.0
        %3952 = vmatpush2.msra.mxu0 0.0
        %3953 = vmatprep.subr.mxu0 0.0
        %3954 = vmatpush2.msra.mxu0 0.0
        %3955 = vmatprep.subr.mxu0 0.0
        %3956 = vmatpush2.msra.mxu0 0.0
        %3957 = vmatprep.subr.mxu0 0.0
        %3958 = vmatpush2.msra.mxu0 0.0
        %3959 = vmatprep.subr.mxu0 0.0
        %3960 = vmatpush2.msra.mxu0 0.0
        %3961 = vmatprep.subr.mxu0 0.0
        %3962 = vmatpush2.msra.mxu0 0.0
        %3963 = vmatprep.subr.mxu0 0.0
        %3964 = vmatpush2.msra.mxu0 0.0
        %3965 = vmatprep.subr.mxu0 0.0
        %3966 = vmatpush2.msra.mxu0 0.0
        %3967 = vmatprep.subr.mxu0 0.0
        %3968 = vmatpush2.msra.mxu0 0.0
        %3969 = vmatprep.subr.mxu0 0.0
        %3970 = vmatpush2.msra.mxu0 0.0
        %3971 = vmatprep.subr.mxu0 0.0
        %3972 = vmatpush2.msra.mxu0 0.0
        %3973 = vmatprep.subr.mxu0 0.0
        %3974 = vmatpush2.msra.mxu0 0.0
        %3975 = vmatprep.subr.mxu0 0.0
        %3976 = vmatpush2.msra.mxu0 0.0
        %3977 = vmatprep.subr.mxu0 0.0
        %3978 = vmatpush2.msra.mxu0 0.0
        %3979 = vmatprep.subr.mxu0 0.0
        %3980 = vmatpush2.msra.mxu0 0.0
        %3981 = vmatprep.mubr.f32.mxu0 0.0
        %3982 = vmatmul.mubr.f32.gmra.mxu0 %v3915
        %v3983 = vpop.f32.mrf.mxu0
        %v3984 = vadd.f32 0.0, %v3983
        %v3985 = vpop.f32.mrf.mxu0
        %3986 = vdwg.mxu0
        %v3988 = vsel %vm1300, %v3765, 0
        %3990 = vmatprep.subr.mxu0 0.0
        %3991 = vmatpush1.msra.mxu0 0.0
        %3992 = vmatprep.subr.mxu0 0.0
        %3993 = vmatpush1.msra.mxu0 0.0
        %3994 = vmatprep.subr.mxu0 0.0
        %3995 = vmatpush1.msra.mxu0 0.0
        %3996 = vmatprep.subr.mxu0 0.0
        %3997 = vmatpush1.msra.mxu0 0.0
        %3998 = vmatprep.subr.mxu0 0.0
        %3999 = vmatpush1.msra.mxu0 0.0
        %4000 = vmatprep.subr.mxu0 0.0
        %4001 = vmatpush1.msra.mxu0 0.0
        %4002 = vmatprep.subr.mxu0 0.0
        %4003 = vmatpush1.msra.mxu0 0.0
        %4004 = vmatprep.subr.mxu0 0.0
        %4005 = vmatpush1.msra.mxu0 0.0
        %4006 = vmatprep.subr.mxu0 0.0
        %4007 = vmatpush1.msra.mxu0 0.0
        %4008 = vmatprep.subr.mxu0 0.0
        %4009 = vmatpush1.msra.mxu0 0.0
        %4010 = vmatprep.subr.mxu0 0.0
        %4011 = vmatpush1.msra.mxu0 0.0
        %4012 = vmatprep.subr.mxu0 0.0
        %4013 = vmatpush1.msra.mxu0 0.0
        %4014 = vmatprep.subr.mxu0 0.0
        %4015 = vmatpush1.msra.mxu0 0.0
        %4016 = vmatprep.subr.mxu0 0.0
        %4017 = vmatpush1.msra.mxu0 0.0
        %4018 = vmatprep.subr.mxu0 0.0
        %4019 = vmatpush1.msra.mxu0 0.0
        %4020 = vmatprep.subr.mxu0 0.0
        %4021 = vmatpush1.msra.mxu0 %v2346
        %4022 = vmatprep.subr.mxu0 0.0
        %4023 = vmatpush2.msra.mxu0 0.0
        %4024 = vmatprep.subr.mxu0 0.0
        %4025 = vmatpush2.msra.mxu0 0.0
        %4026 = vmatprep.subr.mxu0 0.0
        %4027 = vmatpush2.msra.mxu0 0.0
        %4028 = vmatprep.subr.mxu0 0.0
        %4029 = vmatpush2.msra.mxu0 0.0
        %4030 = vmatprep.subr.mxu0 0.0
        %4031 = vmatpush2.msra.mxu0 0.0
        %4032 = vmatprep.subr.mxu0 0.0
        %4033 = vmatpush2.msra.mxu0 0.0
        %4034 = vmatprep.subr.mxu0 0.0
        %4035 = vmatpush2.msra.mxu0 0.0
        %4036 = vmatprep.subr.mxu0 0.0
        %4037 = vmatpush2.msra.mxu0 0.0
        %4038 = vmatprep.subr.mxu0 0.0
        %4039 = vmatpush2.msra.mxu0 0.0
        %4040 = vmatprep.subr.mxu0 0.0
        %4041 = vmatpush2.msra.mxu0 0.0
        %4042 = vmatprep.subr.mxu0 0.0
        %4043 = vmatpush2.msra.mxu0 0.0
        %4044 = vmatprep.subr.mxu0 0.0
        %4045 = vmatpush2.msra.mxu0 0.0
        %4046 = vmatprep.subr.mxu0 0.0
        %4047 = vmatpush2.msra.mxu0 0.0
        %4048 = vmatprep.subr.mxu0 0.0
        %4049 = vmatpush2.msra.mxu0 0.0
        %4050 = vmatprep.subr.mxu0 0.0
        %4051 = vmatpush2.msra.mxu0 0.0
        %4052 = vmatprep.subr.mxu0 0.0
        %4053 = vmatpush2.msra.mxu0 0.0
        %4054 = vmatprep.mubr.f32.mxu0 0.0
        %4055 = vmatmul.mubr.f32.gmra.mxu0 %v3988
        %v4056 = vpop.f32.mrf.mxu0
        %v4057 = vadd.f32 0.0, %v4056
        %v4058 = vpop.f32.mrf.mxu0
        %4059 = vdwg.mxu0
        %v4061 = vsel %vm1300, %v3838, 0
        %4063 = vmatprep.subr.mxu0 0.0
        %4064 = vmatpush1.msra.mxu0 0.0
        %4065 = vmatprep.subr.mxu0 0.0
        %4066 = vmatpush1.msra.mxu0 0.0
        %4067 = vmatprep.subr.mxu0 0.0
        %4068 = vmatpush1.msra.mxu0 0.0
        %4069 = vmatprep.subr.mxu0 0.0
        %4070 = vmatpush1.msra.mxu0 0.0
        %4071 = vmatprep.subr.mxu0 0.0
        %4072 = vmatpush1.msra.mxu0 0.0
        %4073 = vmatprep.subr.mxu0 0.0
        %4074 = vmatpush1.msra.mxu0 0.0
        %4075 = vmatprep.subr.mxu0 0.0
        %4076 = vmatpush1.msra.mxu0 0.0
        %4077 = vmatprep.subr.mxu0 0.0
        %4078 = vmatpush1.msra.mxu0 0.0
        %4079 = vmatprep.subr.mxu0 0.0
        %4080 = vmatpush1.msra.mxu0 0.0
        %4081 = vmatprep.subr.mxu0 0.0
        %4082 = vmatpush1.msra.mxu0 0.0
        %4083 = vmatprep.subr.mxu0 0.0
        %4084 = vmatpush1.msra.mxu0 0.0
        %4085 = vmatprep.subr.mxu0 0.0
        %4086 = vmatpush1.msra.mxu0 0.0
        %4087 = vmatprep.subr.mxu0 0.0
        %4088 = vmatpush1.msra.mxu0 0.0
        %4089 = vmatprep.subr.mxu0 0.0
        %4090 = vmatpush1.msra.mxu0 0.0
        %4091 = vmatprep.subr.mxu0 0.0
        %4092 = vmatpush1.msra.mxu0 0.0
        %4093 = vmatprep.subr.mxu0 0.0
        %4094 = vmatpush1.msra.mxu0 %v2347
        %4095 = vmatprep.subr.mxu0 0.0
        %4096 = vmatpush2.msra.mxu0 0.0
        %4097 = vmatprep.subr.mxu0 0.0
        %4098 = vmatpush2.msra.mxu0 0.0
        %4099 = vmatprep.subr.mxu0 0.0
        %4100 = vmatpush2.msra.mxu0 0.0
        %4101 = vmatprep.subr.mxu0 0.0
        %4102 = vmatpush2.msra.mxu0 0.0
        %4103 = vmatprep.subr.mxu0 0.0
        %4104 = vmatpush2.msra.mxu0 0.0
        %4105 = vmatprep.subr.mxu0 0.0
        %4106 = vmatpush2.msra.mxu0 0.0
        %4107 = vmatprep.subr.mxu0 0.0
        %4108 = vmatpush2.msra.mxu0 0.0
        %4109 = vmatprep.subr.mxu0 0.0
        %4110 = vmatpush2.msra.mxu0 0.0
        %4111 = vmatprep.subr.mxu0 0.0
        %4112 = vmatpush2.msra.mxu0 0.0
        %4113 = vmatprep.subr.mxu0 0.0
        %4114 = vmatpush2.msra.mxu0 0.0
        %4115 = vmatprep.subr.mxu0 0.0
        %4116 = vmatpush2.msra.mxu0 0.0
        %4117 = vmatprep.subr.mxu0 0.0
        %4118 = vmatpush2.msra.mxu0 0.0
        %4119 = vmatprep.subr.mxu0 0.0
        %4120 = vmatpush2.msra.mxu0 0.0
        %4121 = vmatprep.subr.mxu0 0.0
        %4122 = vmatpush2.msra.mxu0 0.0
        %4123 = vmatprep.subr.mxu0 0.0
        %4124 = vmatpush2.msra.mxu0 0.0
        %4125 = vmatprep.subr.mxu0 0.0
        %4126 = vmatpush2.msra.mxu0 0.0
        %4127 = vmatprep.mubr.f32.mxu0 0.0
        %4128 = vmatmul.mubr.f32.gmra.mxu0 %v4061
        %v4129 = vpop.f32.mrf.mxu0
        %v4130 = vadd.f32 0.0, %v4129
        %v4131 = vpop.f32.mrf.mxu0
        %4132 = vdwg.mxu0
        %v4134 = vsel %vm1300, %v3911, 0
        %4136 = vmatprep.subr.mxu0 0.0
        %4137 = vmatpush1.msra.mxu0 0.0
        %4138 = vmatprep.subr.mxu0 0.0
        %4139 = vmatpush1.msra.mxu0 0.0
        %4140 = vmatprep.subr.mxu0 0.0
        %4141 = vmatpush1.msra.mxu0 0.0
        %4142 = vmatprep.subr.mxu0 0.0
        %4143 = vmatpush1.msra.mxu0 0.0
        %4144 = vmatprep.subr.mxu0 0.0
        %4145 = vmatpush1.msra.mxu0 0.0
        %4146 = vmatprep.subr.mxu0 0.0
        %4147 = vmatpush1.msra.mxu0 0.0
        %4148 = vmatprep.subr.mxu0 0.0
        %4149 = vmatpush1.msra.mxu0 0.0
        %4150 = vmatprep.subr.mxu0 0.0
        %4151 = vmatpush1.msra.mxu0 0.0
        %4152 = vmatprep.subr.mxu0 0.0
        %4153 = vmatpush1.msra.mxu0 0.0
        %4154 = vmatprep.subr.mxu0 0.0
        %4155 = vmatpush1.msra.mxu0 0.0
        %4156 = vmatprep.subr.mxu0 0.0
        %4157 = vmatpush1.msra.mxu0 0.0
        %4158 = vmatprep.subr.mxu0 0.0
        %4159 = vmatpush1.msra.mxu0 0.0
        %4160 = vmatprep.subr.mxu0 0.0
        %4161 = vmatpush1.msra.mxu0 0.0
        %4162 = vmatprep.subr.mxu0 0.0
        %4163 = vmatpush1.msra.mxu0 0.0
        %4164 = vmatprep.subr.mxu0 0.0
        %4165 = vmatpush1.msra.mxu0 0.0
        %4166 = vmatprep.subr.mxu0 0.0
        %4167 = vmatpush1.msra.mxu0 %v2348
        %4168 = vmatprep.subr.mxu0 0.0
        %4169 = vmatpush2.msra.mxu0 0.0
        %4170 = vmatprep.subr.mxu0 0.0
        %4171 = vmatpush2.msra.mxu0 0.0
        %4172 = vmatprep.subr.mxu0 0.0
        %4173 = vmatpush2.msra.mxu0 0.0
        %4174 = vmatprep.subr.mxu0 0.0
        %4175 = vmatpush2.msra.mxu0 0.0
        %4176 = vmatprep.subr.mxu0 0.0
        %4177 = vmatpush2.msra.mxu0 0.0
        %4178 = vmatprep.subr.mxu0 0.0
        %4179 = vmatpush2.msra.mxu0 0.0
        %4180 = vmatprep.subr.mxu0 0.0
        %4181 = vmatpush2.msra.mxu0 0.0
        %4182 = vmatprep.subr.mxu0 0.0
        %4183 = vmatpush2.msra.mxu0 0.0
        %4184 = vmatprep.subr.mxu0 0.0
        %4185 = vmatpush2.msra.mxu0 0.0
        %4186 = vmatprep.subr.mxu0 0.0
        %4187 = vmatpush2.msra.mxu0 0.0
        %4188 = vmatprep.subr.mxu0 0.0
        %4189 = vmatpush2.msra.mxu0 0.0
        %4190 = vmatprep.subr.mxu0 0.0
        %4191 = vmatpush2.msra.mxu0 0.0
        %4192 = vmatprep.subr.mxu0 0.0
        %4193 = vmatpush2.msra.mxu0 0.0
        %4194 = vmatprep.subr.mxu0 0.0
        %4195 = vmatpush2.msra.mxu0 0.0
        %4196 = vmatprep.subr.mxu0 0.0
        %4197 = vmatpush2.msra.mxu0 0.0
        %4198 = vmatprep.subr.mxu0 0.0
        %4199 = vmatpush2.msra.mxu0 0.0
        %4200 = vmatprep.mubr.f32.mxu0 0.0
        %4201 = vmatmul.mubr.f32.gmra.mxu0 %v4134
        %v4202 = vpop.f32.mrf.mxu0
        %v4203 = vadd.f32 0.0, %v4202
        %v4204 = vpop.f32.mrf.mxu0
        %4205 = vdwg.mxu0
        %v4206 = vsel %vm405, %v3984, 0.0
        %v4207 = vsel %vm405, %v4057, 0.0
        %v4208 = vadd.f32 %v4206, %v4207
        %v4209 = vsel %vm405, %v4130, 0.0
        %v4210 = vadd.f32 %v4208, %v4209
        %v4211 = vsel %vm405, %v4203, 0.0
        %v4212 = vadd.f32 %v4210, %v4211
        %v4213 = vlaneseq
        %v4214 = vshrl.u32 %v4213, 7
        %v4215 = vsub.s32 0, %v4214
        %v4216 = vrot.slane %v2350, %v4215
        %v4217 = vadd.f32 %v4212, %v4216
        %v4218 = vadd.f32 %v4217, %v2277
        %v4219 = vsel %vm405, %v4218, 0.0
        %4220 = vadd.xlane.f32.xlu0 %v4219
        %v4221 = vpop.xlane.xlu0 %4220
        %v4222 = vmul.f32 %v4221, %v2257
        %v4223 = vsub.f32 %v4218, %v4222
        %v4224 = vmul.f32 %v4223, %v4223
        %v4225 = vsel %vm405, %v4224, 0.0
        %4226 = vadd.xlane.f32.xlu0 %v4225
        %v4227 = vpop.xlane.xlu0 %4226
        %v4228 = vmul.f32 %v4227, %v2257
        %v4229 = vadd.f32 %v4228, 1e-05
        %v4230 = vrsqrt.pop %v4229
        %v4231 = vmul.f32 %v4223, %v4230
        %v4232 = vlaneseq
        %v4233 = vshrl.u32 %v4232, 7
        %v4234 = vsub.s32 1, %v4233
        %v4235 = vrot.slane %v2350, %v4234
        %v4236 = vmul.f32 %v4235, %v4231
        %v4237 = vlaneseq
        %v4238 = vshrl.u32 %v4237, 7
        %v4239 = vsub.s32 2, %v4238
        %v4240 = vrot.slane %v2350, %v4239
        %v4241 = vadd.f32 %v4236, %v4240
        %4242 = vst.msk [vmem:[%s295] sm:$0xff] %vm405, %v4241
        %s4243 = sand.u32 %s191, 1
        %s4244 = scalar_lea.sflag [#allocation3], %s4243
        %s4245 = sand.u32 %s191, 1
        %s4246 = smul.addr %s4245, 8
        %s4247 = scalar_lea.vmem [#allocation2], %s4246
        // Predicated region
        $region49: #{tpu_custom_call.1} parent=47 // pred_check
          %p4248 = pneg %p201
        $region50: #{tpu_custom_call.1} parent=47 // pred_check_branch
          %4250 = sbr.rel (%p4248) target = $region52
        $region51: #{tpu_custom_call.1} parent=47 // pred_region
          %s4252 = ssub.s32 128, 128
          %4253 = vsyncadd %s4244, %s4252
          %s4254 = smul.addr %s21, 128
          %s4255 = scalar_lea.hbm %s7, %s4254
          %s4257 = sshll.u32 %s4247, 4
          %s4258 = int_to_ptr.vmem [resolvable:$true] %s4257
          %4260 = dma.vmem_to_hbm [thread:$0]  %s4258, 128, %s4255, %s4244
        $region52: #{tpu_custom_call.1} parent=47 // pred_fallthru
          _
      $region48: #{tpu_custom_call.1} parent=5 // pred_fallthru
        _
      %p4261 = scmp.le.s32.totalorder 2, %s16
      // Predicated region
      $region53: #{tpu_custom_call.1} parent=5 // pred_check
        %p4262 = pneg %p4261
      $region54: #{tpu_custom_call.1} parent=5 // pred_check_branch
        %4264 = sbr.rel (%p4262) target = $region56
      $region55: #{tpu_custom_call.1} parent=5 // pred_region
        %s4265 = ssub.s32 %s16, 2
        // Predicated region
        $region57: #{tpu_custom_call.1} parent=55 // pred_check
          %p4266 = pneg %p207
        $region58: #{tpu_custom_call.1} parent=55 // pred_check_branch
          %4268 = sbr.rel (%p4266) target = $region60
        $region59: #{tpu_custom_call.1} parent=55 // pred_region
          %s4269 = sand.u32 %s192, 1
          %s4270 = scalar_lea.sflag [#allocation3], %s4269
          %s4271 = sand.u32 %s192, 1
          %s4272 = smul.addr %s4271, 8
          %s4273 = scalar_lea.vmem [#allocation2], %s4272
          %4274 = dma.done %s4270, 128
        $region60: #{tpu_custom_call.1} parent=55 // pred_fallthru
          _
      $region56: #{tpu_custom_call.1} parent=5 // pred_fallthru
        _
    $region6: #{tpu_custom_call.1} parent=1 // loop_footer
      %s20 = sadd.s32 1, %s16
    $region7: #{tpu_custom_call.1} parent=1 // loop_footer_branch
      %15 = sbr.rel target = $region3
    $region8: #{tpu_custom_call.1} parent=1 // loop_exit
      _
    %4275 = vsyncpa [#allocation3], 1
    %s4276 = scalar_lea.sflag [#allocation3], 1
    %4277 = vsyncpa %s4276, 1

</llo_original>
